<compile_context>
chip_gen: v5e
topology: v5e:2x2
jax: 0.10.0
libtpu: 0.0.40
codegen_flags: <defaults>
</compile_context>

<pallas_src>
import functools

import jax
import jax.numpy as jnp
from jax.experimental import pallas as pl
from jax.experimental.pallas import tpu as pltpu


# ----------------------------------------------------------------------------
# Pallas kernels
# ----------------------------------------------------------------------------
def _matmul_bias_act_kernel(x_ref, w_ref, b_ref, o_ref, *, apply_relu):
    # x: (M, K) bf16, w: (K, N) bf16, b: (1, N) f32 -> o: (M, N)
    y = jnp.dot(x_ref[...], w_ref[...], preferred_element_type=jnp.float32)
    y = y + b_ref[...]                       # f32 epilogue (broadcast over M)
    if apply_relu:
        y = jnp.maximum(y, 0.0)
    o_ref[...] = y.astype(o_ref.dtype)


def _fc_head_kernel(x_ref, w1_ref, b1_ref, w2_ref, b2_ref, o_ref):
    # Fused fc1 (ReLU) + fc2: the (B, 512) hidden activation never leaves VMEM.
    h = jnp.dot(x_ref[...], w1_ref[...], preferred_element_type=jnp.float32)
    h = jnp.maximum(h + b1_ref[...], 0.0)                      # f32 epilogue
    y = jnp.dot(h.astype(w2_ref.dtype), w2_ref[...],
                preferred_element_type=jnp.float32)
    o_ref[...] = (y + b2_ref[...]).astype(o_ref.dtype)


def _vmem_spec():
    return pl.BlockSpec(memory_space=pltpu.MemorySpace.VMEM)


def _bytes(*arrays):
    return int(sum(a.size * a.dtype.itemsize for a in arrays))


def matmul_bias_act(x, w, b2d, *, apply_relu, out_dtype):
    """x: (M, K) bf16, w: (K, N) bf16, b2d: (1, N) f32 -> (M, N) out_dtype."""
    M, K = x.shape
    K2, N = w.shape
    assert K == K2 and b2d.shape == (1, N), (x.shape, w.shape, b2d.shape)
    kernel = functools.partial(_matmul_bias_act_kernel, apply_relu=apply_relu)
    cost = pl.CostEstimate(
        flops=2 * M * K * N,
        transcendentals=0,
        bytes_accessed=_bytes(x, w, b2d) + M * N * jnp.dtype(out_dtype).itemsize,
    )
    return pl.pallas_call(
        kernel,
        out_shape=jax.ShapeDtypeStruct((M, N), out_dtype),
        in_specs=[_vmem_spec(), _vmem_spec(), _vmem_spec()],
        out_specs=_vmem_spec(),
        cost_estimate=cost,
    )(x, w, b2d)


def fc_head(x, w1, b1, w2, b2):
    """Fused relu(x @ w1 + b1) @ w2 + b2.  x: (B, K1) bf16 -> (B, N2) f32."""
    B, K1 = x.shape
    N1 = w1.shape[1]
    N2 = w2.shape[1]
    cost = pl.CostEstimate(
        flops=2 * B * K1 * N1 + 2 * B * N1 * N2,
        transcendentals=0,
        bytes_accessed=_bytes(x, w1, b1, w2, b2) + B * N2 * 4,
    )
    return pl.pallas_call(
        _fc_head_kernel,
        out_shape=jax.ShapeDtypeStruct((B, N2), jnp.float32),
        in_specs=[_vmem_spec() for _ in range(5)],
        out_specs=_vmem_spec(),
        cost_estimate=cost,
    )(x, w1, b1, w2, b2)


# ----------------------------------------------------------------------------
# XLA-side glue: NHWC im2col (no transposes; feature order = (kh, kw, C))
# ----------------------------------------------------------------------------
def _im2col_nhwc(x, kh, kw, stride):
    """x: (B, H, W, C) -> patches (B*oh*ow, kh*kw*C), plus (oh, ow)."""
    B, H, W, C = x.shape
    oh = (H - kh) // stride + 1
    ow = (W - kw) // stride + 1
    cols = [
        x[:, i:i + stride * oh:stride, j:j + stride * ow:stride, :]
        for i in range(kh) for j in range(kw)
    ]                                                  # each (B, oh, ow, C)
    p = jnp.stack(cols, axis=3)                        # (B, oh, ow, kh*kw, C)
    p = p.reshape(B * oh * ow, kh * kw * C)            # features: (i, j, c)
    return p, oh, ow


def conv2d_relu(x, w2d, b2d, kh, kw, stride):
    """x: (B,H,W,Cin) bf16; w2d: (kh*kw*Cin, Cout) bf16; b2d: (1, Cout) f32."""
    B = x.shape[0]
    patches, oh, ow = _im2col_nhwc(x, kh, kw, stride)
    y = matmul_bias_act(patches, w2d, b2d, apply_relu=True,
                        out_dtype=jnp.bfloat16)
    return y.reshape(B, oh, ow, w2d.shape[1])          # stays NHWC


# ----------------------------------------------------------------------------
# SimpleDQNet parameters + forward
# ----------------------------------------------------------------------------
def init_params(key, stack_size, nb_actions):
    """PyTorch-layout float32 parameters (as SimpleDQNet would hold them)."""
    def dense_init(k, shape, fan_in):
        bound = 1.0 / jnp.sqrt(jnp.float32(fan_in))
        return jax.random.uniform(k, shape, jnp.float32, -bound, bound)

    keys = jax.random.split(key, 10)
    return {
        # conv weights in PyTorch layout (Cout, Cin, kh, kw)
        "w1": dense_init(keys[0], (32, stack_size, 8, 8), stack_size * 8 * 8),
        "b1": dense_init(keys[1], (32,), stack_size * 8 * 8),
        "w2": dense_init(keys[2], (64, 32, 4, 4), 32 * 4 * 4),
        "b2": dense_init(keys[3], (64,), 32 * 4 * 4),
        "w3": dense_init(keys[4], (64, 64, 3, 3), 64 * 3 * 3),
        "b3": dense_init(keys[5], (64,), 64 * 3 * 3),
        # fc weights stored as (in, out); fc1 rows ordered (C, H, W) like torch.
        "wfc1": dense_init(keys[6], (64 * 5 * 4, 512), 64 * 5 * 4),
        "bfc1": dense_init(keys[7], (512,), 64 * 5 * 4),
        "wfc2": dense_init(keys[8], (512, nb_actions), 512),
        "bfc2": dense_init(keys[9], (nb_actions,), 512),
    }


def prepare_params(params, conv3_hw=(5, 4)):
    """One-time conversion to kernel layout:
       * conv weights -> (kh*kw*Cin, Cout) matching the NHWC im2col order,
       * fc1 rows permuted from (C, H, W) to (H, W, C) flatten order,
       * matmul operands cast to bf16, biases kept f32 as (1, N)."""
    def conv_w(w, b):
        cout, cin, kh, kw = w.shape
        w2d = jnp.transpose(w, (2, 3, 1, 0)).reshape(kh * kw * cin, cout)
        return w2d.astype(jnp.bfloat16), b.reshape(1, cout).astype(jnp.float32)

    oh, ow = conv3_hw
    c3 = params["w3"].shape[0]
    prep = {}
    for li in (1, 2, 3):
        prep[f"w{li}"], prep[f"b{li}"] = conv_w(params[f"w{li}"],
                                                params[f"b{li}"])
    wfc1 = params["wfc1"].reshape(c3, oh, ow, -1)                 # rows (c,h,w)
    wfc1 = wfc1.transpose(1, 2, 0, 3).reshape(c3 * oh * ow, -1)   # -> (h,w,c)
    prep["wfc1"] = wfc1.astype(jnp.bfloat16)
    prep["bfc1"] = params["bfc1"].reshape(1, -1).astype(jnp.float32)
    prep["wfc2"] = params["wfc2"].astype(jnp.bfloat16)
    prep["bfc2"] = params["bfc2"].reshape(1, -1).astype(jnp.float32)
    return prep


def simple_dqnet_forward(prepared, x):
    """x: (B, stack_size, 104, 84) f32 NCHW -> (B, nb_actions) f32."""
    x = jnp.transpose(x, (0, 2, 3, 1)).astype(jnp.bfloat16)  # NHWC bf16 (once)
    x = conv2d_relu(x, prepared["w1"], prepared["b1"], 8, 8, 4)  # (B,25,20,32)
    x = conv2d_relu(x, prepared["w2"], prepared["b2"], 4, 4, 2)  # (B,11, 9,64)
    x = conv2d_relu(x, prepared["w3"], prepared["b3"], 3, 3, 2)  # (B, 5, 4,64)
    B = x.shape[0]
    x = x.reshape(B, -1)                          # (B, 1280), (h, w, c) order
    return fc_head(x, prepared["wfc1"], prepared["bfc1"],
                   prepared["wfc2"], prepared["bfc2"])      # (B, nb_actions)


if __name__ == "__main__":
    stack_size = 4
    nb_actions = 6
    batch = 2

    key = jax.random.PRNGKey(0)
    kx, kp = jax.random.split(key)

    # Input spatial size (104, 84) is dictated by fc1's in_features = 64*5*4.
    x = jax.random.normal(kx, (batch, stack_size, 104, 84), dtype=jnp.float32)
    params = init_params(kp, stack_size, nb_actions)
    prepared = prepare_params(params)       # one-time layout / dtype prep

    fwd = jax.jit(simple_dqnet_forward)
    out = fwd(prepared, x)
    jax.block_until_ready(out)

    assert out.shape == (batch, nb_actions), out.shape
    assert out.dtype == jnp.float32
    assert bool(jnp.all(jnp.isfinite(out)))
    print("KERNEL_OK")
</pallas_src>

<mosaic_0001>
module attributes {stable_mosaic.version = 11 : i64} {
  func.func @_matmul_bias_act_kernel(%arg0: memref<1000x256xbf16, #tpu.memory_space<vmem>>, %arg1: memref<256x32xbf16, #tpu.memory_space<vmem>>, %arg2: memref<1x32xf32, #tpu.memory_space<vmem>>, %arg3: memref<1000x32xbf16, #tpu.memory_space<vmem>>) attributes {dimension_semantics = [], scalar_prefetch = 0 : i64, scratch_operands = 0 : i64, tpu.core_type = #tpu.core_type<tc>} {
    %c0 = arith.constant 0 : index
    %c0_0 = arith.constant 0 : index
    %0 = vector.load %arg0[%c0, %c0_0] : memref<1000x256xbf16, #tpu.memory_space<vmem>>, vector<1000x256xbf16>
    %c0_1 = arith.constant 0 : index
    %c0_2 = arith.constant 0 : index
    %1 = vector.load %arg1[%c0_1, %c0_2] : memref<256x32xbf16, #tpu.memory_space<vmem>>, vector<256x32xbf16>
    %cst = arith.constant dense<0.000000e+00> : vector<1000x32xf32>
    %2 = tpu.matmul %0, %1, %cst {dimension_numbers = #tpu.dot_dimension_numbers<[1], [0], [0], [1], [0, 0, 1, 1], [], []>} : vector<1000x256xbf16>, vector<256x32xbf16>, vector<1000x32xf32> -> vector<1000x32xf32>
    %c0_3 = arith.constant 0 : index
    %c0_4 = arith.constant 0 : index
    %3 = vector.load %arg2[%c0_3, %c0_4] : memref<1x32xf32, #tpu.memory_space<vmem>>, vector<1x32xf32>
    %4 = vector.broadcast %3 : vector<1x32xf32> to vector<1000x32xf32>
    %5 = arith.addf %2, %4 : vector<1000x32xf32>
    %cst_5 = arith.constant 0.000000e+00 : f32
    %6 = vector.broadcast %cst_5 : f32 to vector<1000x32xf32>
    %7 = arith.maximumf %5, %6 : vector<1000x32xf32>
    %8 = arith.truncf %7 : vector<1000x32xf32> to vector<1000x32xbf16>
    %c0_6 = arith.constant 0 : index
    %c0_7 = arith.constant 0 : index
    %9 = vector.load %arg3[%c0_6, %c0_7] : memref<1000x32xbf16, #tpu.memory_space<vmem>>, vector<1000x32xbf16>
    tpu.vector_store %arg3[%c0_6, %c0_7], %8 {strides = array<i32>} : memref<1000x32xbf16, #tpu.memory_space<vmem>>, vector<1000x32xbf16>,
    return
  }
}

module attributes {stable_mosaic.version = 11 : i64} {
  func.func @_matmul_bias_act_kernel(%arg0: memref<198x512xbf16, #tpu.memory_space<vmem>>, %arg1: memref<512x64xbf16, #tpu.memory_space<vmem>>, %arg2: memref<1x64xf32, #tpu.memory_space<vmem>>, %arg3: memref<198x64xbf16, #tpu.memory_space<vmem>>) attributes {dimension_semantics = [], scalar_prefetch = 0 : i64, scratch_operands = 0 : i64, tpu.core_type = #tpu.core_type<tc>} {
    %c0 = arith.constant 0 : index
    %c0_0 = arith.constant 0 : index
    %0 = vector.load %arg0[%c0, %c0_0] : memref<198x512xbf16, #tpu.memory_space<vmem>>, vector<198x512xbf16>
    %c0_1 = arith.constant 0 : index
    %c0_2 = arith.constant 0 : index
    %1 = vector.load %arg1[%c0_1, %c0_2] : memref<512x64xbf16, #tpu.memory_space<vmem>>, vector<512x64xbf16>
    %cst = arith.constant dense<0.000000e+00> : vector<198x64xf32>
    %2 = tpu.matmul %0, %1, %cst {dimension_numbers = #tpu.dot_dimension_numbers<[1], [0], [0], [1], [0, 0, 1, 1], [], []>} : vector<198x512xbf16>, vector<512x64xbf16>, vector<198x64xf32> -> vector<198x64xf32>
    %c0_3 = arith.constant 0 : index
    %c0_4 = arith.constant 0 : index
    %3 = vector.load %arg2[%c0_3, %c0_4] : memref<1x64xf32, #tpu.memory_space<vmem>>, vector<1x64xf32>
    %4 = vector.broadcast %3 : vector<1x64xf32> to vector<198x64xf32>
    %5 = arith.addf %2, %4 : vector<198x64xf32>
    %cst_5 = arith.constant 0.000000e+00 : f32
    %6 = vector.broadcast %cst_5 : f32 to vector<198x64xf32>
    %7 = arith.maximumf %5, %6 : vector<198x64xf32>
    %8 = arith.truncf %7 : vector<198x64xf32> to vector<198x64xbf16>
    %c0_6 = arith.constant 0 : index
    %c0_7 = arith.constant 0 : index
    %9 = vector.load %arg3[%c0_6, %c0_7] : memref<198x64xbf16, #tpu.memory_space<vmem>>, vector<198x64xbf16>
    tpu.vector_store %arg3[%c0_6, %c0_7], %8 {strides = array<i32>} : memref<198x64xbf16, #tpu.memory_space<vmem>>, vector<198x64xbf16>,
    return
  }
}

module attributes {stable_mosaic.version = 11 : i64} {
  func.func @_matmul_bias_act_kernel(%arg0: memref<40x576xbf16, #tpu.memory_space<vmem>>, %arg1: memref<576x64xbf16, #tpu.memory_space<vmem>>, %arg2: memref<1x64xf32, #tpu.memory_space<vmem>>, %arg3: memref<40x64xbf16, #tpu.memory_space<vmem>>) attributes {dimension_semantics = [], scalar_prefetch = 0 : i64, scratch_operands = 0 : i64, tpu.core_type = #tpu.core_type<tc>} {
    %c0 = arith.constant 0 : index
    %c0_0 = arith.constant 0 : index
    %0 = vector.load %arg0[%c0, %c0_0] : memref<40x576xbf16, #tpu.memory_space<vmem>>, vector<40x576xbf16>
    %c0_1 = arith.constant 0 : index
    %c0_2 = arith.constant 0 : index
    %1 = vector.load %arg1[%c0_1, %c0_2] : memref<576x64xbf16, #tpu.memory_space<vmem>>, vector<576x64xbf16>
    %cst = arith.constant dense<0.000000e+00> : vector<40x64xf32>
    %2 = tpu.matmul %0, %1, %cst {dimension_numbers = #tpu.dot_dimension_numbers<[1], [0], [0], [1], [0, 0, 1, 1], [], []>} : vector<40x576xbf16>, vector<576x64xbf16>, vector<40x64xf32> -> vector<40x64xf32>
    %c0_3 = arith.constant 0 : index
    %c0_4 = arith.constant 0 : index
    %3 = vector.load %arg2[%c0_3, %c0_4] : memref<1x64xf32, #tpu.memory_space<vmem>>, vector<1x64xf32>
    %4 = vector.broadcast %3 : vector<1x64xf32> to vector<40x64xf32>
    %5 = arith.addf %2, %4 : vector<40x64xf32>
    %cst_5 = arith.constant 0.000000e+00 : f32
    %6 = vector.broadcast %cst_5 : f32 to vector<40x64xf32>
    %7 = arith.maximumf %5, %6 : vector<40x64xf32>
    %8 = arith.truncf %7 : vector<40x64xf32> to vector<40x64xbf16>
    %c0_6 = arith.constant 0 : index
    %c0_7 = arith.constant 0 : index
    %9 = vector.load %arg3[%c0_6, %c0_7] : memref<40x64xbf16, #tpu.memory_space<vmem>>, vector<40x64xbf16>
    tpu.vector_store %arg3[%c0_6, %c0_7], %8 {strides = array<i32>} : memref<40x64xbf16, #tpu.memory_space<vmem>>, vector<40x64xbf16>,
    return
  }
}

module attributes {stable_mosaic.version = 11 : i64} {
  func.func @_fc_head_kernel(%arg0: memref<2x1280xbf16, #tpu.memory_space<vmem>>, %arg1: memref<1280x512xbf16, #tpu.memory_space<vmem>>, %arg2: memref<1x512xf32, #tpu.memory_space<vmem>>, %arg3: memref<512x6xbf16, #tpu.memory_space<vmem>>, %arg4: memref<1x6xf32, #tpu.memory_space<vmem>>, %arg5: memref<2x6xf32, #tpu.memory_space<vmem>>) attributes {dimension_semantics = [], scalar_prefetch = 0 : i64, scratch_operands = 0 : i64, tpu.core_type = #tpu.core_type<tc>} {
    %c0 = arith.constant 0 : index
    %c0_0 = arith.constant 0 : index
    %0 = vector.load %arg0[%c0, %c0_0] : memref<2x1280xbf16, #tpu.memory_space<vmem>>, vector<2x1280xbf16>
    %c0_1 = arith.constant 0 : index
    %c0_2 = arith.constant 0 : index
    %1 = vector.load %arg1[%c0_1, %c0_2] : memref<1280x512xbf16, #tpu.memory_space<vmem>>, vector<1280x512xbf16>
    %cst = arith.constant dense<0.000000e+00> : vector<2x512xf32>
    %2 = tpu.matmul %0, %1, %cst {dimension_numbers = #tpu.dot_dimension_numbers<[1], [0], [0], [1], [0, 0, 1, 1], [], []>} : vector<2x1280xbf16>, vector<1280x512xbf16>, vector<2x512xf32> -> vector<2x512xf32>
    %c0_3 = arith.constant 0 : index
    %c0_4 = arith.constant 0 : index
    %3 = vector.load %arg2[%c0_3, %c0_4] : memref<1x512xf32, #tpu.memory_space<vmem>>, vector<1x512xf32>
    %4 = vector.broadcast %3 : vector<1x512xf32> to vector<2x512xf32>
    %5 = arith.addf %2, %4 : vector<2x512xf32>
    %cst_5 = arith.constant 0.000000e+00 : f32
    %6 = vector.broadcast %cst_5 : f32 to vector<2x512xf32>
    %7 = arith.maximumf %5, %6 : vector<2x512xf32>
    %8 = arith.truncf %7 : vector<2x512xf32> to vector<2x512xbf16>
    %c0_6 = arith.constant 0 : index
    %c0_7 = arith.constant 0 : index
    %9 = vector.load %arg3[%c0_6, %c0_7] : memref<512x6xbf16, #tpu.memory_space<vmem>>, vector<512x6xbf16>
    %cst_8 = arith.constant dense<0.000000e+00> : vector<2x6xf32>
    %10 = tpu.matmul %8, %9, %cst_8 {dimension_numbers = #tpu.dot_dimension_numbers<[1], [0], [0], [1], [0, 0, 1, 1], [], []>} : vector<2x512xbf16>, vector<512x6xbf16>, vector<2x6xf32> -> vector<2x6xf32>
    %c0_9 = arith.constant 0 : index
    %c0_10 = arith.constant 0 : index
    %11 = vector.load %arg4[%c0_9, %c0_10] : memref<1x6xf32, #tpu.memory_space<vmem>>, vector<1x6xf32>
    %12 = vector.broadcast %11 : vector<1x6xf32> to vector<2x6xf32>
    %13 = arith.addf %10, %12 : vector<2x6xf32>
    %c0_11 = arith.constant 0 : index
    %c0_12 = arith.constant 0 : index
    %14 = vector.load %arg5[%c0_11, %c0_12] : memref<2x6xf32, #tpu.memory_space<vmem>>, vector<2x6xf32>
    tpu.vector_store %arg5[%c0_11, %c0_12], %13 {strides = array<i32>} : memref<2x6xf32, #tpu.memory_space<vmem>>, vector<2x6xf32>,
    return
  }
}

</mosaic_0001>

<llo_original>
// kernel: simple_dqnet_forward.4
$region0: #{simple_dqnet_forward.4}
  #allocation0 [shape = 'u32[]', space=smem, size = 0x4, offset = 0x4, fixed_abs, tag = 'smem constant byte address 0x4 - core index']
  #allocation1 [shape = 'u32[72,128]{1,0:T(1,128)}', space=vmem, size = 0x9000, scoped, tag = 'internal scratch']
  %s0 = inlined_call_operand.vmem [shape: bf16[1000,256], index: 0, kind: input, shape index: {}]
  %s1 = inlined_call_operand.vmem [shape: bf16[256,32], index: 1, kind: input, shape index: {}]
  %s2 = inlined_call_operand.vmem [shape: f32[1,32], index: 2, kind: input, shape index: {}]
  %s3 = inlined_call_operand.vmem [shape: bf16[1000,32], index: 3, kind: output, shape index: {}]
  %s4 = sld [smem:[#allocation0]]
  $region22: #{simple_dqnet_forward.4} parent=0
    _
  %s6 = ssub.s32 1, %s4
  %s7 = scalar_select 0, %s6, %s4
  // Predicated region
  $region2: #{simple_dqnet_forward.4} parent=0 // pred_check
    _
  $region3: #{simple_dqnet_forward.4} parent=0 // pred_check_branch
    %9 = sbr.rel (0) target = $region5
  $region4: #{simple_dqnet_forward.4} parent=0 // pred_region
    _
  $region5: #{simple_dqnet_forward.4} parent=0 // pred_fallthru
    _
  // Predicated region
  $region6: #{simple_dqnet_forward.4} parent=0 // pred_check
    _
  $region7: #{simple_dqnet_forward.4} parent=0 // pred_check_branch
    %11 = sbr.rel (0) target = $region9
  $region8: #{simple_dqnet_forward.4} parent=0 // pred_region
    _
  $region9: #{simple_dqnet_forward.4} parent=0 // pred_fallthru
    _
  // Predicated region
  $region10: #{simple_dqnet_forward.4} parent=0 // pred_check
    _
  $region11: #{simple_dqnet_forward.4} parent=0 // pred_check_branch
    %13 = sbr.rel (0) target = $region13
  $region12: #{simple_dqnet_forward.4} parent=0 // pred_region
    _
  $region13: #{simple_dqnet_forward.4} parent=0 // pred_fallthru
    _
  %v14 = vld [vmem:[%s0] sm:$0xff]
  %v15 = vld [vmem:[%s0 + $0x8] sm:$0xff]
  %v16 = vld [vmem:[%s0 + $0x10] sm:$0xff]
  %v17 = vld [vmem:[%s0 + $0x18] sm:$0xff]
  %v18 = vld [vmem:[%s0 + $0x20] sm:$0xff]
  %v19 = vld [vmem:[%s0 + $0x28] sm:$0xff]
  %v20 = vld [vmem:[%s0 + $0x30] sm:$0xff]
  %v21 = vld [vmem:[%s0 + $0x38] sm:$0xff]
  %v22 = vld [vmem:[%s0 + $0x40] sm:$0xff]
  %v23 = vld [vmem:[%s0 + $0x48] sm:$0xff]
  %v24 = vld [vmem:[%s0 + $0x50] sm:$0xff]
  %v25 = vld [vmem:[%s0 + $0x58] sm:$0xff]
  %v26 = vld [vmem:[%s0 + $0x60] sm:$0xff]
  %v27 = vld [vmem:[%s0 + $0x68] sm:$0xff]
  %v28 = vld [vmem:[%s0 + $0x70] sm:$0xff]
  %v29 = vld [vmem:[%s0 + $0x78] sm:$0xff]
  %v30 = vld [vmem:[%s0 + $0x80] sm:$0xff]
  %v31 = vld [vmem:[%s0 + $0x88] sm:$0xff]
  %v32 = vld [vmem:[%s0 + $0x90] sm:$0xff]
  %v33 = vld [vmem:[%s0 + $0x98] sm:$0xff]
  %v34 = vld [vmem:[%s0 + $0xa0] sm:$0xff]
  %v35 = vld [vmem:[%s0 + $0xa8] sm:$0xff]
  %v36 = vld [vmem:[%s0 + $0xb0] sm:$0xff]
  %v37 = vld [vmem:[%s0 + $0xb8] sm:$0xff]
  %v38 = vld [vmem:[%s0 + $0xc0] sm:$0xff]
  %v39 = vld [vmem:[%s0 + $0xc8] sm:$0xff]
  %v40 = vld [vmem:[%s0 + $0xd0] sm:$0xff]
  %v41 = vld [vmem:[%s0 + $0xd8] sm:$0xff]
  %v42 = vld [vmem:[%s0 + $0xe0] sm:$0xff]
  %v43 = vld [vmem:[%s0 + $0xe8] sm:$0xff]
  %v44 = vld [vmem:[%s0 + $0xf0] sm:$0xff]
  %v45 = vld [vmem:[%s0 + $0xf8] sm:$0xff]
  %v46 = vld [vmem:[%s0 + $0x100] sm:$0xff]
  %v47 = vld [vmem:[%s0 + $0x108] sm:$0xff]
  %v48 = vld [vmem:[%s0 + $0x110] sm:$0xff]
  %v49 = vld [vmem:[%s0 + $0x118] sm:$0xff]
  %v50 = vld [vmem:[%s0 + $0x120] sm:$0xff]
  %v51 = vld [vmem:[%s0 + $0x128] sm:$0xff]
  %v52 = vld [vmem:[%s0 + $0x130] sm:$0xff]
  %v53 = vld [vmem:[%s0 + $0x138] sm:$0xff]
  %v54 = vld [vmem:[%s0 + $0x140] sm:$0xff]
  %v55 = vld [vmem:[%s0 + $0x148] sm:$0xff]
  %v56 = vld [vmem:[%s0 + $0x150] sm:$0xff]
  %v57 = vld [vmem:[%s0 + $0x158] sm:$0xff]
  %v58 = vld [vmem:[%s0 + $0x160] sm:$0xff]
  %v59 = vld [vmem:[%s0 + $0x168] sm:$0xff]
  %v60 = vld [vmem:[%s0 + $0x170] sm:$0xff]
  %v61 = vld [vmem:[%s0 + $0x178] sm:$0xff]
  %v62 = vld [vmem:[%s0 + $0x180] sm:$0xff]
  %v63 = vld [vmem:[%s0 + $0x188] sm:$0xff]
  %v64 = vld [vmem:[%s0 + $0x190] sm:$0xff]
  %v65 = vld [vmem:[%s0 + $0x198] sm:$0xff]
  %v66 = vld [vmem:[%s0 + $0x1a0] sm:$0xff]
  %v67 = vld [vmem:[%s0 + $0x1a8] sm:$0xff]
  %v68 = vld [vmem:[%s0 + $0x1b0] sm:$0xff]
  %v69 = vld [vmem:[%s0 + $0x1b8] sm:$0xff]
  %v70 = vld [vmem:[%s0 + $0x1c0] sm:$0xff]
  %v71 = vld [vmem:[%s0 + $0x1c8] sm:$0xff]
  %v72 = vld [vmem:[%s0 + $0x1d0] sm:$0xff]
  %v73 = vld [vmem:[%s0 + $0x1d8] sm:$0xff]
  %v74 = vld [vmem:[%s0 + $0x1e0] sm:$0xff]
  %v75 = vld [vmem:[%s0 + $0x1e8] sm:$0xff]
  %v76 = vld [vmem:[%s0 + $0x1f0] sm:$0xff]
  %v77 = vld [vmem:[%s0 + $0x1f8] sm:$0xff]
  %v78 = vld [vmem:[%s0 + $0x200] sm:$0xff]
  %v79 = vld [vmem:[%s0 + $0x208] sm:$0xff]
  %v80 = vld [vmem:[%s0 + $0x210] sm:$0xff]
  %v81 = vld [vmem:[%s0 + $0x218] sm:$0xff]
  %v82 = vld [vmem:[%s0 + $0x220] sm:$0xff]
  %v83 = vld [vmem:[%s0 + $0x228] sm:$0xff]
  %v84 = vld [vmem:[%s0 + $0x230] sm:$0xff]
  %v85 = vld [vmem:[%s0 + $0x238] sm:$0xff]
  %v86 = vld [vmem:[%s0 + $0x240] sm:$0xff]
  %v87 = vld [vmem:[%s0 + $0x248] sm:$0xff]
  %v88 = vld [vmem:[%s0 + $0x250] sm:$0xff]
  %v89 = vld [vmem:[%s0 + $0x258] sm:$0xff]
  %v90 = vld [vmem:[%s0 + $0x260] sm:$0xff]
  %v91 = vld [vmem:[%s0 + $0x268] sm:$0xff]
  %v92 = vld [vmem:[%s0 + $0x270] sm:$0xff]
  %v93 = vld [vmem:[%s0 + $0x278] sm:$0xff]
  %v94 = vld [vmem:[%s0 + $0x280] sm:$0xff]
  %v95 = vld [vmem:[%s0 + $0x288] sm:$0xff]
  %v96 = vld [vmem:[%s0 + $0x290] sm:$0xff]
  %v97 = vld [vmem:[%s0 + $0x298] sm:$0xff]
  %v98 = vld [vmem:[%s0 + $0x2a0] sm:$0xff]
  %v99 = vld [vmem:[%s0 + $0x2a8] sm:$0xff]
  %v100 = vld [vmem:[%s0 + $0x2b0] sm:$0xff]
  %v101 = vld [vmem:[%s0 + $0x2b8] sm:$0xff]
  %v102 = vld [vmem:[%s0 + $0x2c0] sm:$0xff]
  %v103 = vld [vmem:[%s0 + $0x2c8] sm:$0xff]
  %v104 = vld [vmem:[%s0 + $0x2d0] sm:$0xff]
  %v105 = vld [vmem:[%s0 + $0x2d8] sm:$0xff]
  %v106 = vld [vmem:[%s0 + $0x2e0] sm:$0xff]
  %v107 = vld [vmem:[%s0 + $0x2e8] sm:$0xff]
  %v108 = vld [vmem:[%s0 + $0x2f0] sm:$0xff]
  %v109 = vld [vmem:[%s0 + $0x2f8] sm:$0xff]
  %v110 = vld [vmem:[%s0 + $0x300] sm:$0xff]
  %v111 = vld [vmem:[%s0 + $0x308] sm:$0xff]
  %v112 = vld [vmem:[%s0 + $0x310] sm:$0xff]
  %v113 = vld [vmem:[%s0 + $0x318] sm:$0xff]
  %v114 = vld [vmem:[%s0 + $0x320] sm:$0xff]
  %v115 = vld [vmem:[%s0 + $0x328] sm:$0xff]
  %v116 = vld [vmem:[%s0 + $0x330] sm:$0xff]
  %v117 = vld [vmem:[%s0 + $0x338] sm:$0xff]
  %v118 = vld [vmem:[%s0 + $0x340] sm:$0xff]
  %v119 = vld [vmem:[%s0 + $0x348] sm:$0xff]
  %v120 = vld [vmem:[%s0 + $0x350] sm:$0xff]
  %v121 = vld [vmem:[%s0 + $0x358] sm:$0xff]
  %v122 = vld [vmem:[%s0 + $0x360] sm:$0xff]
  %v123 = vld [vmem:[%s0 + $0x368] sm:$0xff]
  %v124 = vld [vmem:[%s0 + $0x370] sm:$0xff]
  %v125 = vld [vmem:[%s0 + $0x378] sm:$0xff]
  %v126 = vld [vmem:[%s0 + $0x380] sm:$0xff]
  %v127 = vld [vmem:[%s0 + $0x388] sm:$0xff]
  %v128 = vld [vmem:[%s0 + $0x390] sm:$0xff]
  %v129 = vld [vmem:[%s0 + $0x398] sm:$0xff]
  %v130 = vld [vmem:[%s0 + $0x3a0] sm:$0xff]
  %v131 = vld [vmem:[%s0 + $0x3a8] sm:$0xff]
  %v132 = vld [vmem:[%s0 + $0x3b0] sm:$0xff]
  %v133 = vld [vmem:[%s0 + $0x3b8] sm:$0xff]
  %v134 = vld [vmem:[%s0 + $0x3c0] sm:$0xff]
  %v135 = vld [vmem:[%s0 + $0x3c8] sm:$0xff]
  %v136 = vld [vmem:[%s0 + $0x3d0] sm:$0xff]
  %v137 = vld [vmem:[%s0 + $0x3d8] sm:$0xff]
  %v138 = vld [vmem:[%s0 + $0x3e0] sm:$0xff]
  %v139 = vld [vmem:[%s1] sm:$0xf]
  %v140 = vld [vmem:[%s1 + $0x4] sm:$0xf]
  %v141 = vld [vmem:[%s1 + $0x8] sm:$0xf]
  %v142 = vld [vmem:[%s1 + $0xc] sm:$0xf]
  %v143 = vld [vmem:[%s1 + $0x10] sm:$0xf]
  %v144 = vld [vmem:[%s1 + $0x14] sm:$0xf]
  %v145 = vld [vmem:[%s1 + $0x18] sm:$0xf]
  %v146 = vld [vmem:[%s1 + $0x1c] sm:$0xf]
  %v147 = vld [vmem:[%s1 + $0x20] sm:$0xf]
  %v148 = vld [vmem:[%s1 + $0x24] sm:$0xf]
  %v149 = vld [vmem:[%s1 + $0x28] sm:$0xf]
  %v150 = vld [vmem:[%s1 + $0x2c] sm:$0xf]
  %v151 = vld [vmem:[%s1 + $0x30] sm:$0xf]
  %v152 = vld [vmem:[%s1 + $0x34] sm:$0xf]
  %v153 = vld [vmem:[%s1 + $0x38] sm:$0xf]
  %v154 = vld [vmem:[%s1 + $0x3c] sm:$0xf]
  %v155 = vld [vmem:[%s1 + $0x40] sm:$0xf]
  %v156 = vld [vmem:[%s1 + $0x44] sm:$0xf]
  %v157 = vld [vmem:[%s1 + $0x48] sm:$0xf]
  %v158 = vld [vmem:[%s1 + $0x4c] sm:$0xf]
  %v159 = vld [vmem:[%s1 + $0x50] sm:$0xf]
  %v160 = vld [vmem:[%s1 + $0x54] sm:$0xf]
  %v161 = vld [vmem:[%s1 + $0x58] sm:$0xf]
  %v162 = vld [vmem:[%s1 + $0x5c] sm:$0xf]
  %v163 = vld [vmem:[%s1 + $0x60] sm:$0xf]
  %v164 = vld [vmem:[%s1 + $0x64] sm:$0xf]
  %v165 = vld [vmem:[%s1 + $0x68] sm:$0xf]
  %v166 = vld [vmem:[%s1 + $0x6c] sm:$0xf]
  %v167 = vld [vmem:[%s1 + $0x70] sm:$0xf]
  %v168 = vld [vmem:[%s1 + $0x74] sm:$0xf]
  %v169 = vld [vmem:[%s1 + $0x78] sm:$0xf]
  %v170 = vld [vmem:[%s1 + $0x7c] sm:$0xf]
  %v171 = vld [vmem:[%s2] sm:$0x1]
  %v173 = vperm.slane %v171, 0
  %v300 = vunpack.c.l.b16 %v14
  %v301 = vunpack.c.h.b16 %v14
  %v302 = vunpack.c.l.b16 %v15
  %v303 = vunpack.c.h.b16 %v15
  %v304 = vunpack.c.l.b16 %v16
  %v305 = vunpack.c.h.b16 %v16
  %v306 = vunpack.c.l.b16 %v17
  %v307 = vunpack.c.h.b16 %v17
  %v308 = vunpack.c.l.b16 %v18
  %v309 = vunpack.c.h.b16 %v18
  %v310 = vunpack.c.l.b16 %v19
  %v311 = vunpack.c.h.b16 %v19
  %v312 = vunpack.c.l.b16 %v20
  %v313 = vunpack.c.h.b16 %v20
  %v314 = vunpack.c.l.b16 %v21
  %v315 = vunpack.c.h.b16 %v21
  %v316 = vunpack.c.l.b16 %v22
  %v317 = vunpack.c.h.b16 %v22
  %v318 = vunpack.c.l.b16 %v23
  %v319 = vunpack.c.h.b16 %v23
  %v320 = vunpack.c.l.b16 %v24
  %v321 = vunpack.c.h.b16 %v24
  %v322 = vunpack.c.l.b16 %v25
  %v323 = vunpack.c.h.b16 %v25
  %v324 = vunpack.c.l.b16 %v26
  %v325 = vunpack.c.h.b16 %v26
  %v326 = vunpack.c.l.b16 %v27
  %v327 = vunpack.c.h.b16 %v27
  %v328 = vunpack.c.l.b16 %v28
  %v329 = vunpack.c.h.b16 %v28
  %v330 = vunpack.c.l.b16 %v29
  %v331 = vunpack.c.h.b16 %v29
  %v332 = vunpack.c.l.b16 %v30
  %v333 = vunpack.c.h.b16 %v30
  %v334 = vunpack.c.l.b16 %v31
  %v335 = vunpack.c.h.b16 %v31
  %v336 = vunpack.c.l.b16 %v32
  %v337 = vunpack.c.h.b16 %v32
  %v338 = vunpack.c.l.b16 %v33
  %v339 = vunpack.c.h.b16 %v33
  %v340 = vunpack.c.l.b16 %v34
  %v341 = vunpack.c.h.b16 %v34
  %v342 = vunpack.c.l.b16 %v35
  %v343 = vunpack.c.h.b16 %v35
  %v344 = vunpack.c.l.b16 %v36
  %v345 = vunpack.c.h.b16 %v36
  %v346 = vunpack.c.l.b16 %v37
  %v347 = vunpack.c.h.b16 %v37
  %v348 = vunpack.c.l.b16 %v38
  %v349 = vunpack.c.h.b16 %v38
  %v350 = vunpack.c.l.b16 %v39
  %v351 = vunpack.c.h.b16 %v39
  %v352 = vunpack.c.l.b16 %v40
  %v353 = vunpack.c.h.b16 %v40
  %v354 = vunpack.c.l.b16 %v41
  %v355 = vunpack.c.h.b16 %v41
  %v356 = vunpack.c.l.b16 %v42
  %v357 = vunpack.c.h.b16 %v42
  %v358 = vunpack.c.l.b16 %v43
  %v359 = vunpack.c.h.b16 %v43
  %v360 = vunpack.c.l.b16 %v44
  %v361 = vunpack.c.h.b16 %v44
  %v362 = vunpack.c.l.b16 %v45
  %v363 = vunpack.c.h.b16 %v45
  %v364 = vunpack.c.l.b16 %v46
  %v365 = vunpack.c.h.b16 %v46
  %v366 = vunpack.c.l.b16 %v47
  %v367 = vunpack.c.h.b16 %v47
  %v368 = vunpack.c.l.b16 %v48
  %v369 = vunpack.c.h.b16 %v48
  %v370 = vunpack.c.l.b16 %v49
  %v371 = vunpack.c.h.b16 %v49
  %v372 = vunpack.c.l.b16 %v50
  %v373 = vunpack.c.h.b16 %v50
  %v374 = vunpack.c.l.b16 %v51
  %v375 = vunpack.c.h.b16 %v51
  %v376 = vunpack.c.l.b16 %v52
  %v377 = vunpack.c.h.b16 %v52
  %v378 = vunpack.c.l.b16 %v53
  %v379 = vunpack.c.h.b16 %v53
  %v380 = vunpack.c.l.b16 %v54
  %v381 = vunpack.c.h.b16 %v54
  %v382 = vunpack.c.l.b16 %v55
  %v383 = vunpack.c.h.b16 %v55
  %v384 = vunpack.c.l.b16 %v56
  %v385 = vunpack.c.h.b16 %v56
  %v386 = vunpack.c.l.b16 %v57
  %v387 = vunpack.c.h.b16 %v57
  %v388 = vunpack.c.l.b16 %v58
  %v389 = vunpack.c.h.b16 %v58
  %v390 = vunpack.c.l.b16 %v59
  %v391 = vunpack.c.h.b16 %v59
  %v392 = vunpack.c.l.b16 %v60
  %v393 = vunpack.c.h.b16 %v60
  %v394 = vunpack.c.l.b16 %v61
  %v395 = vunpack.c.h.b16 %v61
  %v396 = vunpack.c.l.b16 %v62
  %v397 = vunpack.c.h.b16 %v62
  %v398 = vunpack.c.l.b16 %v63
  %v399 = vunpack.c.h.b16 %v63
  %v400 = vunpack.c.l.b16 %v64
  %v401 = vunpack.c.h.b16 %v64
  %v402 = vunpack.c.l.b16 %v65
  %v403 = vunpack.c.h.b16 %v65
  %v404 = vunpack.c.l.b16 %v66
  %v405 = vunpack.c.h.b16 %v66
  %v406 = vunpack.c.l.b16 %v67
  %v407 = vunpack.c.h.b16 %v67
  %v408 = vunpack.c.l.b16 %v68
  %v409 = vunpack.c.h.b16 %v68
  %v410 = vunpack.c.l.b16 %v69
  %v411 = vunpack.c.h.b16 %v69
  %v412 = vunpack.c.l.b16 %v70
  %v413 = vunpack.c.h.b16 %v70
  %v414 = vunpack.c.l.b16 %v71
  %v415 = vunpack.c.h.b16 %v71
  %v416 = vunpack.c.l.b16 %v72
  %v417 = vunpack.c.h.b16 %v72
  %v418 = vunpack.c.l.b16 %v73
  %v419 = vunpack.c.h.b16 %v73
  %v420 = vunpack.c.l.b16 %v74
  %v421 = vunpack.c.h.b16 %v74
  %v422 = vunpack.c.l.b16 %v75
  %v423 = vunpack.c.h.b16 %v75
  %v424 = vunpack.c.l.b16 %v76
  %v425 = vunpack.c.h.b16 %v76
  %v426 = vunpack.c.l.b16 %v77
  %v427 = vunpack.c.h.b16 %v77
  %v428 = vunpack.c.l.b16 %v78
  %v429 = vunpack.c.h.b16 %v78
  %v430 = vunpack.c.l.b16 %v79
  %v431 = vunpack.c.h.b16 %v79
  %v432 = vunpack.c.l.b16 %v80
  %v433 = vunpack.c.h.b16 %v80
  %v434 = vunpack.c.l.b16 %v81
  %v435 = vunpack.c.h.b16 %v81
  %v436 = vunpack.c.l.b16 %v82
  %v437 = vunpack.c.h.b16 %v82
  %v438 = vunpack.c.l.b16 %v83
  %v439 = vunpack.c.h.b16 %v83
  %v440 = vunpack.c.l.b16 %v84
  %v441 = vunpack.c.h.b16 %v84
  %v442 = vunpack.c.l.b16 %v85
  %v443 = vunpack.c.h.b16 %v85
  %v444 = vunpack.c.l.b16 %v86
  %v445 = vunpack.c.h.b16 %v86
  %v446 = vunpack.c.l.b16 %v87
  %v447 = vunpack.c.h.b16 %v87
  %v448 = vunpack.c.l.b16 %v88
  %v449 = vunpack.c.h.b16 %v88
  %v450 = vunpack.c.l.b16 %v89
  %v451 = vunpack.c.h.b16 %v89
  %v452 = vunpack.c.l.b16 %v90
  %v453 = vunpack.c.h.b16 %v90
  %v454 = vunpack.c.l.b16 %v91
  %v455 = vunpack.c.h.b16 %v91
  %v456 = vunpack.c.l.b16 %v92
  %v457 = vunpack.c.h.b16 %v92
  %v458 = vunpack.c.l.b16 %v93
  %v459 = vunpack.c.h.b16 %v93
  %v460 = vunpack.c.l.b16 %v94
  %v461 = vunpack.c.h.b16 %v94
  %v462 = vunpack.c.l.b16 %v95
  %v463 = vunpack.c.h.b16 %v95
  %v464 = vunpack.c.l.b16 %v96
  %v465 = vunpack.c.h.b16 %v96
  %v466 = vunpack.c.l.b16 %v97
  %v467 = vunpack.c.h.b16 %v97
  %v468 = vunpack.c.l.b16 %v98
  %v469 = vunpack.c.h.b16 %v98
  %v470 = vunpack.c.l.b16 %v99
  %v471 = vunpack.c.h.b16 %v99
  %v472 = vunpack.c.l.b16 %v100
  %v473 = vunpack.c.h.b16 %v100
  %v474 = vunpack.c.l.b16 %v101
  %v475 = vunpack.c.h.b16 %v101
  %v476 = vunpack.c.l.b16 %v102
  %v477 = vunpack.c.h.b16 %v102
  %v478 = vunpack.c.l.b16 %v103
  %v479 = vunpack.c.h.b16 %v103
  %v480 = vunpack.c.l.b16 %v104
  %v481 = vunpack.c.h.b16 %v104
  %v482 = vunpack.c.l.b16 %v105
  %v483 = vunpack.c.h.b16 %v105
  %v484 = vunpack.c.l.b16 %v106
  %v485 = vunpack.c.h.b16 %v106
  %v486 = vunpack.c.l.b16 %v107
  %v487 = vunpack.c.h.b16 %v107
  %v488 = vunpack.c.l.b16 %v108
  %v489 = vunpack.c.h.b16 %v108
  %v490 = vunpack.c.l.b16 %v109
  %v491 = vunpack.c.h.b16 %v109
  %v492 = vunpack.c.l.b16 %v110
  %v493 = vunpack.c.h.b16 %v110
  %v494 = vunpack.c.l.b16 %v111
  %v495 = vunpack.c.h.b16 %v111
  %v496 = vunpack.c.l.b16 %v112
  %v497 = vunpack.c.h.b16 %v112
  %v498 = vunpack.c.l.b16 %v113
  %v499 = vunpack.c.h.b16 %v113
  %v500 = vunpack.c.l.b16 %v114
  %v501 = vunpack.c.h.b16 %v114
  %v502 = vunpack.c.l.b16 %v115
  %v503 = vunpack.c.h.b16 %v115
  %v504 = vunpack.c.l.b16 %v116
  %v505 = vunpack.c.h.b16 %v116
  %v506 = vunpack.c.l.b16 %v117
  %v507 = vunpack.c.h.b16 %v117
  %v508 = vunpack.c.l.b16 %v118
  %v509 = vunpack.c.h.b16 %v118
  %v510 = vunpack.c.l.b16 %v119
  %v511 = vunpack.c.h.b16 %v119
  %v512 = vunpack.c.l.b16 %v120
  %v513 = vunpack.c.h.b16 %v120
  %v514 = vunpack.c.l.b16 %v121
  %v515 = vunpack.c.h.b16 %v121
  %v516 = vunpack.c.l.b16 %v122
  %v517 = vunpack.c.h.b16 %v122
  %v518 = vunpack.c.l.b16 %v123
  %v519 = vunpack.c.h.b16 %v123
  %v520 = vunpack.c.l.b16 %v124
  %v521 = vunpack.c.h.b16 %v124
  %v522 = vunpack.c.l.b16 %v125
  %v523 = vunpack.c.h.b16 %v125
  %v524 = vunpack.c.l.b16 %v126
  %v525 = vunpack.c.h.b16 %v126
  %v526 = vunpack.c.l.b16 %v127
  %v527 = vunpack.c.h.b16 %v127
  %v528 = vunpack.c.l.b16 %v128
  %v529 = vunpack.c.h.b16 %v128
  %v530 = vunpack.c.l.b16 %v129
  %v531 = vunpack.c.h.b16 %v129
  %v532 = vunpack.c.l.b16 %v130
  %v533 = vunpack.c.h.b16 %v130
  %v534 = vunpack.c.l.b16 %v131
  %v535 = vunpack.c.h.b16 %v131
  %v536 = vunpack.c.l.b16 %v132
  %v537 = vunpack.c.h.b16 %v132
  %v538 = vunpack.c.l.b16 %v133
  %v539 = vunpack.c.h.b16 %v133
  %v540 = vunpack.c.l.b16 %v134
  %v541 = vunpack.c.h.b16 %v134
  %v542 = vunpack.c.l.b16 %v135
  %v543 = vunpack.c.h.b16 %v135
  %v544 = vunpack.c.l.b16 %v136
  %v545 = vunpack.c.h.b16 %v136
  %v546 = vunpack.c.l.b16 %v137
  %v547 = vunpack.c.h.b16 %v137
  %v548 = vunpack.c.l.b16 %v138
  %v549 = vunpack.c.h.b16 %v138
  %v550 = vpack.c.b16 %v302, %v300
  %v551 = vpack.c.b16 %v303, %v301
  %v552 = vpack.c.b16 %v306, %v304
  %v553 = vpack.c.b16 %v307, %v305
  %v554 = vpack.c.b16 %v310, %v308
  %v555 = vpack.c.b16 %v311, %v309
  %v556 = vpack.c.b16 %v314, %v312
  %v557 = vpack.c.b16 %v315, %v313
  %v558 = vpack.c.b16 %v318, %v316
  %v559 = vpack.c.b16 %v319, %v317
  %v560 = vpack.c.b16 %v322, %v320
  %v561 = vpack.c.b16 %v323, %v321
  %v562 = vpack.c.b16 %v326, %v324
  %v563 = vpack.c.b16 %v327, %v325
  %v564 = vpack.c.b16 %v330, %v328
  %v565 = vpack.c.b16 %v331, %v329
  %v566 = vpack.c.b16 %v334, %v332
  %v567 = vpack.c.b16 %v335, %v333
  %v568 = vpack.c.b16 %v338, %v336
  %v569 = vpack.c.b16 %v339, %v337
  %v570 = vpack.c.b16 %v342, %v340
  %v571 = vpack.c.b16 %v343, %v341
  %v572 = vpack.c.b16 %v346, %v344
  %v573 = vpack.c.b16 %v347, %v345
  %v574 = vpack.c.b16 %v350, %v348
  %v575 = vpack.c.b16 %v351, %v349
  %v576 = vpack.c.b16 %v354, %v352
  %v577 = vpack.c.b16 %v355, %v353
  %v578 = vpack.c.b16 %v358, %v356
  %v579 = vpack.c.b16 %v359, %v357
  %v580 = vpack.c.b16 %v362, %v360
  %v581 = vpack.c.b16 %v363, %v361
  %v582 = vpack.c.b16 %v366, %v364
  %v583 = vpack.c.b16 %v367, %v365
  %v584 = vpack.c.b16 %v370, %v368
  %v585 = vpack.c.b16 %v371, %v369
  %v586 = vpack.c.b16 %v374, %v372
  %v587 = vpack.c.b16 %v375, %v373
  %v588 = vpack.c.b16 %v378, %v376
  %v589 = vpack.c.b16 %v379, %v377
  %v590 = vpack.c.b16 %v382, %v380
  %v591 = vpack.c.b16 %v383, %v381
  %v592 = vpack.c.b16 %v386, %v384
  %v593 = vpack.c.b16 %v387, %v385
  %v594 = vpack.c.b16 %v390, %v388
  %v595 = vpack.c.b16 %v391, %v389
  %v596 = vpack.c.b16 %v394, %v392
  %v597 = vpack.c.b16 %v395, %v393
  %v598 = vpack.c.b16 %v398, %v396
  %v599 = vpack.c.b16 %v399, %v397
  %v600 = vpack.c.b16 %v402, %v400
  %v601 = vpack.c.b16 %v403, %v401
  %v602 = vpack.c.b16 %v406, %v404
  %v603 = vpack.c.b16 %v407, %v405
  %v604 = vpack.c.b16 %v410, %v408
  %v605 = vpack.c.b16 %v411, %v409
  %v606 = vpack.c.b16 %v414, %v412
  %v607 = vpack.c.b16 %v415, %v413
  %v608 = vpack.c.b16 %v418, %v416
  %v609 = vpack.c.b16 %v419, %v417
  %v610 = vpack.c.b16 %v422, %v420
  %v611 = vpack.c.b16 %v423, %v421
  %v612 = vpack.c.b16 %v426, %v424
  %v613 = vpack.c.b16 %v427, %v425
  %v614 = vpack.c.b16 %v430, %v428
  %v615 = vpack.c.b16 %v431, %v429
  %v616 = vpack.c.b16 %v434, %v432
  %v617 = vpack.c.b16 %v435, %v433
  %v618 = vpack.c.b16 %v438, %v436
  %v619 = vpack.c.b16 %v439, %v437
  %v620 = vpack.c.b16 %v442, %v440
  %v621 = vpack.c.b16 %v443, %v441
  %v622 = vpack.c.b16 %v446, %v444
  %v623 = vpack.c.b16 %v447, %v445
  %v624 = vpack.c.b16 %v450, %v448
  %v625 = vpack.c.b16 %v451, %v449
  %v626 = vpack.c.b16 %v454, %v452
  %v627 = vpack.c.b16 %v455, %v453
  %v628 = vpack.c.b16 %v458, %v456
  %v629 = vpack.c.b16 %v459, %v457
  %v630 = vpack.c.b16 %v462, %v460
  %v631 = vpack.c.b16 %v463, %v461
  %v632 = vpack.c.b16 %v466, %v464
  %v633 = vpack.c.b16 %v467, %v465
  %v634 = vpack.c.b16 %v470, %v468
  %v635 = vpack.c.b16 %v471, %v469
  %v636 = vpack.c.b16 %v474, %v472
  %v637 = vpack.c.b16 %v475, %v473
  %v638 = vpack.c.b16 %v478, %v476
  %v639 = vpack.c.b16 %v479, %v477
  %v640 = vpack.c.b16 %v482, %v480
  %v641 = vpack.c.b16 %v483, %v481
  %v642 = vpack.c.b16 %v486, %v484
  %v643 = vpack.c.b16 %v487, %v485
  %v644 = vpack.c.b16 %v490, %v488
  %v645 = vpack.c.b16 %v491, %v489
  %v646 = vpack.c.b16 %v494, %v492
  %v647 = vpack.c.b16 %v495, %v493
  %v648 = vpack.c.b16 %v498, %v496
  %v649 = vpack.c.b16 %v499, %v497
  %v650 = vpack.c.b16 %v502, %v500
  %v651 = vpack.c.b16 %v503, %v501
  %v652 = vpack.c.b16 %v506, %v504
  %v653 = vpack.c.b16 %v507, %v505
  %v654 = vpack.c.b16 %v510, %v508
  %v655 = vpack.c.b16 %v511, %v509
  %v656 = vpack.c.b16 %v514, %v512
  %v657 = vpack.c.b16 %v515, %v513
  %v658 = vpack.c.b16 %v518, %v516
  %v659 = vpack.c.b16 %v519, %v517
  %v660 = vpack.c.b16 %v522, %v520
  %v661 = vpack.c.b16 %v523, %v521
  %v662 = vpack.c.b16 %v526, %v524
  %v663 = vpack.c.b16 %v527, %v525
  %v664 = vpack.c.b16 %v530, %v528
  %v665 = vpack.c.b16 %v531, %v529
  %v666 = vpack.c.b16 %v534, %v532
  %v667 = vpack.c.b16 %v535, %v533
  %v668 = vpack.c.b16 %v538, %v536
  %v669 = vpack.c.b16 %v539, %v537
  %v670 = vpack.c.b16 %v542, %v540
  %v671 = vpack.c.b16 %v543, %v541
  %v672 = vpack.c.b16 %v546, %v544
  %v673 = vpack.c.b16 %v547, %v545
  %v674 = vpack.c.b16 %v548, %v548
  %v675 = vpack.c.b16 %v549, %v549
  %v834 = vunpack.c.l.b16 %v139
  %v835 = vunpack.c.l.b16 %v140
  %v836 = vunpack.c.l.b16 %v141
  %v837 = vunpack.c.l.b16 %v142
  %v838 = vunpack.c.l.b16 %v143
  %v839 = vunpack.c.l.b16 %v144
  %v840 = vunpack.c.l.b16 %v145
  %v841 = vunpack.c.l.b16 %v146
  %v842 = vunpack.c.l.b16 %v147
  %v843 = vunpack.c.l.b16 %v148
  %v844 = vunpack.c.l.b16 %v149
  %v845 = vunpack.c.l.b16 %v150
  %v846 = vunpack.c.l.b16 %v151
  %v847 = vunpack.c.l.b16 %v152
  %v848 = vunpack.c.l.b16 %v153
  %v849 = vunpack.c.l.b16 %v154
  %v850 = vunpack.c.l.b16 %v155
  %v851 = vunpack.c.l.b16 %v156
  %v852 = vunpack.c.l.b16 %v157
  %v853 = vunpack.c.l.b16 %v158
  %v854 = vunpack.c.l.b16 %v159
  %v855 = vunpack.c.l.b16 %v160
  %v856 = vunpack.c.l.b16 %v161
  %v857 = vunpack.c.l.b16 %v162
  %v858 = vunpack.c.l.b16 %v163
  %v859 = vunpack.c.l.b16 %v164
  %v860 = vunpack.c.l.b16 %v165
  %v861 = vunpack.c.l.b16 %v166
  %v862 = vunpack.c.l.b16 %v167
  %v863 = vunpack.c.l.b16 %v168
  %v864 = vunpack.c.l.b16 %v169
  %v865 = vunpack.c.l.b16 %v170
  %v866 = vpack.c.b16 %v835, %v834
  %v867 = vpack.c.b16 %v837, %v836
  %v868 = vpack.c.b16 %v839, %v838
  %v869 = vpack.c.b16 %v841, %v840
  %v870 = vpack.c.b16 %v843, %v842
  %v871 = vpack.c.b16 %v845, %v844
  %v872 = vpack.c.b16 %v847, %v846
  %v873 = vpack.c.b16 %v849, %v848
  %v874 = vpack.c.b16 %v851, %v850
  %v875 = vpack.c.b16 %v853, %v852
  %v876 = vpack.c.b16 %v855, %v854
  %v877 = vpack.c.b16 %v857, %v856
  %v878 = vpack.c.b16 %v859, %v858
  %v879 = vpack.c.b16 %v861, %v860
  %v880 = vpack.c.b16 %v863, %v862
  %v881 = vpack.c.b16 %v865, %v864
  %898 = vmatpush.bf16.msra.mxu0 %v873
  %899 = vmatpush.bf16.msra.mxu0 %v872
  %900 = vmatpush.bf16.msra.mxu0 %v871
  %901 = vmatpush.bf16.msra.mxu0 %v870
  %902 = vmatpush.bf16.msra.mxu0 %v869
  %903 = vmatpush.bf16.msra.mxu0 %v868
  %904 = vmatpush.bf16.msra.mxu0 %v867
  %905 = vmatpush.bf16.msra.mxu0 %v866
  %906 = vmatmul.bf16.gmra.mxu0 %v550
  %v907 = vpop.f32.mrf.mxu0
  %v908 = vadd.f32 %v173, %v907
  %v909 = vpop.f32.mrf.mxu0
  %v910 = vadd.f32 %v173, %v909
  %911 = vmatmul.bf16.gmra.mxu0 %v552
  %v912 = vpop.f32.mrf.mxu0
  %v913 = vadd.f32 %v173, %v912
  %v914 = vpop.f32.mrf.mxu0
  %v915 = vadd.f32 %v173, %v914
  %916 = vmatmul.bf16.gmra.mxu0 %v554
  %v917 = vpop.f32.mrf.mxu0
  %v918 = vadd.f32 %v173, %v917
  %v919 = vpop.f32.mrf.mxu0
  %v920 = vadd.f32 %v173, %v919
  %921 = vmatmul.bf16.gmra.mxu0 %v556
  %v922 = vpop.f32.mrf.mxu0
  %v923 = vadd.f32 %v173, %v922
  %v924 = vpop.f32.mrf.mxu0
  %v925 = vadd.f32 %v173, %v924
  %926 = vmatmul.bf16.gmra.mxu0 %v558
  %v927 = vpop.f32.mrf.mxu0
  %v928 = vadd.f32 %v173, %v927
  %v929 = vpop.f32.mrf.mxu0
  %v930 = vadd.f32 %v173, %v929
  %931 = vmatmul.bf16.gmra.mxu0 %v560
  %v932 = vpop.f32.mrf.mxu0
  %v933 = vadd.f32 %v173, %v932
  %v934 = vpop.f32.mrf.mxu0
  %v935 = vadd.f32 %v173, %v934
  %936 = vmatmul.bf16.gmra.mxu0 %v562
  %v937 = vpop.f32.mrf.mxu0
  %v938 = vadd.f32 %v173, %v937
  %v939 = vpop.f32.mrf.mxu0
  %v940 = vadd.f32 %v173, %v939
  %941 = vmatmul.bf16.gmra.mxu0 %v564
  %v942 = vpop.f32.mrf.mxu0
  %v943 = vadd.f32 %v173, %v942
  %v944 = vpop.f32.mrf.mxu0
  %v945 = vadd.f32 %v173, %v944
  %946 = vmatmul.bf16.gmra.mxu0 %v566
  %v947 = vpop.f32.mrf.mxu0
  %v948 = vadd.f32 %v173, %v947
  %v949 = vpop.f32.mrf.mxu0
  %v950 = vadd.f32 %v173, %v949
  %951 = vmatmul.bf16.gmra.mxu0 %v568
  %v952 = vpop.f32.mrf.mxu0
  %v953 = vadd.f32 %v173, %v952
  %v954 = vpop.f32.mrf.mxu0
  %v955 = vadd.f32 %v173, %v954
  %956 = vmatmul.bf16.gmra.mxu0 %v570
  %v957 = vpop.f32.mrf.mxu0
  %v958 = vadd.f32 %v173, %v957
  %v959 = vpop.f32.mrf.mxu0
  %v960 = vadd.f32 %v173, %v959
  %961 = vmatmul.bf16.gmra.mxu0 %v572
  %v962 = vpop.f32.mrf.mxu0
  %v963 = vadd.f32 %v173, %v962
  %v964 = vpop.f32.mrf.mxu0
  %v965 = vadd.f32 %v173, %v964
  %966 = vmatmul.bf16.gmra.mxu0 %v574
  %v967 = vpop.f32.mrf.mxu0
  %v968 = vadd.f32 %v173, %v967
  %v969 = vpop.f32.mrf.mxu0
  %v970 = vadd.f32 %v173, %v969
  %971 = vmatmul.bf16.gmra.mxu0 %v576
  %v972 = vpop.f32.mrf.mxu0
  %v973 = vadd.f32 %v173, %v972
  %v974 = vpop.f32.mrf.mxu0
  %v975 = vadd.f32 %v173, %v974
  %976 = vmatmul.bf16.gmra.mxu0 %v578
  %v977 = vpop.f32.mrf.mxu0
  %v978 = vadd.f32 %v173, %v977
  %v979 = vpop.f32.mrf.mxu0
  %v980 = vadd.f32 %v173, %v979
  %981 = vmatmul.bf16.gmra.mxu0 %v580
  %v982 = vpop.f32.mrf.mxu0
  %v983 = vadd.f32 %v173, %v982
  %v984 = vpop.f32.mrf.mxu0
  %v985 = vadd.f32 %v173, %v984
  %986 = vmatmul.bf16.gmra.mxu0 %v582
  %v987 = vpop.f32.mrf.mxu0
  %v988 = vadd.f32 %v173, %v987
  %v989 = vpop.f32.mrf.mxu0
  %v990 = vadd.f32 %v173, %v989
  %991 = vmatmul.bf16.gmra.mxu0 %v584
  %v992 = vpop.f32.mrf.mxu0
  %v993 = vadd.f32 %v173, %v992
  %v994 = vpop.f32.mrf.mxu0
  %v995 = vadd.f32 %v173, %v994
  %996 = vmatmul.bf16.gmra.mxu0 %v586
  %v997 = vpop.f32.mrf.mxu0
  %v998 = vadd.f32 %v173, %v997
  %v999 = vpop.f32.mrf.mxu0
  %v1000 = vadd.f32 %v173, %v999
  %1001 = vmatmul.bf16.gmra.mxu0 %v588
  %v1002 = vpop.f32.mrf.mxu0
  %v1003 = vadd.f32 %v173, %v1002
  %v1004 = vpop.f32.mrf.mxu0
  %v1005 = vadd.f32 %v173, %v1004
  %1006 = vmatmul.bf16.gmra.mxu0 %v590
  %v1007 = vpop.f32.mrf.mxu0
  %v1008 = vadd.f32 %v173, %v1007
  %v1009 = vpop.f32.mrf.mxu0
  %v1010 = vadd.f32 %v173, %v1009
  %1011 = vmatmul.bf16.gmra.mxu0 %v592
  %v1012 = vpop.f32.mrf.mxu0
  %v1013 = vadd.f32 %v173, %v1012
  %v1014 = vpop.f32.mrf.mxu0
  %v1015 = vadd.f32 %v173, %v1014
  %1016 = vmatmul.bf16.gmra.mxu0 %v594
  %v1017 = vpop.f32.mrf.mxu0
  %v1018 = vadd.f32 %v173, %v1017
  %v1019 = vpop.f32.mrf.mxu0
  %v1020 = vadd.f32 %v173, %v1019
  %1021 = vmatmul.bf16.gmra.mxu0 %v596
  %v1022 = vpop.f32.mrf.mxu0
  %v1023 = vadd.f32 %v173, %v1022
  %v1024 = vpop.f32.mrf.mxu0
  %v1025 = vadd.f32 %v173, %v1024
  %1026 = vmatmul.bf16.gmra.mxu0 %v598
  %v1027 = vpop.f32.mrf.mxu0
  %v1028 = vadd.f32 %v173, %v1027
  %v1029 = vpop.f32.mrf.mxu0
  %v1030 = vadd.f32 %v173, %v1029
  %1031 = vmatmul.bf16.gmra.mxu0 %v600
  %v1032 = vpop.f32.mrf.mxu0
  %v1033 = vadd.f32 %v173, %v1032
  %v1034 = vpop.f32.mrf.mxu0
  %v1035 = vadd.f32 %v173, %v1034
  %1036 = vmatmul.bf16.gmra.mxu0 %v602
  %v1037 = vpop.f32.mrf.mxu0
  %v1038 = vadd.f32 %v173, %v1037
  %v1039 = vpop.f32.mrf.mxu0
  %v1040 = vadd.f32 %v173, %v1039
  %1041 = vmatmul.bf16.gmra.mxu0 %v604
  %v1042 = vpop.f32.mrf.mxu0
  %v1043 = vadd.f32 %v173, %v1042
  %v1044 = vpop.f32.mrf.mxu0
  %v1045 = vadd.f32 %v173, %v1044
  %1046 = vmatmul.bf16.gmra.mxu0 %v606
  %v1047 = vpop.f32.mrf.mxu0
  %v1048 = vadd.f32 %v173, %v1047
  %v1049 = vpop.f32.mrf.mxu0
  %v1050 = vadd.f32 %v173, %v1049
  %1051 = vmatmul.bf16.gmra.mxu0 %v608
  %v1052 = vpop.f32.mrf.mxu0
  %v1053 = vadd.f32 %v173, %v1052
  %v1054 = vpop.f32.mrf.mxu0
  %v1055 = vadd.f32 %v173, %v1054
  %1056 = vmatmul.bf16.gmra.mxu0 %v610
  %v1057 = vpop.f32.mrf.mxu0
  %v1058 = vadd.f32 %v173, %v1057
  %v1059 = vpop.f32.mrf.mxu0
  %v1060 = vadd.f32 %v173, %v1059
  %1061 = vmatmul.bf16.gmra.mxu0 %v612
  %v1062 = vpop.f32.mrf.mxu0
  %v1063 = vadd.f32 %v173, %v1062
  %v1064 = vpop.f32.mrf.mxu0
  %v1065 = vadd.f32 %v173, %v1064
  %1066 = vmatmul.bf16.gmra.mxu0 %v614
  %v1067 = vpop.f32.mrf.mxu0
  %v1068 = vadd.f32 %v173, %v1067
  %v1069 = vpop.f32.mrf.mxu0
  %v1070 = vadd.f32 %v173, %v1069
  %1071 = vmatmul.bf16.gmra.mxu0 %v616
  %v1072 = vpop.f32.mrf.mxu0
  %v1073 = vadd.f32 %v173, %v1072
  %v1074 = vpop.f32.mrf.mxu0
  %v1075 = vadd.f32 %v173, %v1074
  %1076 = vmatmul.bf16.gmra.mxu0 %v618
  %v1077 = vpop.f32.mrf.mxu0
  %v1078 = vadd.f32 %v173, %v1077
  %v1079 = vpop.f32.mrf.mxu0
  %v1080 = vadd.f32 %v173, %v1079
  %1081 = vmatmul.bf16.gmra.mxu0 %v620
  %v1082 = vpop.f32.mrf.mxu0
  %v1083 = vadd.f32 %v173, %v1082
  %v1084 = vpop.f32.mrf.mxu0
  %v1085 = vadd.f32 %v173, %v1084
  %1086 = vmatmul.bf16.gmra.mxu0 %v622
  %v1087 = vpop.f32.mrf.mxu0
  %v1088 = vadd.f32 %v173, %v1087
  %v1089 = vpop.f32.mrf.mxu0
  %v1090 = vadd.f32 %v173, %v1089
  %1091 = vmatmul.bf16.gmra.mxu0 %v624
  %v1092 = vpop.f32.mrf.mxu0
  %v1093 = vadd.f32 %v173, %v1092
  %v1094 = vpop.f32.mrf.mxu0
  %v1095 = vadd.f32 %v173, %v1094
  %1096 = vmatmul.bf16.gmra.mxu0 %v626
  %v1097 = vpop.f32.mrf.mxu0
  %v1098 = vadd.f32 %v173, %v1097
  %v1099 = vpop.f32.mrf.mxu0
  %v1100 = vadd.f32 %v173, %v1099
  %1101 = vmatmul.bf16.gmra.mxu0 %v628
  %v1102 = vpop.f32.mrf.mxu0
  %v1103 = vadd.f32 %v173, %v1102
  %v1104 = vpop.f32.mrf.mxu0
  %v1105 = vadd.f32 %v173, %v1104
  %1106 = vmatmul.bf16.gmra.mxu0 %v630
  %v1107 = vpop.f32.mrf.mxu0
  %v1108 = vadd.f32 %v173, %v1107
  %v1109 = vpop.f32.mrf.mxu0
  %v1110 = vadd.f32 %v173, %v1109
  %1111 = vmatmul.bf16.gmra.mxu0 %v632
  %v1112 = vpop.f32.mrf.mxu0
  %v1113 = vadd.f32 %v173, %v1112
  %v1114 = vpop.f32.mrf.mxu0
  %v1115 = vadd.f32 %v173, %v1114
  %1116 = vmatmul.bf16.gmra.mxu0 %v634
  %v1117 = vpop.f32.mrf.mxu0
  %v1118 = vadd.f32 %v173, %v1117
  %v1119 = vpop.f32.mrf.mxu0
  %v1120 = vadd.f32 %v173, %v1119
  %1121 = vmatmul.bf16.gmra.mxu0 %v636
  %v1122 = vpop.f32.mrf.mxu0
  %v1123 = vadd.f32 %v173, %v1122
  %v1124 = vpop.f32.mrf.mxu0
  %v1125 = vadd.f32 %v173, %v1124
  %1126 = vmatmul.bf16.gmra.mxu0 %v638
  %v1127 = vpop.f32.mrf.mxu0
  %v1128 = vadd.f32 %v173, %v1127
  %v1129 = vpop.f32.mrf.mxu0
  %v1130 = vadd.f32 %v173, %v1129
  %1131 = vmatmul.bf16.gmra.mxu0 %v640
  %v1132 = vpop.f32.mrf.mxu0
  %v1133 = vadd.f32 %v173, %v1132
  %v1134 = vpop.f32.mrf.mxu0
  %v1135 = vadd.f32 %v173, %v1134
  %1136 = vmatmul.bf16.gmra.mxu0 %v642
  %v1137 = vpop.f32.mrf.mxu0
  %v1138 = vadd.f32 %v173, %v1137
  %v1139 = vpop.f32.mrf.mxu0
  %v1140 = vadd.f32 %v173, %v1139
  %1141 = vmatmul.bf16.gmra.mxu0 %v644
  %v1142 = vpop.f32.mrf.mxu0
  %v1143 = vadd.f32 %v173, %v1142
  %v1144 = vpop.f32.mrf.mxu0
  %v1145 = vadd.f32 %v173, %v1144
  %1146 = vmatmul.bf16.gmra.mxu0 %v646
  %v1147 = vpop.f32.mrf.mxu0
  %v1148 = vadd.f32 %v173, %v1147
  %v1149 = vpop.f32.mrf.mxu0
  %v1150 = vadd.f32 %v173, %v1149
  %1151 = vmatmul.bf16.gmra.mxu0 %v648
  %v1152 = vpop.f32.mrf.mxu0
  %v1153 = vadd.f32 %v173, %v1152
  %v1154 = vpop.f32.mrf.mxu0
  %v1155 = vadd.f32 %v173, %v1154
  %1156 = vmatmul.bf16.gmra.mxu0 %v650
  %v1157 = vpop.f32.mrf.mxu0
  %v1158 = vadd.f32 %v173, %v1157
  %v1159 = vpop.f32.mrf.mxu0
  %v1160 = vadd.f32 %v173, %v1159
  %1161 = vmatmul.bf16.gmra.mxu0 %v652
  %v1162 = vpop.f32.mrf.mxu0
  %v1163 = vadd.f32 %v173, %v1162
  %v1164 = vpop.f32.mrf.mxu0
  %v1165 = vadd.f32 %v173, %v1164
  %1166 = vmatmul.bf16.gmra.mxu0 %v654
  %v1167 = vpop.f32.mrf.mxu0
  %v1168 = vadd.f32 %v173, %v1167
  %v1169 = vpop.f32.mrf.mxu0
  %v1170 = vadd.f32 %v173, %v1169
  %1171 = vmatmul.bf16.gmra.mxu0 %v656
  %v1172 = vpop.f32.mrf.mxu0
  %v1173 = vadd.f32 %v173, %v1172
  %v1174 = vpop.f32.mrf.mxu0
  %v1175 = vadd.f32 %v173, %v1174
  %1176 = vmatmul.bf16.gmra.mxu0 %v658
  %v1177 = vpop.f32.mrf.mxu0
  %v1178 = vadd.f32 %v173, %v1177
  %v1179 = vpop.f32.mrf.mxu0
  %v1180 = vadd.f32 %v173, %v1179
  %1181 = vmatmul.bf16.gmra.mxu0 %v660
  %v1182 = vpop.f32.mrf.mxu0
  %v1183 = vadd.f32 %v173, %v1182
  %v1184 = vpop.f32.mrf.mxu0
  %v1185 = vadd.f32 %v173, %v1184
  %1186 = vmatmul.bf16.gmra.mxu0 %v662
  %v1187 = vpop.f32.mrf.mxu0
  %v1188 = vadd.f32 %v173, %v1187
  %v1189 = vpop.f32.mrf.mxu0
  %v1190 = vadd.f32 %v173, %v1189
  %1191 = vmatmul.bf16.gmra.mxu0 %v664
  %v1192 = vpop.f32.mrf.mxu0
  %v1193 = vadd.f32 %v173, %v1192
  %v1194 = vpop.f32.mrf.mxu0
  %v1195 = vadd.f32 %v173, %v1194
  %1196 = vmatmul.bf16.gmra.mxu0 %v666
  %v1197 = vpop.f32.mrf.mxu0
  %v1198 = vadd.f32 %v173, %v1197
  %v1199 = vpop.f32.mrf.mxu0
  %v1200 = vadd.f32 %v173, %v1199
  %1201 = vmatmul.bf16.gmra.mxu0 %v668
  %v1202 = vpop.f32.mrf.mxu0
  %v1203 = vadd.f32 %v173, %v1202
  %v1204 = vpop.f32.mrf.mxu0
  %v1205 = vadd.f32 %v173, %v1204
  %1206 = vmatmul.bf16.gmra.mxu0 %v670
  %v1207 = vpop.f32.mrf.mxu0
  %v1208 = vadd.f32 %v173, %v1207
  %v1209 = vpop.f32.mrf.mxu0
  %v1210 = vadd.f32 %v173, %v1209
  %1211 = vmatmul.bf16.gmra.mxu0 %v672
  %v1212 = vpop.f32.mrf.mxu0
  %v1213 = vadd.f32 %v173, %v1212
  %v1214 = vpop.f32.mrf.mxu0
  %v1215 = vadd.f32 %v173, %v1214
  %1216 = vmatmul.bf16.gmra.mxu0 %v674
  %v1217 = vpop.f32.mrf.mxu0
  %v1218 = vadd.f32 %v173, %v1217
  %v1219 = vpop.f32.mrf.mxu0
  %1220 = vdwg.mxu0
  %1221 = vmatpush.bf16.msra.mxu0 %v881
  %1222 = vmatpush.bf16.msra.mxu0 %v880
  %1223 = vmatpush.bf16.msra.mxu0 %v879
  %1224 = vmatpush.bf16.msra.mxu0 %v878
  %1225 = vmatpush.bf16.msra.mxu0 %v877
  %1226 = vmatpush.bf16.msra.mxu0 %v876
  %1227 = vmatpush.bf16.msra.mxu0 %v875
  %1228 = vmatpush.bf16.msra.mxu0 %v874
  %1229 = vmatmul.bf16.gmra.mxu0 %v551
  %v1230 = vpop.f32.mrf.mxu0
  %v1231 = vadd.f32 %v908, %v1230
  %v1232 = vpop.f32.mrf.mxu0
  %v1233 = vadd.f32 %v910, %v1232
  %1234 = vmatmul.bf16.gmra.mxu0 %v553
  %v1235 = vpop.f32.mrf.mxu0
  %v1236 = vadd.f32 %v913, %v1235
  %v1237 = vpop.f32.mrf.mxu0
  %v1238 = vadd.f32 %v915, %v1237
  %1239 = vmatmul.bf16.gmra.mxu0 %v555
  %v1240 = vpop.f32.mrf.mxu0
  %v1241 = vadd.f32 %v918, %v1240
  %v1242 = vpop.f32.mrf.mxu0
  %v1243 = vadd.f32 %v920, %v1242
  %1244 = vmatmul.bf16.gmra.mxu0 %v557
  %v1245 = vpop.f32.mrf.mxu0
  %v1246 = vadd.f32 %v923, %v1245
  %v1247 = vpop.f32.mrf.mxu0
  %v1248 = vadd.f32 %v925, %v1247
  %1249 = vmatmul.bf16.gmra.mxu0 %v559
  %v1250 = vpop.f32.mrf.mxu0
  %v1251 = vadd.f32 %v928, %v1250
  %v1252 = vpop.f32.mrf.mxu0
  %v1253 = vadd.f32 %v930, %v1252
  %1254 = vmatmul.bf16.gmra.mxu0 %v561
  %v1255 = vpop.f32.mrf.mxu0
  %v1256 = vadd.f32 %v933, %v1255
  %v1257 = vpop.f32.mrf.mxu0
  %v1258 = vadd.f32 %v935, %v1257
  %1259 = vmatmul.bf16.gmra.mxu0 %v563
  %v1260 = vpop.f32.mrf.mxu0
  %v1261 = vadd.f32 %v938, %v1260
  %v1262 = vpop.f32.mrf.mxu0
  %v1263 = vadd.f32 %v940, %v1262
  %1264 = vmatmul.bf16.gmra.mxu0 %v565
  %v1265 = vpop.f32.mrf.mxu0
  %v1266 = vadd.f32 %v943, %v1265
  %v1267 = vpop.f32.mrf.mxu0
  %v1268 = vadd.f32 %v945, %v1267
  %1269 = vmatmul.bf16.gmra.mxu0 %v567
  %v1270 = vpop.f32.mrf.mxu0
  %v1271 = vadd.f32 %v948, %v1270
  %v1272 = vpop.f32.mrf.mxu0
  %v1273 = vadd.f32 %v950, %v1272
  %1274 = vmatmul.bf16.gmra.mxu0 %v569
  %v1275 = vpop.f32.mrf.mxu0
  %v1276 = vadd.f32 %v953, %v1275
  %v1277 = vpop.f32.mrf.mxu0
  %v1278 = vadd.f32 %v955, %v1277
  %1279 = vmatmul.bf16.gmra.mxu0 %v571
  %v1280 = vpop.f32.mrf.mxu0
  %v1281 = vadd.f32 %v958, %v1280
  %v1282 = vpop.f32.mrf.mxu0
  %v1283 = vadd.f32 %v960, %v1282
  %1284 = vmatmul.bf16.gmra.mxu0 %v573
  %v1285 = vpop.f32.mrf.mxu0
  %v1286 = vadd.f32 %v963, %v1285
  %v1287 = vpop.f32.mrf.mxu0
  %v1288 = vadd.f32 %v965, %v1287
  %1289 = vmatmul.bf16.gmra.mxu0 %v575
  %v1290 = vpop.f32.mrf.mxu0
  %v1291 = vadd.f32 %v968, %v1290
  %v1292 = vpop.f32.mrf.mxu0
  %v1293 = vadd.f32 %v970, %v1292
  %1294 = vmatmul.bf16.gmra.mxu0 %v577
  %v1295 = vpop.f32.mrf.mxu0
  %v1296 = vadd.f32 %v973, %v1295
  %v1297 = vpop.f32.mrf.mxu0
  %v1298 = vadd.f32 %v975, %v1297
  %1299 = vmatmul.bf16.gmra.mxu0 %v579
  %v1300 = vpop.f32.mrf.mxu0
  %v1301 = vadd.f32 %v978, %v1300
  %v1302 = vpop.f32.mrf.mxu0
  %v1303 = vadd.f32 %v980, %v1302
  %1304 = vmatmul.bf16.gmra.mxu0 %v581
  %v1305 = vpop.f32.mrf.mxu0
  %v1306 = vadd.f32 %v983, %v1305
  %v1307 = vpop.f32.mrf.mxu0
  %v1308 = vadd.f32 %v985, %v1307
  %1309 = vmatmul.bf16.gmra.mxu0 %v583
  %v1310 = vpop.f32.mrf.mxu0
  %v1311 = vadd.f32 %v988, %v1310
  %v1312 = vpop.f32.mrf.mxu0
  %v1313 = vadd.f32 %v990, %v1312
  %1314 = vmatmul.bf16.gmra.mxu0 %v585
  %v1315 = vpop.f32.mrf.mxu0
  %v1316 = vadd.f32 %v993, %v1315
  %v1317 = vpop.f32.mrf.mxu0
  %v1318 = vadd.f32 %v995, %v1317
  %1319 = vmatmul.bf16.gmra.mxu0 %v587
  %v1320 = vpop.f32.mrf.mxu0
  %v1321 = vadd.f32 %v998, %v1320
  %v1322 = vpop.f32.mrf.mxu0
  %v1323 = vadd.f32 %v1000, %v1322
  %1324 = vmatmul.bf16.gmra.mxu0 %v589
  %v1325 = vpop.f32.mrf.mxu0
  %v1326 = vadd.f32 %v1003, %v1325
  %v1327 = vpop.f32.mrf.mxu0
  %v1328 = vadd.f32 %v1005, %v1327
  %1329 = vmatmul.bf16.gmra.mxu0 %v591
  %v1330 = vpop.f32.mrf.mxu0
  %v1331 = vadd.f32 %v1008, %v1330
  %v1332 = vpop.f32.mrf.mxu0
  %v1333 = vadd.f32 %v1010, %v1332
  %1334 = vmatmul.bf16.gmra.mxu0 %v593
  %v1335 = vpop.f32.mrf.mxu0
  %v1336 = vadd.f32 %v1013, %v1335
  %v1337 = vpop.f32.mrf.mxu0
  %v1338 = vadd.f32 %v1015, %v1337
  %1339 = vmatmul.bf16.gmra.mxu0 %v595
  %v1340 = vpop.f32.mrf.mxu0
  %v1341 = vadd.f32 %v1018, %v1340
  %v1342 = vpop.f32.mrf.mxu0
  %v1343 = vadd.f32 %v1020, %v1342
  %1344 = vmatmul.bf16.gmra.mxu0 %v597
  %v1345 = vpop.f32.mrf.mxu0
  %v1346 = vadd.f32 %v1023, %v1345
  %v1347 = vpop.f32.mrf.mxu0
  %v1348 = vadd.f32 %v1025, %v1347
  %1349 = vmatmul.bf16.gmra.mxu0 %v599
  %v1350 = vpop.f32.mrf.mxu0
  %v1351 = vadd.f32 %v1028, %v1350
  %v1352 = vpop.f32.mrf.mxu0
  %v1353 = vadd.f32 %v1030, %v1352
  %1354 = vmatmul.bf16.gmra.mxu0 %v601
  %v1355 = vpop.f32.mrf.mxu0
  %v1356 = vadd.f32 %v1033, %v1355
  %v1357 = vpop.f32.mrf.mxu0
  %v1358 = vadd.f32 %v1035, %v1357
  %1359 = vmatmul.bf16.gmra.mxu0 %v603
  %v1360 = vpop.f32.mrf.mxu0
  %v1361 = vadd.f32 %v1038, %v1360
  %v1362 = vpop.f32.mrf.mxu0
  %v1363 = vadd.f32 %v1040, %v1362
  %1364 = vmatmul.bf16.gmra.mxu0 %v605
  %v1365 = vpop.f32.mrf.mxu0
  %v1366 = vadd.f32 %v1043, %v1365
  %v1367 = vpop.f32.mrf.mxu0
  %v1368 = vadd.f32 %v1045, %v1367
  %1369 = vmatmul.bf16.gmra.mxu0 %v607
  %v1370 = vpop.f32.mrf.mxu0
  %v1371 = vadd.f32 %v1048, %v1370
  %v1372 = vpop.f32.mrf.mxu0
  %v1373 = vadd.f32 %v1050, %v1372
  %1374 = vmatmul.bf16.gmra.mxu0 %v609
  %v1375 = vpop.f32.mrf.mxu0
  %v1376 = vadd.f32 %v1053, %v1375
  %v1377 = vpop.f32.mrf.mxu0
  %v1378 = vadd.f32 %v1055, %v1377
  %1379 = vmatmul.bf16.gmra.mxu0 %v611
  %v1380 = vpop.f32.mrf.mxu0
  %v1381 = vadd.f32 %v1058, %v1380
  %v1382 = vpop.f32.mrf.mxu0
  %v1383 = vadd.f32 %v1060, %v1382
  %1384 = vmatmul.bf16.gmra.mxu0 %v613
  %v1385 = vpop.f32.mrf.mxu0
  %v1386 = vadd.f32 %v1063, %v1385
  %v1387 = vpop.f32.mrf.mxu0
  %v1388 = vadd.f32 %v1065, %v1387
  %1389 = vmatmul.bf16.gmra.mxu0 %v615
  %v1390 = vpop.f32.mrf.mxu0
  %v1391 = vadd.f32 %v1068, %v1390
  %v1392 = vpop.f32.mrf.mxu0
  %v1393 = vadd.f32 %v1070, %v1392
  %1394 = vmatmul.bf16.gmra.mxu0 %v617
  %v1395 = vpop.f32.mrf.mxu0
  %v1396 = vadd.f32 %v1073, %v1395
  %v1397 = vpop.f32.mrf.mxu0
  %v1398 = vadd.f32 %v1075, %v1397
  %1399 = vmatmul.bf16.gmra.mxu0 %v619
  %v1400 = vpop.f32.mrf.mxu0
  %v1401 = vadd.f32 %v1078, %v1400
  %v1402 = vpop.f32.mrf.mxu0
  %v1403 = vadd.f32 %v1080, %v1402
  %1404 = vmatmul.bf16.gmra.mxu0 %v621
  %v1405 = vpop.f32.mrf.mxu0
  %v1406 = vadd.f32 %v1083, %v1405
  %v1407 = vpop.f32.mrf.mxu0
  %v1408 = vadd.f32 %v1085, %v1407
  %1409 = vmatmul.bf16.gmra.mxu0 %v623
  %v1410 = vpop.f32.mrf.mxu0
  %v1411 = vadd.f32 %v1088, %v1410
  %v1412 = vpop.f32.mrf.mxu0
  %v1413 = vadd.f32 %v1090, %v1412
  %1414 = vmatmul.bf16.gmra.mxu0 %v625
  %v1415 = vpop.f32.mrf.mxu0
  %v1416 = vadd.f32 %v1093, %v1415
  %v1417 = vpop.f32.mrf.mxu0
  %v1418 = vadd.f32 %v1095, %v1417
  %1419 = vmatmul.bf16.gmra.mxu0 %v627
  %v1420 = vpop.f32.mrf.mxu0
  %v1421 = vadd.f32 %v1098, %v1420
  %v1422 = vpop.f32.mrf.mxu0
  %v1423 = vadd.f32 %v1100, %v1422
  %1424 = vmatmul.bf16.gmra.mxu0 %v629
  %v1425 = vpop.f32.mrf.mxu0
  %v1426 = vadd.f32 %v1103, %v1425
  %v1427 = vpop.f32.mrf.mxu0
  %v1428 = vadd.f32 %v1105, %v1427
  %1429 = vmatmul.bf16.gmra.mxu0 %v631
  %v1430 = vpop.f32.mrf.mxu0
  %v1431 = vadd.f32 %v1108, %v1430
  %v1432 = vpop.f32.mrf.mxu0
  %v1433 = vadd.f32 %v1110, %v1432
  %1434 = vmatmul.bf16.gmra.mxu0 %v633
  %v1435 = vpop.f32.mrf.mxu0
  %v1436 = vadd.f32 %v1113, %v1435
  %v1437 = vpop.f32.mrf.mxu0
  %v1438 = vadd.f32 %v1115, %v1437
  %1439 = vmatmul.bf16.gmra.mxu0 %v635
  %v1440 = vpop.f32.mrf.mxu0
  %v1441 = vadd.f32 %v1118, %v1440
  %v1442 = vpop.f32.mrf.mxu0
  %v1443 = vadd.f32 %v1120, %v1442
  %1444 = vmatmul.bf16.gmra.mxu0 %v637
  %v1445 = vpop.f32.mrf.mxu0
  %v1446 = vadd.f32 %v1123, %v1445
  %v1447 = vpop.f32.mrf.mxu0
  %v1448 = vadd.f32 %v1125, %v1447
  %1449 = vmatmul.bf16.gmra.mxu0 %v639
  %v1450 = vpop.f32.mrf.mxu0
  %v1451 = vadd.f32 %v1128, %v1450
  %v1452 = vpop.f32.mrf.mxu0
  %v1453 = vadd.f32 %v1130, %v1452
  %1454 = vmatmul.bf16.gmra.mxu0 %v641
  %v1455 = vpop.f32.mrf.mxu0
  %v1456 = vadd.f32 %v1133, %v1455
  %v1457 = vpop.f32.mrf.mxu0
  %v1458 = vadd.f32 %v1135, %v1457
  %1459 = vmatmul.bf16.gmra.mxu0 %v643
  %v1460 = vpop.f32.mrf.mxu0
  %v1461 = vadd.f32 %v1138, %v1460
  %v1462 = vpop.f32.mrf.mxu0
  %v1463 = vadd.f32 %v1140, %v1462
  %1464 = vmatmul.bf16.gmra.mxu0 %v645
  %v1465 = vpop.f32.mrf.mxu0
  %v1466 = vadd.f32 %v1143, %v1465
  %v1467 = vpop.f32.mrf.mxu0
  %v1468 = vadd.f32 %v1145, %v1467
  %1469 = vmatmul.bf16.gmra.mxu0 %v647
  %v1470 = vpop.f32.mrf.mxu0
  %v1471 = vadd.f32 %v1148, %v1470
  %v1472 = vpop.f32.mrf.mxu0
  %v1473 = vadd.f32 %v1150, %v1472
  %1474 = vmatmul.bf16.gmra.mxu0 %v649
  %v1475 = vpop.f32.mrf.mxu0
  %v1476 = vadd.f32 %v1153, %v1475
  %v1477 = vpop.f32.mrf.mxu0
  %v1478 = vadd.f32 %v1155, %v1477
  %1479 = vmatmul.bf16.gmra.mxu0 %v651
  %v1480 = vpop.f32.mrf.mxu0
  %v1481 = vadd.f32 %v1158, %v1480
  %v1482 = vpop.f32.mrf.mxu0
  %v1483 = vadd.f32 %v1160, %v1482
  %1484 = vmatmul.bf16.gmra.mxu0 %v653
  %v1485 = vpop.f32.mrf.mxu0
  %v1486 = vadd.f32 %v1163, %v1485
  %v1487 = vpop.f32.mrf.mxu0
  %v1488 = vadd.f32 %v1165, %v1487
  %1489 = vmatmul.bf16.gmra.mxu0 %v655
  %v1490 = vpop.f32.mrf.mxu0
  %v1491 = vadd.f32 %v1168, %v1490
  %v1492 = vpop.f32.mrf.mxu0
  %v1493 = vadd.f32 %v1170, %v1492
  %1494 = vmatmul.bf16.gmra.mxu0 %v657
  %v1495 = vpop.f32.mrf.mxu0
  %v1496 = vadd.f32 %v1173, %v1495
  %v1497 = vpop.f32.mrf.mxu0
  %v1498 = vadd.f32 %v1175, %v1497
  %1499 = vmatmul.bf16.gmra.mxu0 %v659
  %v1500 = vpop.f32.mrf.mxu0
  %v1501 = vadd.f32 %v1178, %v1500
  %v1502 = vpop.f32.mrf.mxu0
  %v1503 = vadd.f32 %v1180, %v1502
  %1504 = vmatmul.bf16.gmra.mxu0 %v661
  %v1505 = vpop.f32.mrf.mxu0
  %v1506 = vadd.f32 %v1183, %v1505
  %v1507 = vpop.f32.mrf.mxu0
  %v1508 = vadd.f32 %v1185, %v1507
  %1509 = vmatmul.bf16.gmra.mxu0 %v663
  %v1510 = vpop.f32.mrf.mxu0
  %v1511 = vadd.f32 %v1188, %v1510
  %v1512 = vpop.f32.mrf.mxu0
  %v1513 = vadd.f32 %v1190, %v1512
  %1514 = vmatmul.bf16.gmra.mxu0 %v665
  %v1515 = vpop.f32.mrf.mxu0
  %v1516 = vadd.f32 %v1193, %v1515
  %v1517 = vpop.f32.mrf.mxu0
  %v1518 = vadd.f32 %v1195, %v1517
  %1519 = vmatmul.bf16.gmra.mxu0 %v667
  %v1520 = vpop.f32.mrf.mxu0
  %v1521 = vadd.f32 %v1198, %v1520
  %v1522 = vpop.f32.mrf.mxu0
  %v1523 = vadd.f32 %v1200, %v1522
  %1524 = vmatmul.bf16.gmra.mxu0 %v669
  %v1525 = vpop.f32.mrf.mxu0
  %v1526 = vadd.f32 %v1203, %v1525
  %v1527 = vpop.f32.mrf.mxu0
  %v1528 = vadd.f32 %v1205, %v1527
  %1529 = vmatmul.bf16.gmra.mxu0 %v671
  %v1530 = vpop.f32.mrf.mxu0
  %v1531 = vadd.f32 %v1208, %v1530
  %v1532 = vpop.f32.mrf.mxu0
  %v1533 = vadd.f32 %v1210, %v1532
  %1534 = vmatmul.bf16.gmra.mxu0 %v673
  %v1535 = vpop.f32.mrf.mxu0
  %v1536 = vadd.f32 %v1213, %v1535
  %v1537 = vpop.f32.mrf.mxu0
  %v1538 = vadd.f32 %v1215, %v1537
  %1539 = vmatmul.bf16.gmra.mxu0 %v675
  %v1540 = vpop.f32.mrf.mxu0
  %v1541 = vadd.f32 %v1218, %v1540
  %v1542 = vpop.f32.mrf.mxu0
  %1543 = vdwg.mxu0
  %v1544 = vmax.f32 %v1231, 0.0
  %v1545 = vmax.f32 %v1233, 0.0
  %v1546 = vmax.f32 %v1236, 0.0
  %v1547 = vmax.f32 %v1238, 0.0
  %v1548 = vmax.f32 %v1241, 0.0
  %v1549 = vmax.f32 %v1243, 0.0
  %v1550 = vmax.f32 %v1246, 0.0
  %v1551 = vmax.f32 %v1248, 0.0
  %v1552 = vmax.f32 %v1251, 0.0
  %v1553 = vmax.f32 %v1253, 0.0
  %v1554 = vmax.f32 %v1256, 0.0
  %v1555 = vmax.f32 %v1258, 0.0
  %v1556 = vmax.f32 %v1261, 0.0
  %v1557 = vmax.f32 %v1263, 0.0
  %v1558 = vmax.f32 %v1266, 0.0
  %v1559 = vmax.f32 %v1268, 0.0
  %v1560 = vmax.f32 %v1271, 0.0
  %v1561 = vmax.f32 %v1273, 0.0
  %v1562 = vmax.f32 %v1276, 0.0
  %v1563 = vmax.f32 %v1278, 0.0
  %v1564 = vmax.f32 %v1281, 0.0
  %v1565 = vmax.f32 %v1283, 0.0
  %v1566 = vmax.f32 %v1286, 0.0
  %v1567 = vmax.f32 %v1288, 0.0
  %v1568 = vmax.f32 %v1291, 0.0
  %v1569 = vmax.f32 %v1293, 0.0
  %v1570 = vmax.f32 %v1296, 0.0
  %v1571 = vmax.f32 %v1298, 0.0
  %v1572 = vmax.f32 %v1301, 0.0
  %v1573 = vmax.f32 %v1303, 0.0
  %v1574 = vmax.f32 %v1306, 0.0
  %v1575 = vmax.f32 %v1308, 0.0
  %v1576 = vmax.f32 %v1311, 0.0
  %v1577 = vmax.f32 %v1313, 0.0
  %v1578 = vmax.f32 %v1316, 0.0
  %v1579 = vmax.f32 %v1318, 0.0
  %v1580 = vmax.f32 %v1321, 0.0
  %v1581 = vmax.f32 %v1323, 0.0
  %v1582 = vmax.f32 %v1326, 0.0
  %v1583 = vmax.f32 %v1328, 0.0
  %v1584 = vmax.f32 %v1331, 0.0
  %v1585 = vmax.f32 %v1333, 0.0
  %v1586 = vmax.f32 %v1336, 0.0
  %v1587 = vmax.f32 %v1338, 0.0
  %v1588 = vmax.f32 %v1341, 0.0
  %v1589 = vmax.f32 %v1343, 0.0
  %v1590 = vmax.f32 %v1346, 0.0
  %v1591 = vmax.f32 %v1348, 0.0
  %v1592 = vmax.f32 %v1351, 0.0
  %v1593 = vmax.f32 %v1353, 0.0
  %v1594 = vmax.f32 %v1356, 0.0
  %v1595 = vmax.f32 %v1358, 0.0
  %v1596 = vmax.f32 %v1361, 0.0
  %v1597 = vmax.f32 %v1363, 0.0
  %v1598 = vmax.f32 %v1366, 0.0
  %v1599 = vmax.f32 %v1368, 0.0
  %v1600 = vmax.f32 %v1371, 0.0
  %v1601 = vmax.f32 %v1373, 0.0
  %v1602 = vmax.f32 %v1376, 0.0
  %v1603 = vmax.f32 %v1378, 0.0
  %v1604 = vmax.f32 %v1381, 0.0
  %v1605 = vmax.f32 %v1383, 0.0
  %v1606 = vmax.f32 %v1386, 0.0
  %v1607 = vmax.f32 %v1388, 0.0
  %v1608 = vmax.f32 %v1391, 0.0
  %v1609 = vmax.f32 %v1393, 0.0
  %v1610 = vmax.f32 %v1396, 0.0
  %v1611 = vmax.f32 %v1398, 0.0
  %v1612 = vmax.f32 %v1401, 0.0
  %v1613 = vmax.f32 %v1403, 0.0
  %v1614 = vmax.f32 %v1406, 0.0
  %v1615 = vmax.f32 %v1408, 0.0
  %v1616 = vmax.f32 %v1411, 0.0
  %v1617 = vmax.f32 %v1413, 0.0
  %v1618 = vmax.f32 %v1416, 0.0
  %v1619 = vmax.f32 %v1418, 0.0
  %v1620 = vmax.f32 %v1421, 0.0
  %v1621 = vmax.f32 %v1423, 0.0
  %v1622 = vmax.f32 %v1426, 0.0
  %v1623 = vmax.f32 %v1428, 0.0
  %v1624 = vmax.f32 %v1431, 0.0
  %v1625 = vmax.f32 %v1433, 0.0
  %v1626 = vmax.f32 %v1436, 0.0
  %v1627 = vmax.f32 %v1438, 0.0
  %v1628 = vmax.f32 %v1441, 0.0
  %v1629 = vmax.f32 %v1443, 0.0
  %v1630 = vmax.f32 %v1446, 0.0
  %v1631 = vmax.f32 %v1448, 0.0
  %v1632 = vmax.f32 %v1451, 0.0
  %v1633 = vmax.f32 %v1453, 0.0
  %v1634 = vmax.f32 %v1456, 0.0
  %v1635 = vmax.f32 %v1458, 0.0
  %v1636 = vmax.f32 %v1461, 0.0
  %v1637 = vmax.f32 %v1463, 0.0
  %v1638 = vmax.f32 %v1466, 0.0
  %v1639 = vmax.f32 %v1468, 0.0
  %v1640 = vmax.f32 %v1471, 0.0
  %v1641 = vmax.f32 %v1473, 0.0
  %v1642 = vmax.f32 %v1476, 0.0
  %v1643 = vmax.f32 %v1478, 0.0
  %v1644 = vmax.f32 %v1481, 0.0
  %v1645 = vmax.f32 %v1483, 0.0
  %v1646 = vmax.f32 %v1486, 0.0
  %v1647 = vmax.f32 %v1488, 0.0
  %v1648 = vmax.f32 %v1491, 0.0
  %v1649 = vmax.f32 %v1493, 0.0
  %v1650 = vmax.f32 %v1496, 0.0
  %v1651 = vmax.f32 %v1498, 0.0
  %v1652 = vmax.f32 %v1501, 0.0
  %v1653 = vmax.f32 %v1503, 0.0
  %v1654 = vmax.f32 %v1506, 0.0
  %v1655 = vmax.f32 %v1508, 0.0
  %v1656 = vmax.f32 %v1511, 0.0
  %v1657 = vmax.f32 %v1513, 0.0
  %v1658 = vmax.f32 %v1516, 0.0
  %v1659 = vmax.f32 %v1518, 0.0
  %v1660 = vmax.f32 %v1521, 0.0
  %v1661 = vmax.f32 %v1523, 0.0
  %v1662 = vmax.f32 %v1526, 0.0
  %v1663 = vmax.f32 %v1528, 0.0
  %v1664 = vmax.f32 %v1531, 0.0
  %v1665 = vmax.f32 %v1533, 0.0
  %v1666 = vmax.f32 %v1536, 0.0
  %v1667 = vmax.f32 %v1538, 0.0
  %v1668 = vmax.f32 %v1541, 0.0
  %v1669 = vpack.c.bf16 %v1544, %v1544
  %v1670 = vpack.c.bf16 %v1545, %v1545
  %v1671 = vpack.c.bf16 %v1546, %v1546
  %v1672 = vpack.c.bf16 %v1547, %v1547
  %v1673 = vpack.c.bf16 %v1548, %v1548
  %v1674 = vpack.c.bf16 %v1549, %v1549
  %v1675 = vpack.c.bf16 %v1550, %v1550
  %v1676 = vpack.c.bf16 %v1551, %v1551
  %v1677 = vpack.c.bf16 %v1552, %v1552
  %v1678 = vpack.c.bf16 %v1553, %v1553
  %v1679 = vpack.c.bf16 %v1554, %v1554
  %v1680 = vpack.c.bf16 %v1555, %v1555
  %v1681 = vpack.c.bf16 %v1556, %v1556
  %v1682 = vpack.c.bf16 %v1557, %v1557
  %v1683 = vpack.c.bf16 %v1558, %v1558
  %v1684 = vpack.c.bf16 %v1559, %v1559
  %v1685 = vpack.c.bf16 %v1560, %v1560
  %v1686 = vpack.c.bf16 %v1561, %v1561
  %v1687 = vpack.c.bf16 %v1562, %v1562
  %v1688 = vpack.c.bf16 %v1563, %v1563
  %v1689 = vpack.c.bf16 %v1564, %v1564
  %v1690 = vpack.c.bf16 %v1565, %v1565
  %v1691 = vpack.c.bf16 %v1566, %v1566
  %v1692 = vpack.c.bf16 %v1567, %v1567
  %v1693 = vpack.c.bf16 %v1568, %v1568
  %v1694 = vpack.c.bf16 %v1569, %v1569
  %v1695 = vpack.c.bf16 %v1570, %v1570
  %v1696 = vpack.c.bf16 %v1571, %v1571
  %v1697 = vpack.c.bf16 %v1572, %v1572
  %v1698 = vpack.c.bf16 %v1573, %v1573
  %v1699 = vpack.c.bf16 %v1574, %v1574
  %v1700 = vpack.c.bf16 %v1575, %v1575
  %v1701 = vpack.c.bf16 %v1576, %v1576
  %v1702 = vpack.c.bf16 %v1577, %v1577
  %v1703 = vpack.c.bf16 %v1578, %v1578
  %v1704 = vpack.c.bf16 %v1579, %v1579
  %v1705 = vpack.c.bf16 %v1580, %v1580
  %v1706 = vpack.c.bf16 %v1581, %v1581
  %v1707 = vpack.c.bf16 %v1582, %v1582
  %v1708 = vpack.c.bf16 %v1583, %v1583
  %v1709 = vpack.c.bf16 %v1584, %v1584
  %v1710 = vpack.c.bf16 %v1585, %v1585
  %v1711 = vpack.c.bf16 %v1586, %v1586
  %v1712 = vpack.c.bf16 %v1587, %v1587
  %v1713 = vpack.c.bf16 %v1588, %v1588
  %v1714 = vpack.c.bf16 %v1589, %v1589
  %v1715 = vpack.c.bf16 %v1590, %v1590
  %v1716 = vpack.c.bf16 %v1591, %v1591
  %v1717 = vpack.c.bf16 %v1592, %v1592
  %v1718 = vpack.c.bf16 %v1593, %v1593
  %v1719 = vpack.c.bf16 %v1594, %v1594
  %v1720 = vpack.c.bf16 %v1595, %v1595
  %v1721 = vpack.c.bf16 %v1596, %v1596
  %v1722 = vpack.c.bf16 %v1597, %v1597
  %v1723 = vpack.c.bf16 %v1598, %v1598
  %v1724 = vpack.c.bf16 %v1599, %v1599
  %v1725 = vpack.c.bf16 %v1600, %v1600
  %v1726 = vpack.c.bf16 %v1601, %v1601
  %v1727 = vpack.c.bf16 %v1602, %v1602
  %v1728 = vpack.c.bf16 %v1603, %v1603
  %v1729 = vpack.c.bf16 %v1604, %v1604
  %v1730 = vpack.c.bf16 %v1605, %v1605
  %v1731 = vpack.c.bf16 %v1606, %v1606
  %v1732 = vpack.c.bf16 %v1607, %v1607
  %v1733 = vpack.c.bf16 %v1608, %v1608
  %v1734 = vpack.c.bf16 %v1609, %v1609
  %v1735 = vpack.c.bf16 %v1610, %v1610
  %v1736 = vpack.c.bf16 %v1611, %v1611
  %v1737 = vpack.c.bf16 %v1612, %v1612
  %v1738 = vpack.c.bf16 %v1613, %v1613
  %v1739 = vpack.c.bf16 %v1614, %v1614
  %v1740 = vpack.c.bf16 %v1615, %v1615
  %v1741 = vpack.c.bf16 %v1616, %v1616
  %v1742 = vpack.c.bf16 %v1617, %v1617
  %v1743 = vpack.c.bf16 %v1618, %v1618
  %v1744 = vpack.c.bf16 %v1619, %v1619
  %v1745 = vpack.c.bf16 %v1620, %v1620
  %v1746 = vpack.c.bf16 %v1621, %v1621
  %v1747 = vpack.c.bf16 %v1622, %v1622
  %v1748 = vpack.c.bf16 %v1623, %v1623
  %v1749 = vpack.c.bf16 %v1624, %v1624
  %v1750 = vpack.c.bf16 %v1625, %v1625
  %v1751 = vpack.c.bf16 %v1626, %v1626
  %v1752 = vpack.c.bf16 %v1627, %v1627
  %v1753 = vpack.c.bf16 %v1628, %v1628
  %v1754 = vpack.c.bf16 %v1629, %v1629
  %v1755 = vpack.c.bf16 %v1630, %v1630
  %v1756 = vpack.c.bf16 %v1631, %v1631
  %v1757 = vpack.c.bf16 %v1632, %v1632
  %v1758 = vpack.c.bf16 %v1633, %v1633
  %v1759 = vpack.c.bf16 %v1634, %v1634
  %v1760 = vpack.c.bf16 %v1635, %v1635
  %v1761 = vpack.c.bf16 %v1636, %v1636
  %v1762 = vpack.c.bf16 %v1637, %v1637
  %v1763 = vpack.c.bf16 %v1638, %v1638
  %v1764 = vpack.c.bf16 %v1639, %v1639
  %v1765 = vpack.c.bf16 %v1640, %v1640
  %v1766 = vpack.c.bf16 %v1641, %v1641
  %v1767 = vpack.c.bf16 %v1642, %v1642
  %v1768 = vpack.c.bf16 %v1643, %v1643
  %v1769 = vpack.c.bf16 %v1644, %v1644
  %v1770 = vpack.c.bf16 %v1645, %v1645
  %v1771 = vpack.c.bf16 %v1646, %v1646
  %v1772 = vpack.c.bf16 %v1647, %v1647
  %v1773 = vpack.c.bf16 %v1648, %v1648
  %v1774 = vpack.c.bf16 %v1649, %v1649
  %v1775 = vpack.c.bf16 %v1650, %v1650
  %v1776 = vpack.c.bf16 %v1651, %v1651
  %v1777 = vpack.c.bf16 %v1652, %v1652
  %v1778 = vpack.c.bf16 %v1653, %v1653
  %v1779 = vpack.c.bf16 %v1654, %v1654
  %v1780 = vpack.c.bf16 %v1655, %v1655
  %v1781 = vpack.c.bf16 %v1656, %v1656
  %v1782 = vpack.c.bf16 %v1657, %v1657
  %v1783 = vpack.c.bf16 %v1658, %v1658
  %v1784 = vpack.c.bf16 %v1659, %v1659
  %v1785 = vpack.c.bf16 %v1660, %v1660
  %v1786 = vpack.c.bf16 %v1661, %v1661
  %v1787 = vpack.c.bf16 %v1662, %v1662
  %v1788 = vpack.c.bf16 %v1663, %v1663
  %v1789 = vpack.c.bf16 %v1664, %v1664
  %v1790 = vpack.c.bf16 %v1665, %v1665
  %v1791 = vpack.c.bf16 %v1666, %v1666
  %v1792 = vpack.c.bf16 %v1667, %v1667
  %v1793 = vpack.c.bf16 %v1668, %v1668
  %vm1794 = vcmask 257024
  %1795 = vst.msk [vmem:[%s3] sm:$0xf] %vm1794, %v1669
  %1796 = vst.msk [vmem:[%s3 + $0x4] sm:$0xf] %vm1794, %v1670
  %1797 = vst.msk [vmem:[%s3 + $0x8] sm:$0xf] %vm1794, %v1671
  %1798 = vst.msk [vmem:[%s3 + $0xc] sm:$0xf] %vm1794, %v1672
  %1799 = vst.msk [vmem:[%s3 + $0x10] sm:$0xf] %vm1794, %v1673
  %1800 = vst.msk [vmem:[%s3 + $0x14] sm:$0xf] %vm1794, %v1674
  %1801 = vst.msk [vmem:[%s3 + $0x18] sm:$0xf] %vm1794, %v1675
  %1802 = vst.msk [vmem:[%s3 + $0x1c] sm:$0xf] %vm1794, %v1676
  %1803 = vst.msk [vmem:[%s3 + $0x20] sm:$0xf] %vm1794, %v1677
  %1804 = vst.msk [vmem:[%s3 + $0x24] sm:$0xf] %vm1794, %v1678
  %1805 = vst.msk [vmem:[%s3 + $0x28] sm:$0xf] %vm1794, %v1679
  %1806 = vst.msk [vmem:[%s3 + $0x2c] sm:$0xf] %vm1794, %v1680
  %1807 = vst.msk [vmem:[%s3 + $0x30] sm:$0xf] %vm1794, %v1681
  %1808 = vst.msk [vmem:[%s3 + $0x34] sm:$0xf] %vm1794, %v1682
  %1809 = vst.msk [vmem:[%s3 + $0x38] sm:$0xf] %vm1794, %v1683
  %1810 = vst.msk [vmem:[%s3 + $0x3c] sm:$0xf] %vm1794, %v1684
  %1811 = vst.msk [vmem:[%s3 + $0x40] sm:$0xf] %vm1794, %v1685
  %1812 = vst.msk [vmem:[%s3 + $0x44] sm:$0xf] %vm1794, %v1686
  %1813 = vst.msk [vmem:[%s3 + $0x48] sm:$0xf] %vm1794, %v1687
  %1814 = vst.msk [vmem:[%s3 + $0x4c] sm:$0xf] %vm1794, %v1688
  %1815 = vst.msk [vmem:[%s3 + $0x50] sm:$0xf] %vm1794, %v1689
  %1816 = vst.msk [vmem:[%s3 + $0x54] sm:$0xf] %vm1794, %v1690
  %1817 = vst.msk [vmem:[%s3 + $0x58] sm:$0xf] %vm1794, %v1691
  %1818 = vst.msk [vmem:[%s3 + $0x5c] sm:$0xf] %vm1794, %v1692
  %1819 = vst.msk [vmem:[%s3 + $0x60] sm:$0xf] %vm1794, %v1693
  %1820 = vst.msk [vmem:[%s3 + $0x64] sm:$0xf] %vm1794, %v1694
  %1821 = vst.msk [vmem:[%s3 + $0x68] sm:$0xf] %vm1794, %v1695
  %1822 = vst.msk [vmem:[%s3 + $0x6c] sm:$0xf] %vm1794, %v1696
  %1823 = vst.msk [vmem:[%s3 + $0x70] sm:$0xf] %vm1794, %v1697
  %1824 = vst.msk [vmem:[%s3 + $0x74] sm:$0xf] %vm1794, %v1698
  %1825 = vst.msk [vmem:[%s3 + $0x78] sm:$0xf] %vm1794, %v1699
  %1826 = vst.msk [vmem:[%s3 + $0x7c] sm:$0xf] %vm1794, %v1700
  %1827 = vst.msk [vmem:[%s3 + $0x80] sm:$0xf] %vm1794, %v1701
  %1828 = vst.msk [vmem:[%s3 + $0x84] sm:$0xf] %vm1794, %v1702
  %1829 = vst.msk [vmem:[%s3 + $0x88] sm:$0xf] %vm1794, %v1703
  %1830 = vst.msk [vmem:[%s3 + $0x8c] sm:$0xf] %vm1794, %v1704
  %1831 = vst.msk [vmem:[%s3 + $0x90] sm:$0xf] %vm1794, %v1705
  %1832 = vst.msk [vmem:[%s3 + $0x94] sm:$0xf] %vm1794, %v1706
  %1833 = vst.msk [vmem:[%s3 + $0x98] sm:$0xf] %vm1794, %v1707
  %1834 = vst.msk [vmem:[%s3 + $0x9c] sm:$0xf] %vm1794, %v1708
  %1835 = vst.msk [vmem:[%s3 + $0xa0] sm:$0xf] %vm1794, %v1709
  %1836 = vst.msk [vmem:[%s3 + $0xa4] sm:$0xf] %vm1794, %v1710
  %1837 = vst.msk [vmem:[%s3 + $0xa8] sm:$0xf] %vm1794, %v1711
  %1838 = vst.msk [vmem:[%s3 + $0xac] sm:$0xf] %vm1794, %v1712
  %1839 = vst.msk [vmem:[%s3 + $0xb0] sm:$0xf] %vm1794, %v1713
  %1840 = vst.msk [vmem:[%s3 + $0xb4] sm:$0xf] %vm1794, %v1714
  %1841 = vst.msk [vmem:[%s3 + $0xb8] sm:$0xf] %vm1794, %v1715
  %1842 = vst.msk [vmem:[%s3 + $0xbc] sm:$0xf] %vm1794, %v1716
  %1843 = vst.msk [vmem:[%s3 + $0xc0] sm:$0xf] %vm1794, %v1717
  %1844 = vst.msk [vmem:[%s3 + $0xc4] sm:$0xf] %vm1794, %v1718
  %1845 = vst.msk [vmem:[%s3 + $0xc8] sm:$0xf] %vm1794, %v1719
  %1846 = vst.msk [vmem:[%s3 + $0xcc] sm:$0xf] %vm1794, %v1720
  %1847 = vst.msk [vmem:[%s3 + $0xd0] sm:$0xf] %vm1794, %v1721
  %1848 = vst.msk [vmem:[%s3 + $0xd4] sm:$0xf] %vm1794, %v1722
  %1849 = vst.msk [vmem:[%s3 + $0xd8] sm:$0xf] %vm1794, %v1723
  %1850 = vst.msk [vmem:[%s3 + $0xdc] sm:$0xf] %vm1794, %v1724
  %1851 = vst.msk [vmem:[%s3 + $0xe0] sm:$0xf] %vm1794, %v1725
  %1852 = vst.msk [vmem:[%s3 + $0xe4] sm:$0xf] %vm1794, %v1726
  %1853 = vst.msk [vmem:[%s3 + $0xe8] sm:$0xf] %vm1794, %v1727
  %1854 = vst.msk [vmem:[%s3 + $0xec] sm:$0xf] %vm1794, %v1728
  %1855 = vst.msk [vmem:[%s3 + $0xf0] sm:$0xf] %vm1794, %v1729
  %1856 = vst.msk [vmem:[%s3 + $0xf4] sm:$0xf] %vm1794, %v1730
  %1857 = vst.msk [vmem:[%s3 + $0xf8] sm:$0xf] %vm1794, %v1731
  %1858 = vst.msk [vmem:[%s3 + $0xfc] sm:$0xf] %vm1794, %v1732
  %1859 = vst.msk [vmem:[%s3 + $0x100] sm:$0xf] %vm1794, %v1733
  %1860 = vst.msk [vmem:[%s3 + $0x104] sm:$0xf] %vm1794, %v1734
  %1861 = vst.msk [vmem:[%s3 + $0x108] sm:$0xf] %vm1794, %v1735
  %1862 = vst.msk [vmem:[%s3 + $0x10c] sm:$0xf] %vm1794, %v1736
  %1863 = vst.msk [vmem:[%s3 + $0x110] sm:$0xf] %vm1794, %v1737
  %1864 = vst.msk [vmem:[%s3 + $0x114] sm:$0xf] %vm1794, %v1738
  %1865 = vst.msk [vmem:[%s3 + $0x118] sm:$0xf] %vm1794, %v1739
  %1866 = vst.msk [vmem:[%s3 + $0x11c] sm:$0xf] %vm1794, %v1740
  %1867 = vst.msk [vmem:[%s3 + $0x120] sm:$0xf] %vm1794, %v1741
  %1868 = vst.msk [vmem:[%s3 + $0x124] sm:$0xf] %vm1794, %v1742
  %1869 = vst.msk [vmem:[%s3 + $0x128] sm:$0xf] %vm1794, %v1743
  %1870 = vst.msk [vmem:[%s3 + $0x12c] sm:$0xf] %vm1794, %v1744
  %1871 = vst.msk [vmem:[%s3 + $0x130] sm:$0xf] %vm1794, %v1745
  %1872 = vst.msk [vmem:[%s3 + $0x134] sm:$0xf] %vm1794, %v1746
  %1873 = vst.msk [vmem:[%s3 + $0x138] sm:$0xf] %vm1794, %v1747
  %1874 = vst.msk [vmem:[%s3 + $0x13c] sm:$0xf] %vm1794, %v1748
  %1875 = vst.msk [vmem:[%s3 + $0x140] sm:$0xf] %vm1794, %v1749
  %1876 = vst.msk [vmem:[%s3 + $0x144] sm:$0xf] %vm1794, %v1750
  %1877 = vst.msk [vmem:[%s3 + $0x148] sm:$0xf] %vm1794, %v1751
  %1878 = vst.msk [vmem:[%s3 + $0x14c] sm:$0xf] %vm1794, %v1752
  %1879 = vst.msk [vmem:[%s3 + $0x150] sm:$0xf] %vm1794, %v1753
  %1880 = vst.msk [vmem:[%s3 + $0x154] sm:$0xf] %vm1794, %v1754
  %1881 = vst.msk [vmem:[%s3 + $0x158] sm:$0xf] %vm1794, %v1755
  %1882 = vst.msk [vmem:[%s3 + $0x15c] sm:$0xf] %vm1794, %v1756
  %1883 = vst.msk [vmem:[%s3 + $0x160] sm:$0xf] %vm1794, %v1757
  %1884 = vst.msk [vmem:[%s3 + $0x164] sm:$0xf] %vm1794, %v1758
  %1885 = vst.msk [vmem:[%s3 + $0x168] sm:$0xf] %vm1794, %v1759
  %1886 = vst.msk [vmem:[%s3 + $0x16c] sm:$0xf] %vm1794, %v1760
  %1887 = vst.msk [vmem:[%s3 + $0x170] sm:$0xf] %vm1794, %v1761
  %1888 = vst.msk [vmem:[%s3 + $0x174] sm:$0xf] %vm1794, %v1762
  %1889 = vst.msk [vmem:[%s3 + $0x178] sm:$0xf] %vm1794, %v1763
  %1890 = vst.msk [vmem:[%s3 + $0x17c] sm:$0xf] %vm1794, %v1764
  %1891 = vst.msk [vmem:[%s3 + $0x180] sm:$0xf] %vm1794, %v1765
  %1892 = vst.msk [vmem:[%s3 + $0x184] sm:$0xf] %vm1794, %v1766
  %1893 = vst.msk [vmem:[%s3 + $0x188] sm:$0xf] %vm1794, %v1767
  %1894 = vst.msk [vmem:[%s3 + $0x18c] sm:$0xf] %vm1794, %v1768
  %1895 = vst.msk [vmem:[%s3 + $0x190] sm:$0xf] %vm1794, %v1769
  %1896 = vst.msk [vmem:[%s3 + $0x194] sm:$0xf] %vm1794, %v1770
  %1897 = vst.msk [vmem:[%s3 + $0x198] sm:$0xf] %vm1794, %v1771
  %1898 = vst.msk [vmem:[%s3 + $0x19c] sm:$0xf] %vm1794, %v1772
  %1899 = vst.msk [vmem:[%s3 + $0x1a0] sm:$0xf] %vm1794, %v1773
  %1900 = vst.msk [vmem:[%s3 + $0x1a4] sm:$0xf] %vm1794, %v1774
  %1901 = vst.msk [vmem:[%s3 + $0x1a8] sm:$0xf] %vm1794, %v1775
  %1902 = vst.msk [vmem:[%s3 + $0x1ac] sm:$0xf] %vm1794, %v1776
  %1903 = vst.msk [vmem:[%s3 + $0x1b0] sm:$0xf] %vm1794, %v1777
  %1904 = vst.msk [vmem:[%s3 + $0x1b4] sm:$0xf] %vm1794, %v1778
  %1905 = vst.msk [vmem:[%s3 + $0x1b8] sm:$0xf] %vm1794, %v1779
  %1906 = vst.msk [vmem:[%s3 + $0x1bc] sm:$0xf] %vm1794, %v1780
  %1907 = vst.msk [vmem:[%s3 + $0x1c0] sm:$0xf] %vm1794, %v1781
  %1908 = vst.msk [vmem:[%s3 + $0x1c4] sm:$0xf] %vm1794, %v1782
  %1909 = vst.msk [vmem:[%s3 + $0x1c8] sm:$0xf] %vm1794, %v1783
  %1910 = vst.msk [vmem:[%s3 + $0x1cc] sm:$0xf] %vm1794, %v1784
  %1911 = vst.msk [vmem:[%s3 + $0x1d0] sm:$0xf] %vm1794, %v1785
  %1912 = vst.msk [vmem:[%s3 + $0x1d4] sm:$0xf] %vm1794, %v1786
  %1913 = vst.msk [vmem:[%s3 + $0x1d8] sm:$0xf] %vm1794, %v1787
  %1914 = vst.msk [vmem:[%s3 + $0x1dc] sm:$0xf] %vm1794, %v1788
  %1915 = vst.msk [vmem:[%s3 + $0x1e0] sm:$0xf] %vm1794, %v1789
  %1916 = vst.msk [vmem:[%s3 + $0x1e4] sm:$0xf] %vm1794, %v1790
  %1917 = vst.msk [vmem:[%s3 + $0x1e8] sm:$0xf] %vm1794, %v1791
  %1918 = vst.msk [vmem:[%s3 + $0x1ec] sm:$0xf] %vm1794, %v1792
  %1919 = vst.msk [vmem:[%s3 + $0x1f0] sm:$0xf] %vm1794, %v1793
  // Predicated region
  $region14: #{simple_dqnet_forward.4} parent=0 // pred_check
    _
  $region15: #{simple_dqnet_forward.4} parent=0 // pred_check_branch
    %1921 = sbr.rel (0) target = $region17
  $region16: #{simple_dqnet_forward.4} parent=0 // pred_region
    _
  $region17: #{simple_dqnet_forward.4} parent=0 // pred_fallthru
    _
  // Predicated region
  $region18: #{simple_dqnet_forward.4} parent=0 // pred_check
    _
  $region19: #{simple_dqnet_forward.4} parent=0 // pred_check_branch
    %1923 = sbr.rel (0) target = $region21
  $region20: #{simple_dqnet_forward.4} parent=0 // pred_region
    _
  $region21: #{simple_dqnet_forward.4} parent=0 // pred_fallthru
    _

// kernel: simple_dqnet_forward.5
$region0: #{simple_dqnet_forward.5}
  #allocation0 [shape = 'u32[]', space=smem, size = 0x4, offset = 0x4, fixed_abs, tag = 'smem constant byte address 0x4 - core index']
  #allocation1 [shape = 'u32[72,128]{1,0:T(1,128)}', space=vmem, size = 0x9000, scoped, tag = 'internal scratch']
  %s0 = inlined_call_operand.vmem [shape: bf16[198,512], index: 0, kind: input, shape index: {}]
  %s1 = inlined_call_operand.vmem [shape: bf16[512,64], index: 1, kind: input, shape index: {}]
  %s2 = inlined_call_operand.vmem [shape: f32[1,64], index: 2, kind: input, shape index: {}]
  %s3 = inlined_call_operand.vmem [shape: bf16[198,64], index: 3, kind: output, shape index: {}]
  %s4 = sld [smem:[#allocation0]]
  $region22: #{simple_dqnet_forward.5} parent=0
    _
  %s6 = ssub.s32 1, %s4
  %s7 = scalar_select 0, %s6, %s4
  // Predicated region
  $region2: #{simple_dqnet_forward.5} parent=0 // pred_check
    _
  $region3: #{simple_dqnet_forward.5} parent=0 // pred_check_branch
    %9 = sbr.rel (0) target = $region5
  $region4: #{simple_dqnet_forward.5} parent=0 // pred_region
    _
  $region5: #{simple_dqnet_forward.5} parent=0 // pred_fallthru
    _
  // Predicated region
  $region6: #{simple_dqnet_forward.5} parent=0 // pred_check
    _
  $region7: #{simple_dqnet_forward.5} parent=0 // pred_check_branch
    %11 = sbr.rel (0) target = $region9
  $region8: #{simple_dqnet_forward.5} parent=0 // pred_region
    _
  $region9: #{simple_dqnet_forward.5} parent=0 // pred_fallthru
    _
  // Predicated region
  $region10: #{simple_dqnet_forward.5} parent=0 // pred_check
    _
  $region11: #{simple_dqnet_forward.5} parent=0 // pred_check_branch
    %13 = sbr.rel (0) target = $region13
  $region12: #{simple_dqnet_forward.5} parent=0 // pred_region
    _
  $region13: #{simple_dqnet_forward.5} parent=0 // pred_fallthru
    _
  %v14 = vld [vmem:[%s0] sm:$0xff]
  %v15 = vld [vmem:[%s0 + $0x8] sm:$0xff]
  %v16 = vld [vmem:[%s0 + $0x10] sm:$0xff]
  %v17 = vld [vmem:[%s0 + $0x18] sm:$0xff]
  %v18 = vld [vmem:[%s0 + $0x20] sm:$0xff]
  %v19 = vld [vmem:[%s0 + $0x28] sm:$0xff]
  %v20 = vld [vmem:[%s0 + $0x30] sm:$0xff]
  %v21 = vld [vmem:[%s0 + $0x38] sm:$0xff]
  %v22 = vld [vmem:[%s0 + $0x40] sm:$0xff]
  %v23 = vld [vmem:[%s0 + $0x48] sm:$0xff]
  %v24 = vld [vmem:[%s0 + $0x50] sm:$0xff]
  %v25 = vld [vmem:[%s0 + $0x58] sm:$0xff]
  %v26 = vld [vmem:[%s0 + $0x60] sm:$0xff]
  %v27 = vld [vmem:[%s0 + $0x68] sm:$0xff]
  %v28 = vld [vmem:[%s0 + $0x70] sm:$0xff]
  %v29 = vld [vmem:[%s0 + $0x78] sm:$0xff]
  %v30 = vld [vmem:[%s0 + $0x80] sm:$0xff]
  %v31 = vld [vmem:[%s0 + $0x88] sm:$0xff]
  %v32 = vld [vmem:[%s0 + $0x90] sm:$0xff]
  %v33 = vld [vmem:[%s0 + $0x98] sm:$0xff]
  %v34 = vld [vmem:[%s0 + $0xa0] sm:$0xff]
  %v35 = vld [vmem:[%s0 + $0xa8] sm:$0xff]
  %v36 = vld [vmem:[%s0 + $0xb0] sm:$0xff]
  %v37 = vld [vmem:[%s0 + $0xb8] sm:$0xff]
  %v38 = vld [vmem:[%s0 + $0xc0] sm:$0xff]
  %v39 = vld [vmem:[%s0 + $0xc8] sm:$0xff]
  %v40 = vld [vmem:[%s0 + $0xd0] sm:$0xff]
  %v41 = vld [vmem:[%s0 + $0xd8] sm:$0xff]
  %v42 = vld [vmem:[%s0 + $0xe0] sm:$0xff]
  %v43 = vld [vmem:[%s0 + $0xe8] sm:$0xff]
  %v44 = vld [vmem:[%s0 + $0xf0] sm:$0xff]
  %v45 = vld [vmem:[%s0 + $0xf8] sm:$0xff]
  %v46 = vld [vmem:[%s0 + $0x100] sm:$0xff]
  %v47 = vld [vmem:[%s0 + $0x108] sm:$0xff]
  %v48 = vld [vmem:[%s0 + $0x110] sm:$0xff]
  %v49 = vld [vmem:[%s0 + $0x118] sm:$0xff]
  %v50 = vld [vmem:[%s0 + $0x120] sm:$0xff]
  %v51 = vld [vmem:[%s0 + $0x128] sm:$0xff]
  %v52 = vld [vmem:[%s0 + $0x130] sm:$0xff]
  %v53 = vld [vmem:[%s0 + $0x138] sm:$0xff]
  %v54 = vld [vmem:[%s0 + $0x140] sm:$0xff]
  %v55 = vld [vmem:[%s0 + $0x148] sm:$0xff]
  %v56 = vld [vmem:[%s0 + $0x150] sm:$0xff]
  %v57 = vld [vmem:[%s0 + $0x158] sm:$0xff]
  %v58 = vld [vmem:[%s0 + $0x160] sm:$0xff]
  %v59 = vld [vmem:[%s0 + $0x168] sm:$0xff]
  %v60 = vld [vmem:[%s0 + $0x170] sm:$0xff]
  %v61 = vld [vmem:[%s0 + $0x178] sm:$0xff]
  %v62 = vld [vmem:[%s0 + $0x180] sm:$0x77]
  %v63 = vld [vmem:[%s0 + $0x188] sm:$0x77]
  %v64 = vld [vmem:[%s1] sm:$0xf]
  %v65 = vld [vmem:[%s1 + $0x4] sm:$0xf]
  %v66 = vld [vmem:[%s1 + $0x8] sm:$0xf]
  %v67 = vld [vmem:[%s1 + $0xc] sm:$0xf]
  %v68 = vld [vmem:[%s1 + $0x10] sm:$0xf]
  %v69 = vld [vmem:[%s1 + $0x14] sm:$0xf]
  %v70 = vld [vmem:[%s1 + $0x18] sm:$0xf]
  %v71 = vld [vmem:[%s1 + $0x1c] sm:$0xf]
  %v72 = vld [vmem:[%s1 + $0x20] sm:$0xf]
  %v73 = vld [vmem:[%s1 + $0x24] sm:$0xf]
  %v74 = vld [vmem:[%s1 + $0x28] sm:$0xf]
  %v75 = vld [vmem:[%s1 + $0x2c] sm:$0xf]
  %v76 = vld [vmem:[%s1 + $0x30] sm:$0xf]
  %v77 = vld [vmem:[%s1 + $0x34] sm:$0xf]
  %v78 = vld [vmem:[%s1 + $0x38] sm:$0xf]
  %v79 = vld [vmem:[%s1 + $0x3c] sm:$0xf]
  %v80 = vld [vmem:[%s1 + $0x40] sm:$0xf]
  %v81 = vld [vmem:[%s1 + $0x44] sm:$0xf]
  %v82 = vld [vmem:[%s1 + $0x48] sm:$0xf]
  %v83 = vld [vmem:[%s1 + $0x4c] sm:$0xf]
  %v84 = vld [vmem:[%s1 + $0x50] sm:$0xf]
  %v85 = vld [vmem:[%s1 + $0x54] sm:$0xf]
  %v86 = vld [vmem:[%s1 + $0x58] sm:$0xf]
  %v87 = vld [vmem:[%s1 + $0x5c] sm:$0xf]
  %v88 = vld [vmem:[%s1 + $0x60] sm:$0xf]
  %v89 = vld [vmem:[%s1 + $0x64] sm:$0xf]
  %v90 = vld [vmem:[%s1 + $0x68] sm:$0xf]
  %v91 = vld [vmem:[%s1 + $0x6c] sm:$0xf]
  %v92 = vld [vmem:[%s1 + $0x70] sm:$0xf]
  %v93 = vld [vmem:[%s1 + $0x74] sm:$0xf]
  %v94 = vld [vmem:[%s1 + $0x78] sm:$0xf]
  %v95 = vld [vmem:[%s1 + $0x7c] sm:$0xf]
  %v96 = vld [vmem:[%s1 + $0x80] sm:$0xf]
  %v97 = vld [vmem:[%s1 + $0x84] sm:$0xf]
  %v98 = vld [vmem:[%s1 + $0x88] sm:$0xf]
  %v99 = vld [vmem:[%s1 + $0x8c] sm:$0xf]
  %v100 = vld [vmem:[%s1 + $0x90] sm:$0xf]
  %v101 = vld [vmem:[%s1 + $0x94] sm:$0xf]
  %v102 = vld [vmem:[%s1 + $0x98] sm:$0xf]
  %v103 = vld [vmem:[%s1 + $0x9c] sm:$0xf]
  %v104 = vld [vmem:[%s1 + $0xa0] sm:$0xf]
  %v105 = vld [vmem:[%s1 + $0xa4] sm:$0xf]
  %v106 = vld [vmem:[%s1 + $0xa8] sm:$0xf]
  %v107 = vld [vmem:[%s1 + $0xac] sm:$0xf]
  %v108 = vld [vmem:[%s1 + $0xb0] sm:$0xf]
  %v109 = vld [vmem:[%s1 + $0xb4] sm:$0xf]
  %v110 = vld [vmem:[%s1 + $0xb8] sm:$0xf]
  %v111 = vld [vmem:[%s1 + $0xbc] sm:$0xf]
  %v112 = vld [vmem:[%s1 + $0xc0] sm:$0xf]
  %v113 = vld [vmem:[%s1 + $0xc4] sm:$0xf]
  %v114 = vld [vmem:[%s1 + $0xc8] sm:$0xf]
  %v115 = vld [vmem:[%s1 + $0xcc] sm:$0xf]
  %v116 = vld [vmem:[%s1 + $0xd0] sm:$0xf]
  %v117 = vld [vmem:[%s1 + $0xd4] sm:$0xf]
  %v118 = vld [vmem:[%s1 + $0xd8] sm:$0xf]
  %v119 = vld [vmem:[%s1 + $0xdc] sm:$0xf]
  %v120 = vld [vmem:[%s1 + $0xe0] sm:$0xf]
  %v121 = vld [vmem:[%s1 + $0xe4] sm:$0xf]
  %v122 = vld [vmem:[%s1 + $0xe8] sm:$0xf]
  %v123 = vld [vmem:[%s1 + $0xec] sm:$0xf]
  %v124 = vld [vmem:[%s1 + $0xf0] sm:$0xf]
  %v125 = vld [vmem:[%s1 + $0xf4] sm:$0xf]
  %v126 = vld [vmem:[%s1 + $0xf8] sm:$0xf]
  %v127 = vld [vmem:[%s1 + $0xfc] sm:$0xf]
  %v128 = vld [vmem:[%s2] sm:$0x1]
  %v130 = vperm.slane %v128, 0
  %v182 = vunpack.c.l.b16 %v14
  %v183 = vunpack.c.h.b16 %v14
  %v184 = vunpack.c.l.b16 %v15
  %v185 = vunpack.c.h.b16 %v15
  %v186 = vunpack.c.l.b16 %v16
  %v187 = vunpack.c.h.b16 %v16
  %v188 = vunpack.c.l.b16 %v17
  %v189 = vunpack.c.h.b16 %v17
  %v190 = vunpack.c.l.b16 %v18
  %v191 = vunpack.c.h.b16 %v18
  %v192 = vunpack.c.l.b16 %v19
  %v193 = vunpack.c.h.b16 %v19
  %v194 = vunpack.c.l.b16 %v20
  %v195 = vunpack.c.h.b16 %v20
  %v196 = vunpack.c.l.b16 %v21
  %v197 = vunpack.c.h.b16 %v21
  %v198 = vunpack.c.l.b16 %v22
  %v199 = vunpack.c.h.b16 %v22
  %v200 = vunpack.c.l.b16 %v23
  %v201 = vunpack.c.h.b16 %v23
  %v202 = vunpack.c.l.b16 %v24
  %v203 = vunpack.c.h.b16 %v24
  %v204 = vunpack.c.l.b16 %v25
  %v205 = vunpack.c.h.b16 %v25
  %v206 = vunpack.c.l.b16 %v26
  %v207 = vunpack.c.h.b16 %v26
  %v208 = vunpack.c.l.b16 %v27
  %v209 = vunpack.c.h.b16 %v27
  %v210 = vunpack.c.l.b16 %v28
  %v211 = vunpack.c.h.b16 %v28
  %v212 = vunpack.c.l.b16 %v29
  %v213 = vunpack.c.h.b16 %v29
  %v214 = vunpack.c.l.b16 %v30
  %v215 = vunpack.c.h.b16 %v30
  %v216 = vunpack.c.l.b16 %v31
  %v217 = vunpack.c.h.b16 %v31
  %v218 = vunpack.c.l.b16 %v32
  %v219 = vunpack.c.h.b16 %v32
  %v220 = vunpack.c.l.b16 %v33
  %v221 = vunpack.c.h.b16 %v33
  %v222 = vunpack.c.l.b16 %v34
  %v223 = vunpack.c.h.b16 %v34
  %v224 = vunpack.c.l.b16 %v35
  %v225 = vunpack.c.h.b16 %v35
  %v226 = vunpack.c.l.b16 %v36
  %v227 = vunpack.c.h.b16 %v36
  %v228 = vunpack.c.l.b16 %v37
  %v229 = vunpack.c.h.b16 %v37
  %v230 = vunpack.c.l.b16 %v38
  %v231 = vunpack.c.h.b16 %v38
  %v232 = vunpack.c.l.b16 %v39
  %v233 = vunpack.c.h.b16 %v39
  %v234 = vunpack.c.l.b16 %v40
  %v235 = vunpack.c.h.b16 %v40
  %v236 = vunpack.c.l.b16 %v41
  %v237 = vunpack.c.h.b16 %v41
  %v238 = vunpack.c.l.b16 %v42
  %v239 = vunpack.c.h.b16 %v42
  %v240 = vunpack.c.l.b16 %v43
  %v241 = vunpack.c.h.b16 %v43
  %v242 = vunpack.c.l.b16 %v44
  %v243 = vunpack.c.h.b16 %v44
  %v244 = vunpack.c.l.b16 %v45
  %v245 = vunpack.c.h.b16 %v45
  %v246 = vunpack.c.l.b16 %v46
  %v247 = vunpack.c.h.b16 %v46
  %v248 = vunpack.c.l.b16 %v47
  %v249 = vunpack.c.h.b16 %v47
  %v250 = vunpack.c.l.b16 %v48
  %v251 = vunpack.c.h.b16 %v48
  %v252 = vunpack.c.l.b16 %v49
  %v253 = vunpack.c.h.b16 %v49
  %v254 = vunpack.c.l.b16 %v50
  %v255 = vunpack.c.h.b16 %v50
  %v256 = vunpack.c.l.b16 %v51
  %v257 = vunpack.c.h.b16 %v51
  %v258 = vunpack.c.l.b16 %v52
  %v259 = vunpack.c.h.b16 %v52
  %v260 = vunpack.c.l.b16 %v53
  %v261 = vunpack.c.h.b16 %v53
  %v262 = vunpack.c.l.b16 %v54
  %v263 = vunpack.c.h.b16 %v54
  %v264 = vunpack.c.l.b16 %v55
  %v265 = vunpack.c.h.b16 %v55
  %v266 = vunpack.c.l.b16 %v56
  %v267 = vunpack.c.h.b16 %v56
  %v268 = vunpack.c.l.b16 %v57
  %v269 = vunpack.c.h.b16 %v57
  %v270 = vunpack.c.l.b16 %v58
  %v271 = vunpack.c.h.b16 %v58
  %v272 = vunpack.c.l.b16 %v59
  %v273 = vunpack.c.h.b16 %v59
  %v274 = vunpack.c.l.b16 %v60
  %v275 = vunpack.c.h.b16 %v60
  %v276 = vunpack.c.l.b16 %v61
  %v277 = vunpack.c.h.b16 %v61
  %v278 = vunpack.c.l.b16 %v62
  %v279 = vunpack.c.h.b16 %v62
  %v280 = vunpack.c.l.b16 %v63
  %v281 = vunpack.c.h.b16 %v63
  %v282 = vpack.c.b16 %v186, %v182
  %v283 = vpack.c.b16 %v187, %v183
  %v284 = vpack.c.b16 %v188, %v184
  %v285 = vpack.c.b16 %v189, %v185
  %v286 = vpack.c.b16 %v194, %v190
  %v287 = vpack.c.b16 %v195, %v191
  %v288 = vpack.c.b16 %v196, %v192
  %v289 = vpack.c.b16 %v197, %v193
  %v290 = vpack.c.b16 %v202, %v198
  %v291 = vpack.c.b16 %v203, %v199
  %v292 = vpack.c.b16 %v204, %v200
  %v293 = vpack.c.b16 %v205, %v201
  %v294 = vpack.c.b16 %v210, %v206
  %v295 = vpack.c.b16 %v211, %v207
  %v296 = vpack.c.b16 %v212, %v208
  %v297 = vpack.c.b16 %v213, %v209
  %v298 = vpack.c.b16 %v218, %v214
  %v299 = vpack.c.b16 %v219, %v215
  %v300 = vpack.c.b16 %v220, %v216
  %v301 = vpack.c.b16 %v221, %v217
  %v302 = vpack.c.b16 %v226, %v222
  %v303 = vpack.c.b16 %v227, %v223
  %v304 = vpack.c.b16 %v228, %v224
  %v305 = vpack.c.b16 %v229, %v225
  %v306 = vpack.c.b16 %v234, %v230
  %v307 = vpack.c.b16 %v235, %v231
  %v308 = vpack.c.b16 %v236, %v232
  %v309 = vpack.c.b16 %v237, %v233
  %v310 = vpack.c.b16 %v242, %v238
  %v311 = vpack.c.b16 %v243, %v239
  %v312 = vpack.c.b16 %v244, %v240
  %v313 = vpack.c.b16 %v245, %v241
  %v314 = vpack.c.b16 %v250, %v246
  %v315 = vpack.c.b16 %v251, %v247
  %v316 = vpack.c.b16 %v252, %v248
  %v317 = vpack.c.b16 %v253, %v249
  %v318 = vpack.c.b16 %v258, %v254
  %v319 = vpack.c.b16 %v259, %v255
  %v320 = vpack.c.b16 %v260, %v256
  %v321 = vpack.c.b16 %v261, %v257
  %v322 = vpack.c.b16 %v266, %v262
  %v323 = vpack.c.b16 %v267, %v263
  %v324 = vpack.c.b16 %v268, %v264
  %v325 = vpack.c.b16 %v269, %v265
  %v326 = vpack.c.b16 %v274, %v270
  %v327 = vpack.c.b16 %v275, %v271
  %v328 = vpack.c.b16 %v276, %v272
  %v329 = vpack.c.b16 %v277, %v273
  %v330 = vpack.c.b16 %v278, %v278
  %v331 = vpack.c.b16 %v279, %v279
  %v332 = vpack.c.b16 %v280, %v280
  %v333 = vpack.c.b16 %v281, %v281
  %v450 = vunpack.c.l.b16 %v64
  %v451 = vunpack.c.l.b16 %v65
  %v452 = vunpack.c.l.b16 %v66
  %v453 = vunpack.c.l.b16 %v67
  %v454 = vunpack.c.l.b16 %v68
  %v455 = vunpack.c.l.b16 %v69
  %v456 = vunpack.c.l.b16 %v70
  %v457 = vunpack.c.l.b16 %v71
  %v458 = vunpack.c.l.b16 %v72
  %v459 = vunpack.c.l.b16 %v73
  %v460 = vunpack.c.l.b16 %v74
  %v461 = vunpack.c.l.b16 %v75
  %v462 = vunpack.c.l.b16 %v76
  %v463 = vunpack.c.l.b16 %v77
  %v464 = vunpack.c.l.b16 %v78
  %v465 = vunpack.c.l.b16 %v79
  %v466 = vunpack.c.l.b16 %v80
  %v467 = vunpack.c.l.b16 %v81
  %v468 = vunpack.c.l.b16 %v82
  %v469 = vunpack.c.l.b16 %v83
  %v470 = vunpack.c.l.b16 %v84
  %v471 = vunpack.c.l.b16 %v85
  %v472 = vunpack.c.l.b16 %v86
  %v473 = vunpack.c.l.b16 %v87
  %v474 = vunpack.c.l.b16 %v88
  %v475 = vunpack.c.l.b16 %v89
  %v476 = vunpack.c.l.b16 %v90
  %v477 = vunpack.c.l.b16 %v91
  %v478 = vunpack.c.l.b16 %v92
  %v479 = vunpack.c.l.b16 %v93
  %v480 = vunpack.c.l.b16 %v94
  %v481 = vunpack.c.l.b16 %v95
  %v482 = vunpack.c.l.b16 %v96
  %v483 = vunpack.c.l.b16 %v97
  %v484 = vunpack.c.l.b16 %v98
  %v485 = vunpack.c.l.b16 %v99
  %v486 = vunpack.c.l.b16 %v100
  %v487 = vunpack.c.l.b16 %v101
  %v488 = vunpack.c.l.b16 %v102
  %v489 = vunpack.c.l.b16 %v103
  %v490 = vunpack.c.l.b16 %v104
  %v491 = vunpack.c.l.b16 %v105
  %v492 = vunpack.c.l.b16 %v106
  %v493 = vunpack.c.l.b16 %v107
  %v494 = vunpack.c.l.b16 %v108
  %v495 = vunpack.c.l.b16 %v109
  %v496 = vunpack.c.l.b16 %v110
  %v497 = vunpack.c.l.b16 %v111
  %v498 = vunpack.c.l.b16 %v112
  %v499 = vunpack.c.l.b16 %v113
  %v500 = vunpack.c.l.b16 %v114
  %v501 = vunpack.c.l.b16 %v115
  %v502 = vunpack.c.l.b16 %v116
  %v503 = vunpack.c.l.b16 %v117
  %v504 = vunpack.c.l.b16 %v118
  %v505 = vunpack.c.l.b16 %v119
  %v506 = vunpack.c.l.b16 %v120
  %v507 = vunpack.c.l.b16 %v121
  %v508 = vunpack.c.l.b16 %v122
  %v509 = vunpack.c.l.b16 %v123
  %v510 = vunpack.c.l.b16 %v124
  %v511 = vunpack.c.l.b16 %v125
  %v512 = vunpack.c.l.b16 %v126
  %v513 = vunpack.c.l.b16 %v127
  %v514 = vpack.c.b16 %v451, %v450
  %v515 = vpack.c.b16 %v453, %v452
  %v516 = vpack.c.b16 %v455, %v454
  %v517 = vpack.c.b16 %v457, %v456
  %v518 = vpack.c.b16 %v459, %v458
  %v519 = vpack.c.b16 %v461, %v460
  %v520 = vpack.c.b16 %v463, %v462
  %v521 = vpack.c.b16 %v465, %v464
  %v522 = vpack.c.b16 %v467, %v466
  %v523 = vpack.c.b16 %v469, %v468
  %v524 = vpack.c.b16 %v471, %v470
  %v525 = vpack.c.b16 %v473, %v472
  %v526 = vpack.c.b16 %v475, %v474
  %v527 = vpack.c.b16 %v477, %v476
  %v528 = vpack.c.b16 %v479, %v478
  %v529 = vpack.c.b16 %v481, %v480
  %v530 = vpack.c.b16 %v483, %v482
  %v531 = vpack.c.b16 %v485, %v484
  %v532 = vpack.c.b16 %v487, %v486
  %v533 = vpack.c.b16 %v489, %v488
  %v534 = vpack.c.b16 %v491, %v490
  %v535 = vpack.c.b16 %v493, %v492
  %v536 = vpack.c.b16 %v495, %v494
  %v537 = vpack.c.b16 %v497, %v496
  %v538 = vpack.c.b16 %v499, %v498
  %v539 = vpack.c.b16 %v501, %v500
  %v540 = vpack.c.b16 %v503, %v502
  %v541 = vpack.c.b16 %v505, %v504
  %v542 = vpack.c.b16 %v507, %v506
  %v543 = vpack.c.b16 %v509, %v508
  %v544 = vpack.c.b16 %v511, %v510
  %v545 = vpack.c.b16 %v513, %v512
  %578 = vmatpush.bf16.msra.mxu0 %v521
  %579 = vmatpush.bf16.msra.mxu0 %v520
  %580 = vmatpush.bf16.msra.mxu0 %v519
  %581 = vmatpush.bf16.msra.mxu0 %v518
  %582 = vmatpush.bf16.msra.mxu0 %v517
  %583 = vmatpush.bf16.msra.mxu0 %v516
  %584 = vmatpush.bf16.msra.mxu0 %v515
  %585 = vmatpush.bf16.msra.mxu0 %v514
  %586 = vmatmul.bf16.gmra.mxu0 %v282
  %v587 = vpop.f32.mrf.mxu0
  %v588 = vadd.f32 %v130, %v587
  %v589 = vpop.f32.mrf.mxu0
  %v590 = vadd.f32 %v130, %v589
  %591 = vmatmul.bf16.gmra.mxu0 %v286
  %v592 = vpop.f32.mrf.mxu0
  %v593 = vadd.f32 %v130, %v592
  %v594 = vpop.f32.mrf.mxu0
  %v595 = vadd.f32 %v130, %v594
  %596 = vmatmul.bf16.gmra.mxu0 %v290
  %v597 = vpop.f32.mrf.mxu0
  %v598 = vadd.f32 %v130, %v597
  %v599 = vpop.f32.mrf.mxu0
  %v600 = vadd.f32 %v130, %v599
  %601 = vmatmul.bf16.gmra.mxu0 %v294
  %v602 = vpop.f32.mrf.mxu0
  %v603 = vadd.f32 %v130, %v602
  %v604 = vpop.f32.mrf.mxu0
  %v605 = vadd.f32 %v130, %v604
  %606 = vmatmul.bf16.gmra.mxu0 %v298
  %v607 = vpop.f32.mrf.mxu0
  %v608 = vadd.f32 %v130, %v607
  %v609 = vpop.f32.mrf.mxu0
  %v610 = vadd.f32 %v130, %v609
  %611 = vmatmul.bf16.gmra.mxu0 %v302
  %v612 = vpop.f32.mrf.mxu0
  %v613 = vadd.f32 %v130, %v612
  %v614 = vpop.f32.mrf.mxu0
  %v615 = vadd.f32 %v130, %v614
  %616 = vmatmul.bf16.gmra.mxu0 %v306
  %v617 = vpop.f32.mrf.mxu0
  %v618 = vadd.f32 %v130, %v617
  %v619 = vpop.f32.mrf.mxu0
  %v620 = vadd.f32 %v130, %v619
  %621 = vmatmul.bf16.gmra.mxu0 %v310
  %v622 = vpop.f32.mrf.mxu0
  %v623 = vadd.f32 %v130, %v622
  %v624 = vpop.f32.mrf.mxu0
  %v625 = vadd.f32 %v130, %v624
  %626 = vmatmul.bf16.gmra.mxu0 %v314
  %v627 = vpop.f32.mrf.mxu0
  %v628 = vadd.f32 %v130, %v627
  %v629 = vpop.f32.mrf.mxu0
  %v630 = vadd.f32 %v130, %v629
  %631 = vmatmul.bf16.gmra.mxu0 %v318
  %v632 = vpop.f32.mrf.mxu0
  %v633 = vadd.f32 %v130, %v632
  %v634 = vpop.f32.mrf.mxu0
  %v635 = vadd.f32 %v130, %v634
  %636 = vmatmul.bf16.gmra.mxu0 %v322
  %v637 = vpop.f32.mrf.mxu0
  %v638 = vadd.f32 %v130, %v637
  %v639 = vpop.f32.mrf.mxu0
  %v640 = vadd.f32 %v130, %v639
  %641 = vmatmul.bf16.gmra.mxu0 %v326
  %v642 = vpop.f32.mrf.mxu0
  %v643 = vadd.f32 %v130, %v642
  %v644 = vpop.f32.mrf.mxu0
  %v645 = vadd.f32 %v130, %v644
  %646 = vmatmul.bf16.gmra.mxu0 %v330
  %v647 = vpop.f32.mrf.mxu0
  %v648 = vadd.f32 %v130, %v647
  %v649 = vpop.f32.mrf.mxu0
  %650 = vdwg.mxu0
  %651 = vmatpush.bf16.msra.mxu0 %v529
  %652 = vmatpush.bf16.msra.mxu0 %v528
  %653 = vmatpush.bf16.msra.mxu0 %v527
  %654 = vmatpush.bf16.msra.mxu0 %v526
  %655 = vmatpush.bf16.msra.mxu0 %v525
  %656 = vmatpush.bf16.msra.mxu0 %v524
  %657 = vmatpush.bf16.msra.mxu0 %v523
  %658 = vmatpush.bf16.msra.mxu0 %v522
  %659 = vmatmul.bf16.gmra.mxu0 %v283
  %v660 = vpop.f32.mrf.mxu0
  %v661 = vadd.f32 %v588, %v660
  %v662 = vpop.f32.mrf.mxu0
  %v663 = vadd.f32 %v590, %v662
  %664 = vmatmul.bf16.gmra.mxu0 %v287
  %v665 = vpop.f32.mrf.mxu0
  %v666 = vadd.f32 %v593, %v665
  %v667 = vpop.f32.mrf.mxu0
  %v668 = vadd.f32 %v595, %v667
  %669 = vmatmul.bf16.gmra.mxu0 %v291
  %v670 = vpop.f32.mrf.mxu0
  %v671 = vadd.f32 %v598, %v670
  %v672 = vpop.f32.mrf.mxu0
  %v673 = vadd.f32 %v600, %v672
  %674 = vmatmul.bf16.gmra.mxu0 %v295
  %v675 = vpop.f32.mrf.mxu0
  %v676 = vadd.f32 %v603, %v675
  %v677 = vpop.f32.mrf.mxu0
  %v678 = vadd.f32 %v605, %v677
  %679 = vmatmul.bf16.gmra.mxu0 %v299
  %v680 = vpop.f32.mrf.mxu0
  %v681 = vadd.f32 %v608, %v680
  %v682 = vpop.f32.mrf.mxu0
  %v683 = vadd.f32 %v610, %v682
  %684 = vmatmul.bf16.gmra.mxu0 %v303
  %v685 = vpop.f32.mrf.mxu0
  %v686 = vadd.f32 %v613, %v685
  %v687 = vpop.f32.mrf.mxu0
  %v688 = vadd.f32 %v615, %v687
  %689 = vmatmul.bf16.gmra.mxu0 %v307
  %v690 = vpop.f32.mrf.mxu0
  %v691 = vadd.f32 %v618, %v690
  %v692 = vpop.f32.mrf.mxu0
  %v693 = vadd.f32 %v620, %v692
  %694 = vmatmul.bf16.gmra.mxu0 %v311
  %v695 = vpop.f32.mrf.mxu0
  %v696 = vadd.f32 %v623, %v695
  %v697 = vpop.f32.mrf.mxu0
  %v698 = vadd.f32 %v625, %v697
  %699 = vmatmul.bf16.gmra.mxu0 %v315
  %v700 = vpop.f32.mrf.mxu0
  %v701 = vadd.f32 %v628, %v700
  %v702 = vpop.f32.mrf.mxu0
  %v703 = vadd.f32 %v630, %v702
  %704 = vmatmul.bf16.gmra.mxu0 %v319
  %v705 = vpop.f32.mrf.mxu0
  %v706 = vadd.f32 %v633, %v705
  %v707 = vpop.f32.mrf.mxu0
  %v708 = vadd.f32 %v635, %v707
  %709 = vmatmul.bf16.gmra.mxu0 %v323
  %v710 = vpop.f32.mrf.mxu0
  %v711 = vadd.f32 %v638, %v710
  %v712 = vpop.f32.mrf.mxu0
  %v713 = vadd.f32 %v640, %v712
  %714 = vmatmul.bf16.gmra.mxu0 %v327
  %v715 = vpop.f32.mrf.mxu0
  %v716 = vadd.f32 %v643, %v715
  %v717 = vpop.f32.mrf.mxu0
  %v718 = vadd.f32 %v645, %v717
  %719 = vmatmul.bf16.gmra.mxu0 %v331
  %v720 = vpop.f32.mrf.mxu0
  %v721 = vadd.f32 %v648, %v720
  %v722 = vpop.f32.mrf.mxu0
  %723 = vdwg.mxu0
  %724 = vmatpush.bf16.msra.mxu0 %v537
  %725 = vmatpush.bf16.msra.mxu0 %v536
  %726 = vmatpush.bf16.msra.mxu0 %v535
  %727 = vmatpush.bf16.msra.mxu0 %v534
  %728 = vmatpush.bf16.msra.mxu0 %v533
  %729 = vmatpush.bf16.msra.mxu0 %v532
  %730 = vmatpush.bf16.msra.mxu0 %v531
  %731 = vmatpush.bf16.msra.mxu0 %v530
  %732 = vmatmul.bf16.gmra.mxu0 %v284
  %v733 = vpop.f32.mrf.mxu0
  %v734 = vadd.f32 %v661, %v733
  %v735 = vpop.f32.mrf.mxu0
  %v736 = vadd.f32 %v663, %v735
  %737 = vmatmul.bf16.gmra.mxu0 %v288
  %v738 = vpop.f32.mrf.mxu0
  %v739 = vadd.f32 %v666, %v738
  %v740 = vpop.f32.mrf.mxu0
  %v741 = vadd.f32 %v668, %v740
  %742 = vmatmul.bf16.gmra.mxu0 %v292
  %v743 = vpop.f32.mrf.mxu0
  %v744 = vadd.f32 %v671, %v743
  %v745 = vpop.f32.mrf.mxu0
  %v746 = vadd.f32 %v673, %v745
  %747 = vmatmul.bf16.gmra.mxu0 %v296
  %v748 = vpop.f32.mrf.mxu0
  %v749 = vadd.f32 %v676, %v748
  %v750 = vpop.f32.mrf.mxu0
  %v751 = vadd.f32 %v678, %v750
  %752 = vmatmul.bf16.gmra.mxu0 %v300
  %v753 = vpop.f32.mrf.mxu0
  %v754 = vadd.f32 %v681, %v753
  %v755 = vpop.f32.mrf.mxu0
  %v756 = vadd.f32 %v683, %v755
  %757 = vmatmul.bf16.gmra.mxu0 %v304
  %v758 = vpop.f32.mrf.mxu0
  %v759 = vadd.f32 %v686, %v758
  %v760 = vpop.f32.mrf.mxu0
  %v761 = vadd.f32 %v688, %v760
  %762 = vmatmul.bf16.gmra.mxu0 %v308
  %v763 = vpop.f32.mrf.mxu0
  %v764 = vadd.f32 %v691, %v763
  %v765 = vpop.f32.mrf.mxu0
  %v766 = vadd.f32 %v693, %v765
  %767 = vmatmul.bf16.gmra.mxu0 %v312
  %v768 = vpop.f32.mrf.mxu0
  %v769 = vadd.f32 %v696, %v768
  %v770 = vpop.f32.mrf.mxu0
  %v771 = vadd.f32 %v698, %v770
  %772 = vmatmul.bf16.gmra.mxu0 %v316
  %v773 = vpop.f32.mrf.mxu0
  %v774 = vadd.f32 %v701, %v773
  %v775 = vpop.f32.mrf.mxu0
  %v776 = vadd.f32 %v703, %v775
  %777 = vmatmul.bf16.gmra.mxu0 %v320
  %v778 = vpop.f32.mrf.mxu0
  %v779 = vadd.f32 %v706, %v778
  %v780 = vpop.f32.mrf.mxu0
  %v781 = vadd.f32 %v708, %v780
  %782 = vmatmul.bf16.gmra.mxu0 %v324
  %v783 = vpop.f32.mrf.mxu0
  %v784 = vadd.f32 %v711, %v783
  %v785 = vpop.f32.mrf.mxu0
  %v786 = vadd.f32 %v713, %v785
  %787 = vmatmul.bf16.gmra.mxu0 %v328
  %v788 = vpop.f32.mrf.mxu0
  %v789 = vadd.f32 %v716, %v788
  %v790 = vpop.f32.mrf.mxu0
  %v791 = vadd.f32 %v718, %v790
  %792 = vmatmul.bf16.gmra.mxu0 %v332
  %v793 = vpop.f32.mrf.mxu0
  %v794 = vadd.f32 %v721, %v793
  %v795 = vpop.f32.mrf.mxu0
  %796 = vdwg.mxu0
  %797 = vmatpush.bf16.msra.mxu0 %v545
  %798 = vmatpush.bf16.msra.mxu0 %v544
  %799 = vmatpush.bf16.msra.mxu0 %v543
  %800 = vmatpush.bf16.msra.mxu0 %v542
  %801 = vmatpush.bf16.msra.mxu0 %v541
  %802 = vmatpush.bf16.msra.mxu0 %v540
  %803 = vmatpush.bf16.msra.mxu0 %v539
  %804 = vmatpush.bf16.msra.mxu0 %v538
  %805 = vmatmul.bf16.gmra.mxu0 %v285
  %v806 = vpop.f32.mrf.mxu0
  %v807 = vadd.f32 %v734, %v806
  %v808 = vpop.f32.mrf.mxu0
  %v809 = vadd.f32 %v736, %v808
  %810 = vmatmul.bf16.gmra.mxu0 %v289
  %v811 = vpop.f32.mrf.mxu0
  %v812 = vadd.f32 %v739, %v811
  %v813 = vpop.f32.mrf.mxu0
  %v814 = vadd.f32 %v741, %v813
  %815 = vmatmul.bf16.gmra.mxu0 %v293
  %v816 = vpop.f32.mrf.mxu0
  %v817 = vadd.f32 %v744, %v816
  %v818 = vpop.f32.mrf.mxu0
  %v819 = vadd.f32 %v746, %v818
  %820 = vmatmul.bf16.gmra.mxu0 %v297
  %v821 = vpop.f32.mrf.mxu0
  %v822 = vadd.f32 %v749, %v821
  %v823 = vpop.f32.mrf.mxu0
  %v824 = vadd.f32 %v751, %v823
  %825 = vmatmul.bf16.gmra.mxu0 %v301
  %v826 = vpop.f32.mrf.mxu0
  %v827 = vadd.f32 %v754, %v826
  %v828 = vpop.f32.mrf.mxu0
  %v829 = vadd.f32 %v756, %v828
  %830 = vmatmul.bf16.gmra.mxu0 %v305
  %v831 = vpop.f32.mrf.mxu0
  %v832 = vadd.f32 %v759, %v831
  %v833 = vpop.f32.mrf.mxu0
  %v834 = vadd.f32 %v761, %v833
  %835 = vmatmul.bf16.gmra.mxu0 %v309
  %v836 = vpop.f32.mrf.mxu0
  %v837 = vadd.f32 %v764, %v836
  %v838 = vpop.f32.mrf.mxu0
  %v839 = vadd.f32 %v766, %v838
  %840 = vmatmul.bf16.gmra.mxu0 %v313
  %v841 = vpop.f32.mrf.mxu0
  %v842 = vadd.f32 %v769, %v841
  %v843 = vpop.f32.mrf.mxu0
  %v844 = vadd.f32 %v771, %v843
  %845 = vmatmul.bf16.gmra.mxu0 %v317
  %v846 = vpop.f32.mrf.mxu0
  %v847 = vadd.f32 %v774, %v846
  %v848 = vpop.f32.mrf.mxu0
  %v849 = vadd.f32 %v776, %v848
  %850 = vmatmul.bf16.gmra.mxu0 %v321
  %v851 = vpop.f32.mrf.mxu0
  %v852 = vadd.f32 %v779, %v851
  %v853 = vpop.f32.mrf.mxu0
  %v854 = vadd.f32 %v781, %v853
  %855 = vmatmul.bf16.gmra.mxu0 %v325
  %v856 = vpop.f32.mrf.mxu0
  %v857 = vadd.f32 %v784, %v856
  %v858 = vpop.f32.mrf.mxu0
  %v859 = vadd.f32 %v786, %v858
  %860 = vmatmul.bf16.gmra.mxu0 %v329
  %v861 = vpop.f32.mrf.mxu0
  %v862 = vadd.f32 %v789, %v861
  %v863 = vpop.f32.mrf.mxu0
  %v864 = vadd.f32 %v791, %v863
  %865 = vmatmul.bf16.gmra.mxu0 %v333
  %v866 = vpop.f32.mrf.mxu0
  %v867 = vadd.f32 %v794, %v866
  %v868 = vpop.f32.mrf.mxu0
  %869 = vdwg.mxu0
  %v870 = vmax.f32 %v807, 0.0
  %v871 = vmax.f32 %v809, 0.0
  %v872 = vmax.f32 %v812, 0.0
  %v873 = vmax.f32 %v814, 0.0
  %v874 = vmax.f32 %v817, 0.0
  %v875 = vmax.f32 %v819, 0.0
  %v876 = vmax.f32 %v822, 0.0
  %v877 = vmax.f32 %v824, 0.0
  %v878 = vmax.f32 %v827, 0.0
  %v879 = vmax.f32 %v829, 0.0
  %v880 = vmax.f32 %v832, 0.0
  %v881 = vmax.f32 %v834, 0.0
  %v882 = vmax.f32 %v837, 0.0
  %v883 = vmax.f32 %v839, 0.0
  %v884 = vmax.f32 %v842, 0.0
  %v885 = vmax.f32 %v844, 0.0
  %v886 = vmax.f32 %v847, 0.0
  %v887 = vmax.f32 %v849, 0.0
  %v888 = vmax.f32 %v852, 0.0
  %v889 = vmax.f32 %v854, 0.0
  %v890 = vmax.f32 %v857, 0.0
  %v891 = vmax.f32 %v859, 0.0
  %v892 = vmax.f32 %v862, 0.0
  %v893 = vmax.f32 %v864, 0.0
  %v894 = vmax.f32 %v867, 0.0
  %v895 = vpack.c.bf16 %v870, %v870
  %v896 = vpack.c.bf16 %v871, %v871
  %v897 = vpack.c.bf16 %v872, %v872
  %v898 = vpack.c.bf16 %v873, %v873
  %v899 = vpack.c.bf16 %v874, %v874
  %v900 = vpack.c.bf16 %v875, %v875
  %v901 = vpack.c.bf16 %v876, %v876
  %v902 = vpack.c.bf16 %v877, %v877
  %v903 = vpack.c.bf16 %v878, %v878
  %v904 = vpack.c.bf16 %v879, %v879
  %v905 = vpack.c.bf16 %v880, %v880
  %v906 = vpack.c.bf16 %v881, %v881
  %v907 = vpack.c.bf16 %v882, %v882
  %v908 = vpack.c.bf16 %v883, %v883
  %v909 = vpack.c.bf16 %v884, %v884
  %v910 = vpack.c.bf16 %v885, %v885
  %v911 = vpack.c.bf16 %v886, %v886
  %v912 = vpack.c.bf16 %v887, %v887
  %v913 = vpack.c.bf16 %v888, %v888
  %v914 = vpack.c.bf16 %v889, %v889
  %v915 = vpack.c.bf16 %v890, %v890
  %v916 = vpack.c.bf16 %v891, %v891
  %v917 = vpack.c.bf16 %v892, %v892
  %v918 = vpack.c.bf16 %v893, %v893
  %v919 = vpack.c.bf16 %v894, %v894
  %vm920 = vcmask 519168
  %921 = vst.msk [vmem:[%s3] sm:$0xf] %vm920, %v895
  %922 = vst.msk [vmem:[%s3 + $0x4] sm:$0xf] %vm920, %v896
  %923 = vst.msk [vmem:[%s3 + $0x8] sm:$0xf] %vm920, %v897
  %924 = vst.msk [vmem:[%s3 + $0xc] sm:$0xf] %vm920, %v898
  %925 = vst.msk [vmem:[%s3 + $0x10] sm:$0xf] %vm920, %v899
  %926 = vst.msk [vmem:[%s3 + $0x14] sm:$0xf] %vm920, %v900
  %927 = vst.msk [vmem:[%s3 + $0x18] sm:$0xf] %vm920, %v901
  %928 = vst.msk [vmem:[%s3 + $0x1c] sm:$0xf] %vm920, %v902
  %929 = vst.msk [vmem:[%s3 + $0x20] sm:$0xf] %vm920, %v903
  %930 = vst.msk [vmem:[%s3 + $0x24] sm:$0xf] %vm920, %v904
  %931 = vst.msk [vmem:[%s3 + $0x28] sm:$0xf] %vm920, %v905
  %932 = vst.msk [vmem:[%s3 + $0x2c] sm:$0xf] %vm920, %v906
  %933 = vst.msk [vmem:[%s3 + $0x30] sm:$0xf] %vm920, %v907
  %934 = vst.msk [vmem:[%s3 + $0x34] sm:$0xf] %vm920, %v908
  %935 = vst.msk [vmem:[%s3 + $0x38] sm:$0xf] %vm920, %v909
  %936 = vst.msk [vmem:[%s3 + $0x3c] sm:$0xf] %vm920, %v910
  %937 = vst.msk [vmem:[%s3 + $0x40] sm:$0xf] %vm920, %v911
  %938 = vst.msk [vmem:[%s3 + $0x44] sm:$0xf] %vm920, %v912
  %939 = vst.msk [vmem:[%s3 + $0x48] sm:$0xf] %vm920, %v913
  %940 = vst.msk [vmem:[%s3 + $0x4c] sm:$0xf] %vm920, %v914
  %941 = vst.msk [vmem:[%s3 + $0x50] sm:$0xf] %vm920, %v915
  %942 = vst.msk [vmem:[%s3 + $0x54] sm:$0xf] %vm920, %v916
  %943 = vst.msk [vmem:[%s3 + $0x58] sm:$0xf] %vm920, %v917
  %944 = vst.msk [vmem:[%s3 + $0x5c] sm:$0xf] %vm920, %v918
  %vm945 = vcmask 518144
  %946 = vst.msk [vmem:[%s3 + $0x60] sm:$0x7] %vm945, %v919
  // Predicated region
  $region14: #{simple_dqnet_forward.5} parent=0 // pred_check
    _
  $region15: #{simple_dqnet_forward.5} parent=0 // pred_check_branch
    %948 = sbr.rel (0) target = $region17
  $region16: #{simple_dqnet_forward.5} parent=0 // pred_region
    _
  $region17: #{simple_dqnet_forward.5} parent=0 // pred_fallthru
    _
  // Predicated region
  $region18: #{simple_dqnet_forward.5} parent=0 // pred_check
    _
  $region19: #{simple_dqnet_forward.5} parent=0 // pred_check_branch
    %950 = sbr.rel (0) target = $region21
  $region20: #{simple_dqnet_forward.5} parent=0 // pred_region
    _
  $region21: #{simple_dqnet_forward.5} parent=0 // pred_fallthru
    _

// kernel: simple_dqnet_forward.6
$region0: #{simple_dqnet_forward.6}
  #allocation0 [shape = 'u32[]', space=smem, size = 0x4, offset = 0x4, fixed_abs, tag = 'smem constant byte address 0x4 - core index']
  #allocation1 [shape = 'u32[72,128]{1,0:T(1,128)}', space=vmem, size = 0x9000, scoped, tag = 'internal scratch']
  %s0 = inlined_call_operand.vmem [shape: bf16[40,576], index: 0, kind: input, shape index: {}]
  %s1 = inlined_call_operand.vmem [shape: bf16[576,64], index: 1, kind: input, shape index: {}]
  %s2 = inlined_call_operand.vmem [shape: f32[1,64], index: 2, kind: input, shape index: {}]
  %s3 = inlined_call_operand.vmem [shape: bf16[40,64], index: 3, kind: output, shape index: {}]
  %s4 = sld [smem:[#allocation0]]
  $region22: #{simple_dqnet_forward.6} parent=0
    _
  %s6 = ssub.s32 1, %s4
  %s7 = scalar_select 0, %s6, %s4
  // Predicated region
  $region2: #{simple_dqnet_forward.6} parent=0 // pred_check
    _
  $region3: #{simple_dqnet_forward.6} parent=0 // pred_check_branch
    %9 = sbr.rel (0) target = $region5
  $region4: #{simple_dqnet_forward.6} parent=0 // pred_region
    _
  $region5: #{simple_dqnet_forward.6} parent=0 // pred_fallthru
    _
  // Predicated region
  $region6: #{simple_dqnet_forward.6} parent=0 // pred_check
    _
  $region7: #{simple_dqnet_forward.6} parent=0 // pred_check_branch
    %11 = sbr.rel (0) target = $region9
  $region8: #{simple_dqnet_forward.6} parent=0 // pred_region
    _
  $region9: #{simple_dqnet_forward.6} parent=0 // pred_fallthru
    _
  // Predicated region
  $region10: #{simple_dqnet_forward.6} parent=0 // pred_check
    _
  $region11: #{simple_dqnet_forward.6} parent=0 // pred_check_branch
    %13 = sbr.rel (0) target = $region13
  $region12: #{simple_dqnet_forward.6} parent=0 // pred_region
    _
  $region13: #{simple_dqnet_forward.6} parent=0 // pred_fallthru
    _
  %v15 = vld [vmem:[%s0] sm:$0xff]
  %v16 = vld [vmem:[%s0 + $0x8] sm:$0xff]
  %v17 = vld [vmem:[%s0 + $0x10] sm:$0xf]
  %v18 = vld [vmem:[%s0 + $0x14] sm:$0xff]
  %v19 = vld [vmem:[%s0 + $0x1c] sm:$0xff]
  %v20 = vld [vmem:[%s0 + $0x24] sm:$0xf]
  %v21 = vld [vmem:[%s0 + $0x28] sm:$0xff]
  %v22 = vld [vmem:[%s0 + $0x30] sm:$0xff]
  %v23 = vld [vmem:[%s0 + $0x38] sm:$0xf]
  %v24 = vld [vmem:[%s0 + $0x3c] sm:$0xff]
  %v25 = vld [vmem:[%s0 + $0x44] sm:$0xff]
  %v26 = vld [vmem:[%s0 + $0x4c] sm:$0xf]
  %v27 = vld [vmem:[%s0 + $0x50] sm:$0xff]
  %v28 = vld [vmem:[%s0 + $0x58] sm:$0xff]
  %v29 = vld [vmem:[%s0 + $0x60] sm:$0xf]
  %v30 = vld [vmem:[%s1] sm:$0xf]
  %v31 = vld [vmem:[%s1 + $0x4] sm:$0xf]
  %v32 = vld [vmem:[%s1 + $0x8] sm:$0xf]
  %v33 = vld [vmem:[%s1 + $0xc] sm:$0xf]
  %v34 = vld [vmem:[%s1 + $0x10] sm:$0xf]
  %v35 = vld [vmem:[%s1 + $0x14] sm:$0xf]
  %v36 = vld [vmem:[%s1 + $0x18] sm:$0xf]
  %v37 = vld [vmem:[%s1 + $0x1c] sm:$0xf]
  %v38 = vld [vmem:[%s1 + $0x20] sm:$0xf]
  %v39 = vld [vmem:[%s1 + $0x24] sm:$0xf]
  %v40 = vld [vmem:[%s1 + $0x28] sm:$0xf]
  %v41 = vld [vmem:[%s1 + $0x2c] sm:$0xf]
  %v42 = vld [vmem:[%s1 + $0x30] sm:$0xf]
  %v43 = vld [vmem:[%s1 + $0x34] sm:$0xf]
  %v44 = vld [vmem:[%s1 + $0x38] sm:$0xf]
  %v45 = vld [vmem:[%s1 + $0x3c] sm:$0xf]
  %v46 = vld [vmem:[%s1 + $0x40] sm:$0xf]
  %v47 = vld [vmem:[%s1 + $0x44] sm:$0xf]
  %v48 = vld [vmem:[%s1 + $0x48] sm:$0xf]
  %v49 = vld [vmem:[%s1 + $0x4c] sm:$0xf]
  %v50 = vld [vmem:[%s1 + $0x50] sm:$0xf]
  %v51 = vld [vmem:[%s1 + $0x54] sm:$0xf]
  %v52 = vld [vmem:[%s1 + $0x58] sm:$0xf]
  %v53 = vld [vmem:[%s1 + $0x5c] sm:$0xf]
  %v54 = vld [vmem:[%s1 + $0x60] sm:$0xf]
  %v55 = vld [vmem:[%s1 + $0x64] sm:$0xf]
  %v56 = vld [vmem:[%s1 + $0x68] sm:$0xf]
  %v57 = vld [vmem:[%s1 + $0x6c] sm:$0xf]
  %v58 = vld [vmem:[%s1 + $0x70] sm:$0xf]
  %v59 = vld [vmem:[%s1 + $0x74] sm:$0xf]
  %v60 = vld [vmem:[%s1 + $0x78] sm:$0xf]
  %v61 = vld [vmem:[%s1 + $0x7c] sm:$0xf]
  %v62 = vld [vmem:[%s1 + $0x80] sm:$0xf]
  %v63 = vld [vmem:[%s1 + $0x84] sm:$0xf]
  %v64 = vld [vmem:[%s1 + $0x88] sm:$0xf]
  %v65 = vld [vmem:[%s1 + $0x8c] sm:$0xf]
  %v66 = vld [vmem:[%s1 + $0x90] sm:$0xf]
  %v67 = vld [vmem:[%s1 + $0x94] sm:$0xf]
  %v68 = vld [vmem:[%s1 + $0x98] sm:$0xf]
  %v69 = vld [vmem:[%s1 + $0x9c] sm:$0xf]
  %v70 = vld [vmem:[%s1 + $0xa0] sm:$0xf]
  %v71 = vld [vmem:[%s1 + $0xa4] sm:$0xf]
  %v72 = vld [vmem:[%s1 + $0xa8] sm:$0xf]
  %v73 = vld [vmem:[%s1 + $0xac] sm:$0xf]
  %v74 = vld [vmem:[%s1 + $0xb0] sm:$0xf]
  %v75 = vld [vmem:[%s1 + $0xb4] sm:$0xf]
  %v76 = vld [vmem:[%s1 + $0xb8] sm:$0xf]
  %v77 = vld [vmem:[%s1 + $0xbc] sm:$0xf]
  %v78 = vld [vmem:[%s1 + $0xc0] sm:$0xf]
  %v79 = vld [vmem:[%s1 + $0xc4] sm:$0xf]
  %v80 = vld [vmem:[%s1 + $0xc8] sm:$0xf]
  %v81 = vld [vmem:[%s1 + $0xcc] sm:$0xf]
  %v82 = vld [vmem:[%s1 + $0xd0] sm:$0xf]
  %v83 = vld [vmem:[%s1 + $0xd4] sm:$0xf]
  %v84 = vld [vmem:[%s1 + $0xd8] sm:$0xf]
  %v85 = vld [vmem:[%s1 + $0xdc] sm:$0xf]
  %v86 = vld [vmem:[%s1 + $0xe0] sm:$0xf]
  %v87 = vld [vmem:[%s1 + $0xe4] sm:$0xf]
  %v88 = vld [vmem:[%s1 + $0xe8] sm:$0xf]
  %v89 = vld [vmem:[%s1 + $0xec] sm:$0xf]
  %v90 = vld [vmem:[%s1 + $0xf0] sm:$0xf]
  %v91 = vld [vmem:[%s1 + $0xf4] sm:$0xf]
  %v92 = vld [vmem:[%s1 + $0xf8] sm:$0xf]
  %v93 = vld [vmem:[%s1 + $0xfc] sm:$0xf]
  %v94 = vld [vmem:[%s1 + $0x100] sm:$0xf]
  %v95 = vld [vmem:[%s1 + $0x104] sm:$0xf]
  %v96 = vld [vmem:[%s1 + $0x108] sm:$0xf]
  %v97 = vld [vmem:[%s1 + $0x10c] sm:$0xf]
  %v98 = vld [vmem:[%s1 + $0x110] sm:$0xf]
  %v99 = vld [vmem:[%s1 + $0x114] sm:$0xf]
  %v100 = vld [vmem:[%s1 + $0x118] sm:$0xf]
  %v101 = vld [vmem:[%s1 + $0x11c] sm:$0xf]
  %v102 = vld [vmem:[%s2] sm:$0x1]
  %v104 = vperm.slane %v102, 0
  %v121 = vunpack.c.l.b16 %v15
  %v122 = vunpack.c.h.b16 %v15
  %v123 = vunpack.c.l.b16 %v16
  %v124 = vunpack.c.h.b16 %v16
  %v125 = vunpack.c.l.b16 %v17
  %v126 = vunpack.c.l.b16 %v18
  %v127 = vunpack.c.h.b16 %v18
  %v128 = vunpack.c.l.b16 %v19
  %v129 = vunpack.c.h.b16 %v19
  %v130 = vunpack.c.l.b16 %v20
  %v131 = vunpack.c.l.b16 %v21
  %v132 = vunpack.c.h.b16 %v21
  %v133 = vunpack.c.l.b16 %v22
  %v134 = vunpack.c.h.b16 %v22
  %v135 = vunpack.c.l.b16 %v23
  %v136 = vunpack.c.l.b16 %v24
  %v137 = vunpack.c.h.b16 %v24
  %v138 = vunpack.c.l.b16 %v25
  %v139 = vunpack.c.h.b16 %v25
  %v140 = vunpack.c.l.b16 %v26
  %v141 = vunpack.c.l.b16 %v27
  %v142 = vunpack.c.h.b16 %v27
  %v143 = vunpack.c.l.b16 %v28
  %v144 = vunpack.c.h.b16 %v28
  %v145 = vunpack.c.l.b16 %v29
  %v146 = vpack.c.b16 %v126, %v121
  %v147 = vpack.c.b16 %v127, %v122
  %v148 = vpack.c.b16 %v128, %v123
  %v149 = vpack.c.b16 %v129, %v124
  %v150 = vpack.c.b16 %v130, %v125
  %v151 = vpack.c.b16 %v136, %v131
  %v152 = vpack.c.b16 %v137, %v132
  %v153 = vpack.c.b16 %v138, %v133
  %v154 = vpack.c.b16 %v139, %v134
  %v155 = vpack.c.b16 %v140, %v135
  %v156 = vpack.c.b16 %v141, %v141
  %v157 = vpack.c.b16 %v142, %v142
  %v158 = vpack.c.b16 %v143, %v143
  %v159 = vpack.c.b16 %v144, %v144
  %v160 = vpack.c.b16 %v145, %v145
  %v245 = vunpack.c.l.b16 %v30
  %v246 = vunpack.c.l.b16 %v31
  %v247 = vunpack.c.l.b16 %v32
  %v248 = vunpack.c.l.b16 %v33
  %v249 = vunpack.c.l.b16 %v34
  %v250 = vunpack.c.l.b16 %v35
  %v251 = vunpack.c.l.b16 %v36
  %v252 = vunpack.c.l.b16 %v37
  %v253 = vunpack.c.l.b16 %v38
  %v254 = vunpack.c.l.b16 %v39
  %v255 = vunpack.c.l.b16 %v40
  %v256 = vunpack.c.l.b16 %v41
  %v257 = vunpack.c.l.b16 %v42
  %v258 = vunpack.c.l.b16 %v43
  %v259 = vunpack.c.l.b16 %v44
  %v260 = vunpack.c.l.b16 %v45
  %v261 = vunpack.c.l.b16 %v46
  %v262 = vunpack.c.l.b16 %v47
  %v263 = vunpack.c.l.b16 %v48
  %v264 = vunpack.c.l.b16 %v49
  %v265 = vunpack.c.l.b16 %v50
  %v266 = vunpack.c.l.b16 %v51
  %v267 = vunpack.c.l.b16 %v52
  %v268 = vunpack.c.l.b16 %v53
  %v269 = vunpack.c.l.b16 %v54
  %v270 = vunpack.c.l.b16 %v55
  %v271 = vunpack.c.l.b16 %v56
  %v272 = vunpack.c.l.b16 %v57
  %v273 = vunpack.c.l.b16 %v58
  %v274 = vunpack.c.l.b16 %v59
  %v275 = vunpack.c.l.b16 %v60
  %v276 = vunpack.c.l.b16 %v61
  %v277 = vunpack.c.l.b16 %v62
  %v278 = vunpack.c.l.b16 %v63
  %v279 = vunpack.c.l.b16 %v64
  %v280 = vunpack.c.l.b16 %v65
  %v281 = vunpack.c.l.b16 %v66
  %v282 = vunpack.c.l.b16 %v67
  %v283 = vunpack.c.l.b16 %v68
  %v284 = vunpack.c.l.b16 %v69
  %v285 = vunpack.c.l.b16 %v70
  %v286 = vunpack.c.l.b16 %v71
  %v287 = vunpack.c.l.b16 %v72
  %v288 = vunpack.c.l.b16 %v73
  %v289 = vunpack.c.l.b16 %v74
  %v290 = vunpack.c.l.b16 %v75
  %v291 = vunpack.c.l.b16 %v76
  %v292 = vunpack.c.l.b16 %v77
  %v293 = vunpack.c.l.b16 %v78
  %v294 = vunpack.c.l.b16 %v79
  %v295 = vunpack.c.l.b16 %v80
  %v296 = vunpack.c.l.b16 %v81
  %v297 = vunpack.c.l.b16 %v82
  %v298 = vunpack.c.l.b16 %v83
  %v299 = vunpack.c.l.b16 %v84
  %v300 = vunpack.c.l.b16 %v85
  %v301 = vunpack.c.l.b16 %v86
  %v302 = vunpack.c.l.b16 %v87
  %v303 = vunpack.c.l.b16 %v88
  %v304 = vunpack.c.l.b16 %v89
  %v305 = vunpack.c.l.b16 %v90
  %v306 = vunpack.c.l.b16 %v91
  %v307 = vunpack.c.l.b16 %v92
  %v308 = vunpack.c.l.b16 %v93
  %v309 = vunpack.c.l.b16 %v94
  %v310 = vunpack.c.l.b16 %v95
  %v311 = vunpack.c.l.b16 %v96
  %v312 = vunpack.c.l.b16 %v97
  %v313 = vunpack.c.l.b16 %v98
  %v314 = vunpack.c.l.b16 %v99
  %v315 = vunpack.c.l.b16 %v100
  %v316 = vunpack.c.l.b16 %v101
  %v317 = vpack.c.b16 %v246, %v245
  %v318 = vpack.c.b16 %v248, %v247
  %v319 = vpack.c.b16 %v250, %v249
  %v320 = vpack.c.b16 %v252, %v251
  %v321 = vpack.c.b16 %v254, %v253
  %v322 = vpack.c.b16 %v256, %v255
  %v323 = vpack.c.b16 %v258, %v257
  %v324 = vpack.c.b16 %v260, %v259
  %v325 = vpack.c.b16 %v262, %v261
  %v326 = vpack.c.b16 %v264, %v263
  %v327 = vpack.c.b16 %v266, %v265
  %v328 = vpack.c.b16 %v268, %v267
  %v329 = vpack.c.b16 %v270, %v269
  %v330 = vpack.c.b16 %v272, %v271
  %v331 = vpack.c.b16 %v274, %v273
  %v332 = vpack.c.b16 %v276, %v275
  %v333 = vpack.c.b16 %v278, %v277
  %v334 = vpack.c.b16 %v280, %v279
  %v335 = vpack.c.b16 %v282, %v281
  %v336 = vpack.c.b16 %v284, %v283
  %v337 = vpack.c.b16 %v286, %v285
  %v338 = vpack.c.b16 %v288, %v287
  %v339 = vpack.c.b16 %v290, %v289
  %v340 = vpack.c.b16 %v292, %v291
  %v341 = vpack.c.b16 %v294, %v293
  %v342 = vpack.c.b16 %v296, %v295
  %v343 = vpack.c.b16 %v298, %v297
  %v344 = vpack.c.b16 %v300, %v299
  %v345 = vpack.c.b16 %v302, %v301
  %v346 = vpack.c.b16 %v304, %v303
  %v347 = vpack.c.b16 %v306, %v305
  %v348 = vpack.c.b16 %v308, %v307
  %v349 = vpack.c.b16 %v310, %v309
  %v350 = vpack.c.b16 %v312, %v311
  %v351 = vpack.c.b16 %v314, %v313
  %v352 = vpack.c.b16 %v316, %v315
  %vm389 = vcmask 523264
  %v391 = vsel %vm389, %v150, 0
  %v394 = vsel %vm389, %v155, 0
  %v397 = vsel %vm389, %v160, 0
  %399 = vmatpush.bf16.msra.mxu0 %v324
  %400 = vmatpush.bf16.msra.mxu0 %v323
  %401 = vmatpush.bf16.msra.mxu0 %v322
  %402 = vmatpush.bf16.msra.mxu0 %v321
  %403 = vmatpush.bf16.msra.mxu0 %v320
  %404 = vmatpush.bf16.msra.mxu0 %v319
  %405 = vmatpush.bf16.msra.mxu0 %v318
  %406 = vmatpush.bf16.msra.mxu0 %v317
  %407 = vmatmul.bf16.gmra.mxu0 %v146
  %v408 = vpop.f32.mrf.mxu0
  %v409 = vadd.f32 %v104, %v408
  %v410 = vpop.f32.mrf.mxu0
  %v411 = vadd.f32 %v104, %v410
  %412 = vmatmul.bf16.gmra.mxu0 %v151
  %v413 = vpop.f32.mrf.mxu0
  %v414 = vadd.f32 %v104, %v413
  %v415 = vpop.f32.mrf.mxu0
  %v416 = vadd.f32 %v104, %v415
  %417 = vmatmul.bf16.gmra.mxu0 %v156
  %v418 = vpop.f32.mrf.mxu0
  %v419 = vadd.f32 %v104, %v418
  %v420 = vpop.f32.mrf.mxu0
  %421 = vdwg.mxu0
  %422 = vmatpush.bf16.msra.mxu0 %v332
  %423 = vmatpush.bf16.msra.mxu0 %v331
  %424 = vmatpush.bf16.msra.mxu0 %v330
  %425 = vmatpush.bf16.msra.mxu0 %v329
  %426 = vmatpush.bf16.msra.mxu0 %v328
  %427 = vmatpush.bf16.msra.mxu0 %v327
  %428 = vmatpush.bf16.msra.mxu0 %v326
  %429 = vmatpush.bf16.msra.mxu0 %v325
  %430 = vmatmul.bf16.gmra.mxu0 %v147
  %v431 = vpop.f32.mrf.mxu0
  %v432 = vadd.f32 %v409, %v431
  %v433 = vpop.f32.mrf.mxu0
  %v434 = vadd.f32 %v411, %v433
  %435 = vmatmul.bf16.gmra.mxu0 %v152
  %v436 = vpop.f32.mrf.mxu0
  %v437 = vadd.f32 %v414, %v436
  %v438 = vpop.f32.mrf.mxu0
  %v439 = vadd.f32 %v416, %v438
  %440 = vmatmul.bf16.gmra.mxu0 %v157
  %v441 = vpop.f32.mrf.mxu0
  %v442 = vadd.f32 %v419, %v441
  %v443 = vpop.f32.mrf.mxu0
  %444 = vdwg.mxu0
  %445 = vmatpush.bf16.msra.mxu0 %v340
  %446 = vmatpush.bf16.msra.mxu0 %v339
  %447 = vmatpush.bf16.msra.mxu0 %v338
  %448 = vmatpush.bf16.msra.mxu0 %v337
  %449 = vmatpush.bf16.msra.mxu0 %v336
  %450 = vmatpush.bf16.msra.mxu0 %v335
  %451 = vmatpush.bf16.msra.mxu0 %v334
  %452 = vmatpush.bf16.msra.mxu0 %v333
  %453 = vmatmul.bf16.gmra.mxu0 %v148
  %v454 = vpop.f32.mrf.mxu0
  %v455 = vadd.f32 %v432, %v454
  %v456 = vpop.f32.mrf.mxu0
  %v457 = vadd.f32 %v434, %v456
  %458 = vmatmul.bf16.gmra.mxu0 %v153
  %v459 = vpop.f32.mrf.mxu0
  %v460 = vadd.f32 %v437, %v459
  %v461 = vpop.f32.mrf.mxu0
  %v462 = vadd.f32 %v439, %v461
  %463 = vmatmul.bf16.gmra.mxu0 %v158
  %v464 = vpop.f32.mrf.mxu0
  %v465 = vadd.f32 %v442, %v464
  %v466 = vpop.f32.mrf.mxu0
  %467 = vdwg.mxu0
  %468 = vmatpush.bf16.msra.mxu0 %v348
  %469 = vmatpush.bf16.msra.mxu0 %v347
  %470 = vmatpush.bf16.msra.mxu0 %v346
  %471 = vmatpush.bf16.msra.mxu0 %v345
  %472 = vmatpush.bf16.msra.mxu0 %v344
  %473 = vmatpush.bf16.msra.mxu0 %v343
  %474 = vmatpush.bf16.msra.mxu0 %v342
  %475 = vmatpush.bf16.msra.mxu0 %v341
  %476 = vmatmul.bf16.gmra.mxu0 %v149
  %v477 = vpop.f32.mrf.mxu0
  %v478 = vadd.f32 %v455, %v477
  %v479 = vpop.f32.mrf.mxu0
  %v480 = vadd.f32 %v457, %v479
  %481 = vmatmul.bf16.gmra.mxu0 %v154
  %v482 = vpop.f32.mrf.mxu0
  %v483 = vadd.f32 %v460, %v482
  %v484 = vpop.f32.mrf.mxu0
  %v485 = vadd.f32 %v462, %v484
  %486 = vmatmul.bf16.gmra.mxu0 %v159
  %v487 = vpop.f32.mrf.mxu0
  %v488 = vadd.f32 %v465, %v487
  %v489 = vpop.f32.mrf.mxu0
  %490 = vdwg.mxu0
  %491 = vmatpush.bf16.msra.mxu0 0
  %492 = vmatpush.bf16.msra.mxu0 0
  %493 = vmatpush.bf16.msra.mxu0 0
  %494 = vmatpush.bf16.msra.mxu0 0
  %495 = vmatpush.bf16.msra.mxu0 %v352
  %496 = vmatpush.bf16.msra.mxu0 %v351
  %497 = vmatpush.bf16.msra.mxu0 %v350
  %498 = vmatpush.bf16.msra.mxu0 %v349
  %499 = vmatmul.bf16.gmra.mxu0 %v391
  %v500 = vpop.f32.mrf.mxu0
  %v501 = vadd.f32 %v478, %v500
  %v502 = vpop.f32.mrf.mxu0
  %v503 = vadd.f32 %v480, %v502
  %504 = vmatmul.bf16.gmra.mxu0 %v394
  %v505 = vpop.f32.mrf.mxu0
  %v506 = vadd.f32 %v483, %v505
  %v507 = vpop.f32.mrf.mxu0
  %v508 = vadd.f32 %v485, %v507
  %509 = vmatmul.bf16.gmra.mxu0 %v397
  %v510 = vpop.f32.mrf.mxu0
  %v511 = vadd.f32 %v488, %v510
  %v512 = vpop.f32.mrf.mxu0
  %513 = vdwg.mxu0
  %v514 = vmax.f32 %v501, 0.0
  %v515 = vmax.f32 %v503, 0.0
  %v516 = vmax.f32 %v506, 0.0
  %v517 = vmax.f32 %v508, 0.0
  %v518 = vmax.f32 %v511, 0.0
  %v519 = vpack.c.bf16 %v514, %v514
  %v520 = vpack.c.bf16 %v515, %v515
  %v521 = vpack.c.bf16 %v516, %v516
  %v522 = vpack.c.bf16 %v517, %v517
  %v523 = vpack.c.bf16 %v518, %v518
  %vm524 = vcmask 519168
  %525 = vst.msk [vmem:[%s3] sm:$0xf] %vm524, %v519
  %526 = vst.msk [vmem:[%s3 + $0x4] sm:$0xf] %vm524, %v520
  %527 = vst.msk [vmem:[%s3 + $0x8] sm:$0xf] %vm524, %v521
  %528 = vst.msk [vmem:[%s3 + $0xc] sm:$0xf] %vm524, %v522
  %529 = vst.msk [vmem:[%s3 + $0x10] sm:$0xf] %vm524, %v523
  // Predicated region
  $region14: #{simple_dqnet_forward.6} parent=0 // pred_check
    _
  $region15: #{simple_dqnet_forward.6} parent=0 // pred_check_branch
    %531 = sbr.rel (0) target = $region17
  $region16: #{simple_dqnet_forward.6} parent=0 // pred_region
    _
  $region17: #{simple_dqnet_forward.6} parent=0 // pred_fallthru
    _
  // Predicated region
  $region18: #{simple_dqnet_forward.6} parent=0 // pred_check
    _
  $region19: #{simple_dqnet_forward.6} parent=0 // pred_check_branch
    %533 = sbr.rel (0) target = $region21
  $region20: #{simple_dqnet_forward.6} parent=0 // pred_region
    _
  $region21: #{simple_dqnet_forward.6} parent=0 // pred_fallthru
    _

// kernel: simple_dqnet_forward.7
$region0: #{simple_dqnet_forward.7}
  #allocation0 [shape = 'u32[]', space=smem, size = 0x4, offset = 0x4, fixed_abs, tag = 'smem constant byte address 0x4 - core index']
  #allocation1 [shape = 'u32[72,128]{1,0:T(1,128)}', space=vmem, size = 0x9000, scoped, tag = 'internal scratch']
  %s0 = inlined_call_operand.vmem [shape: bf16[2,1280], index: 0, kind: input, shape index: {}]
  %s1 = inlined_call_operand.vmem [shape: bf16[1280,512], index: 1, kind: input, shape index: {}]
  %s2 = inlined_call_operand.vmem [shape: f32[1,512], index: 2, kind: input, shape index: {}]
  %s3 = inlined_call_operand.vmem [shape: bf16[512,6], index: 3, kind: input, shape index: {}]
  %s4 = inlined_call_operand.vmem [shape: f32[1,6], index: 4, kind: input, shape index: {}]
  %s5 = inlined_call_operand.hbm [shape: f32[2,6], index: 5, kind: output, shape index: {}]
  %s6 = sld [smem:[#allocation0]]
  $region30: #{simple_dqnet_forward.7} parent=0
    _
  %s8 = ssub.s32 1, %s6
  %s9 = scalar_select 0, %s8, %s6
  $region1: #{simple_dqnet_forward.7} parent=0
    #allocation2 [shape = 'u8[1024]{0}', space=vmem, size = 0x400, scoped, tag = 'output window, operand 0, single buffered']
    #allocation3 [shape = 's32[1]{0}', space=sflag, size = 0x4, scoped, tag = 'scoped memory for simple_dqnet_forward.7']
    %10 = vsyncpa [#allocation3], 0
    // Predicated region
    $region2: #{simple_dqnet_forward.7} parent=1 // pred_check
      _
    $region3: #{simple_dqnet_forward.7} parent=1 // pred_check_branch
      %12 = sbr.rel (0) target = $region5
    $region4: #{simple_dqnet_forward.7} parent=1 // pred_region
      _
    $region5: #{simple_dqnet_forward.7} parent=1 // pred_fallthru
      _
    // Predicated region
    $region6: #{simple_dqnet_forward.7} parent=1 // pred_check
      _
    $region7: #{simple_dqnet_forward.7} parent=1 // pred_check_branch
      %14 = sbr.rel (0) target = $region9
    $region8: #{simple_dqnet_forward.7} parent=1 // pred_region
      _
    $region9: #{simple_dqnet_forward.7} parent=1 // pred_fallthru
      _
    // Predicated region
    $region10: #{simple_dqnet_forward.7} parent=1 // pred_check
      _
    $region11: #{simple_dqnet_forward.7} parent=1 // pred_check_branch
      %16 = sbr.rel (0) target = $region13
    $region12: #{simple_dqnet_forward.7} parent=1 // pred_region
      _
    $region13: #{simple_dqnet_forward.7} parent=1 // pred_fallthru
      _
    // Predicated region
    $region14: #{simple_dqnet_forward.7} parent=1 // pred_check
      _
    $region15: #{simple_dqnet_forward.7} parent=1 // pred_check_branch
      %18 = sbr.rel (0) target = $region17
    $region16: #{simple_dqnet_forward.7} parent=1 // pred_region
      _
    $region17: #{simple_dqnet_forward.7} parent=1 // pred_fallthru
      _
    // Predicated region
    $region18: #{simple_dqnet_forward.7} parent=1 // pred_check
      _
    $region19: #{simple_dqnet_forward.7} parent=1 // pred_check_branch
      %20 = sbr.rel (0) target = $region21
    $region20: #{simple_dqnet_forward.7} parent=1 // pred_region
      _
    $region21: #{simple_dqnet_forward.7} parent=1 // pred_fallthru
      _
    %v21 = vld [vmem:[%s0] sm:$0xff]
    %v22 = vld [vmem:[%s0 + $0x8] sm:$0x3]
    %v23 = vld [vmem:[%s1] sm:$0xff]
    %v24 = vld [vmem:[%s1 + $0x8] sm:$0xff]
    %v25 = vld [vmem:[%s1 + $0x10] sm:$0xff]
    %v26 = vld [vmem:[%s1 + $0x18] sm:$0xff]
    %v27 = vld [vmem:[%s1 + $0x20] sm:$0xff]
    %v28 = vld [vmem:[%s1 + $0x28] sm:$0xff]
    %v29 = vld [vmem:[%s1 + $0x30] sm:$0xff]
    %v30 = vld [vmem:[%s1 + $0x38] sm:$0xff]
    %v31 = vld [vmem:[%s1 + $0x40] sm:$0xff]
    %v32 = vld [vmem:[%s1 + $0x48] sm:$0xff]
    %v33 = vld [vmem:[%s1 + $0x50] sm:$0xff]
    %v34 = vld [vmem:[%s1 + $0x58] sm:$0xff]
    %v35 = vld [vmem:[%s1 + $0x60] sm:$0xff]
    %v36 = vld [vmem:[%s1 + $0x68] sm:$0xff]
    %v37 = vld [vmem:[%s1 + $0x70] sm:$0xff]
    %v38 = vld [vmem:[%s1 + $0x78] sm:$0xff]
    %v39 = vld [vmem:[%s1 + $0x80] sm:$0xff]
    %v40 = vld [vmem:[%s1 + $0x88] sm:$0xff]
    %v41 = vld [vmem:[%s1 + $0x90] sm:$0xff]
    %v42 = vld [vmem:[%s1 + $0x98] sm:$0xff]
    %v43 = vld [vmem:[%s1 + $0xa0] sm:$0xff]
    %v44 = vld [vmem:[%s1 + $0xa8] sm:$0xff]
    %v45 = vld [vmem:[%s1 + $0xb0] sm:$0xff]
    %v46 = vld [vmem:[%s1 + $0xb8] sm:$0xff]
    %v47 = vld [vmem:[%s1 + $0xc0] sm:$0xff]
    %v48 = vld [vmem:[%s1 + $0xc8] sm:$0xff]
    %v49 = vld [vmem:[%s1 + $0xd0] sm:$0xff]
    %v50 = vld [vmem:[%s1 + $0xd8] sm:$0xff]
    %v51 = vld [vmem:[%s1 + $0xe0] sm:$0xff]
    %v52 = vld [vmem:[%s1 + $0xe8] sm:$0xff]
    %v53 = vld [vmem:[%s1 + $0xf0] sm:$0xff]
    %v54 = vld [vmem:[%s1 + $0xf8] sm:$0xff]
    %v55 = vld [vmem:[%s1 + $0x100] sm:$0xff]
    %v56 = vld [vmem:[%s1 + $0x108] sm:$0xff]
    %v57 = vld [vmem:[%s1 + $0x110] sm:$0xff]
    %v58 = vld [vmem:[%s1 + $0x118] sm:$0xff]
    %v59 = vld [vmem:[%s1 + $0x120] sm:$0xff]
    %v60 = vld [vmem:[%s1 + $0x128] sm:$0xff]
    %v61 = vld [vmem:[%s1 + $0x130] sm:$0xff]
    %v62 = vld [vmem:[%s1 + $0x138] sm:$0xff]
    %v63 = vld [vmem:[%s1 + $0x140] sm:$0xff]
    %v64 = vld [vmem:[%s1 + $0x148] sm:$0xff]
    %v65 = vld [vmem:[%s1 + $0x150] sm:$0xff]
    %v66 = vld [vmem:[%s1 + $0x158] sm:$0xff]
    %v67 = vld [vmem:[%s1 + $0x160] sm:$0xff]
    %v68 = vld [vmem:[%s1 + $0x168] sm:$0xff]
    %v69 = vld [vmem:[%s1 + $0x170] sm:$0xff]
    %v70 = vld [vmem:[%s1 + $0x178] sm:$0xff]
    %v71 = vld [vmem:[%s1 + $0x180] sm:$0xff]
    %v72 = vld [vmem:[%s1 + $0x188] sm:$0xff]
    %v73 = vld [vmem:[%s1 + $0x190] sm:$0xff]
    %v74 = vld [vmem:[%s1 + $0x198] sm:$0xff]
    %v75 = vld [vmem:[%s1 + $0x1a0] sm:$0xff]
    %v76 = vld [vmem:[%s1 + $0x1a8] sm:$0xff]
    %v77 = vld [vmem:[%s1 + $0x1b0] sm:$0xff]
    %v78 = vld [vmem:[%s1 + $0x1b8] sm:$0xff]
    %v79 = vld [vmem:[%s1 + $0x1c0] sm:$0xff]
    %v80 = vld [vmem:[%s1 + $0x1c8] sm:$0xff]
    %v81 = vld [vmem:[%s1 + $0x1d0] sm:$0xff]
    %v82 = vld [vmem:[%s1 + $0x1d8] sm:$0xff]
    %v83 = vld [vmem:[%s1 + $0x1e0] sm:$0xff]
    %v84 = vld [vmem:[%s1 + $0x1e8] sm:$0xff]
    %v85 = vld [vmem:[%s1 + $0x1f0] sm:$0xff]
    %v86 = vld [vmem:[%s1 + $0x1f8] sm:$0xff]
    %v87 = vld [vmem:[%s1 + $0x200] sm:$0xff]
    %v88 = vld [vmem:[%s1 + $0x208] sm:$0xff]
    %v89 = vld [vmem:[%s1 + $0x210] sm:$0xff]
    %v90 = vld [vmem:[%s1 + $0x218] sm:$0xff]
    %v91 = vld [vmem:[%s1 + $0x220] sm:$0xff]
    %v92 = vld [vmem:[%s1 + $0x228] sm:$0xff]
    %v93 = vld [vmem:[%s1 + $0x230] sm:$0xff]
    %v94 = vld [vmem:[%s1 + $0x238] sm:$0xff]
    %v95 = vld [vmem:[%s1 + $0x240] sm:$0xff]
    %v96 = vld [vmem:[%s1 + $0x248] sm:$0xff]
    %v97 = vld [vmem:[%s1 + $0x250] sm:$0xff]
    %v98 = vld [vmem:[%s1 + $0x258] sm:$0xff]
    %v99 = vld [vmem:[%s1 + $0x260] sm:$0xff]
    %v100 = vld [vmem:[%s1 + $0x268] sm:$0xff]
    %v101 = vld [vmem:[%s1 + $0x270] sm:$0xff]
    %v102 = vld [vmem:[%s1 + $0x278] sm:$0xff]
    %v103 = vld [vmem:[%s1 + $0x280] sm:$0xff]
    %v104 = vld [vmem:[%s1 + $0x288] sm:$0xff]
    %v105 = vld [vmem:[%s1 + $0x290] sm:$0xff]
    %v106 = vld [vmem:[%s1 + $0x298] sm:$0xff]
    %v107 = vld [vmem:[%s1 + $0x2a0] sm:$0xff]
    %v108 = vld [vmem:[%s1 + $0x2a8] sm:$0xff]
    %v109 = vld [vmem:[%s1 + $0x2b0] sm:$0xff]
    %v110 = vld [vmem:[%s1 + $0x2b8] sm:$0xff]
    %v111 = vld [vmem:[%s1 + $0x2c0] sm:$0xff]
    %v112 = vld [vmem:[%s1 + $0x2c8] sm:$0xff]
    %v113 = vld [vmem:[%s1 + $0x2d0] sm:$0xff]
    %v114 = vld [vmem:[%s1 + $0x2d8] sm:$0xff]
    %v115 = vld [vmem:[%s1 + $0x2e0] sm:$0xff]
    %v116 = vld [vmem:[%s1 + $0x2e8] sm:$0xff]
    %v117 = vld [vmem:[%s1 + $0x2f0] sm:$0xff]
    %v118 = vld [vmem:[%s1 + $0x2f8] sm:$0xff]
    %v119 = vld [vmem:[%s1 + $0x300] sm:$0xff]
    %v120 = vld [vmem:[%s1 + $0x308] sm:$0xff]
    %v121 = vld [vmem:[%s1 + $0x310] sm:$0xff]
    %v122 = vld [vmem:[%s1 + $0x318] sm:$0xff]
    %v123 = vld [vmem:[%s1 + $0x320] sm:$0xff]
    %v124 = vld [vmem:[%s1 + $0x328] sm:$0xff]
    %v125 = vld [vmem:[%s1 + $0x330] sm:$0xff]
    %v126 = vld [vmem:[%s1 + $0x338] sm:$0xff]
    %v127 = vld [vmem:[%s1 + $0x340] sm:$0xff]
    %v128 = vld [vmem:[%s1 + $0x348] sm:$0xff]
    %v129 = vld [vmem:[%s1 + $0x350] sm:$0xff]
    %v130 = vld [vmem:[%s1 + $0x358] sm:$0xff]
    %v131 = vld [vmem:[%s1 + $0x360] sm:$0xff]
    %v132 = vld [vmem:[%s1 + $0x368] sm:$0xff]
    %v133 = vld [vmem:[%s1 + $0x370] sm:$0xff]
    %v134 = vld [vmem:[%s1 + $0x378] sm:$0xff]
    %v135 = vld [vmem:[%s1 + $0x380] sm:$0xff]
    %v136 = vld [vmem:[%s1 + $0x388] sm:$0xff]
    %v137 = vld [vmem:[%s1 + $0x390] sm:$0xff]
    %v138 = vld [vmem:[%s1 + $0x398] sm:$0xff]
    %v139 = vld [vmem:[%s1 + $0x3a0] sm:$0xff]
    %v140 = vld [vmem:[%s1 + $0x3a8] sm:$0xff]
    %v141 = vld [vmem:[%s1 + $0x3b0] sm:$0xff]
    %v142 = vld [vmem:[%s1 + $0x3b8] sm:$0xff]
    %v143 = vld [vmem:[%s1 + $0x3c0] sm:$0xff]
    %v144 = vld [vmem:[%s1 + $0x3c8] sm:$0xff]
    %v145 = vld [vmem:[%s1 + $0x3d0] sm:$0xff]
    %v146 = vld [vmem:[%s1 + $0x3d8] sm:$0xff]
    %v147 = vld [vmem:[%s1 + $0x3e0] sm:$0xff]
    %v148 = vld [vmem:[%s1 + $0x3e8] sm:$0xff]
    %v149 = vld [vmem:[%s1 + $0x3f0] sm:$0xff]
    %v150 = vld [vmem:[%s1 + $0x3f8] sm:$0xff]
    %v151 = vld [vmem:[%s1 + $0x400] sm:$0xff]
    %v152 = vld [vmem:[%s1 + $0x408] sm:$0xff]
    %v153 = vld [vmem:[%s1 + $0x410] sm:$0xff]
    %v154 = vld [vmem:[%s1 + $0x418] sm:$0xff]
    %v155 = vld [vmem:[%s1 + $0x420] sm:$0xff]
    %v156 = vld [vmem:[%s1 + $0x428] sm:$0xff]
    %v157 = vld [vmem:[%s1 + $0x430] sm:$0xff]
    %v158 = vld [vmem:[%s1 + $0x438] sm:$0xff]
    %v159 = vld [vmem:[%s1 + $0x440] sm:$0xff]
    %v160 = vld [vmem:[%s1 + $0x448] sm:$0xff]
    %v161 = vld [vmem:[%s1 + $0x450] sm:$0xff]
    %v162 = vld [vmem:[%s1 + $0x458] sm:$0xff]
    %v163 = vld [vmem:[%s1 + $0x460] sm:$0xff]
    %v164 = vld [vmem:[%s1 + $0x468] sm:$0xff]
    %v165 = vld [vmem:[%s1 + $0x470] sm:$0xff]
    %v166 = vld [vmem:[%s1 + $0x478] sm:$0xff]
    %v167 = vld [vmem:[%s1 + $0x480] sm:$0xff]
    %v168 = vld [vmem:[%s1 + $0x488] sm:$0xff]
    %v169 = vld [vmem:[%s1 + $0x490] sm:$0xff]
    %v170 = vld [vmem:[%s1 + $0x498] sm:$0xff]
    %v171 = vld [vmem:[%s1 + $0x4a0] sm:$0xff]
    %v172 = vld [vmem:[%s1 + $0x4a8] sm:$0xff]
    %v173 = vld [vmem:[%s1 + $0x4b0] sm:$0xff]
    %v174 = vld [vmem:[%s1 + $0x4b8] sm:$0xff]
    %v175 = vld [vmem:[%s1 + $0x4c0] sm:$0xff]
    %v176 = vld [vmem:[%s1 + $0x4c8] sm:$0xff]
    %v177 = vld [vmem:[%s1 + $0x4d0] sm:$0xff]
    %v178 = vld [vmem:[%s1 + $0x4d8] sm:$0xff]
    %v179 = vld [vmem:[%s1 + $0x4e0] sm:$0xff]
    %v180 = vld [vmem:[%s1 + $0x4e8] sm:$0xff]
    %v181 = vld [vmem:[%s1 + $0x4f0] sm:$0xff]
    %v182 = vld [vmem:[%s1 + $0x4f8] sm:$0xff]
    %v183 = vld [vmem:[%s1 + $0x500] sm:$0xff]
    %v184 = vld [vmem:[%s1 + $0x508] sm:$0xff]
    %v185 = vld [vmem:[%s1 + $0x510] sm:$0xff]
    %v186 = vld [vmem:[%s1 + $0x518] sm:$0xff]
    %v187 = vld [vmem:[%s1 + $0x520] sm:$0xff]
    %v188 = vld [vmem:[%s1 + $0x528] sm:$0xff]
    %v189 = vld [vmem:[%s1 + $0x530] sm:$0xff]
    %v190 = vld [vmem:[%s1 + $0x538] sm:$0xff]
    %v191 = vld [vmem:[%s1 + $0x540] sm:$0xff]
    %v192 = vld [vmem:[%s1 + $0x548] sm:$0xff]
    %v193 = vld [vmem:[%s1 + $0x550] sm:$0xff]
    %v194 = vld [vmem:[%s1 + $0x558] sm:$0xff]
    %v195 = vld [vmem:[%s1 + $0x560] sm:$0xff]
    %v196 = vld [vmem:[%s1 + $0x568] sm:$0xff]
    %v197 = vld [vmem:[%s1 + $0x570] sm:$0xff]
    %v198 = vld [vmem:[%s1 + $0x578] sm:$0xff]
    %v199 = vld [vmem:[%s1 + $0x580] sm:$0xff]
    %v200 = vld [vmem:[%s1 + $0x588] sm:$0xff]
    %v201 = vld [vmem:[%s1 + $0x590] sm:$0xff]
    %v202 = vld [vmem:[%s1 + $0x598] sm:$0xff]
    %v203 = vld [vmem:[%s1 + $0x5a0] sm:$0xff]
    %v204 = vld [vmem:[%s1 + $0x5a8] sm:$0xff]
    %v205 = vld [vmem:[%s1 + $0x5b0] sm:$0xff]
    %v206 = vld [vmem:[%s1 + $0x5b8] sm:$0xff]
    %v207 = vld [vmem:[%s1 + $0x5c0] sm:$0xff]
    %v208 = vld [vmem:[%s1 + $0x5c8] sm:$0xff]
    %v209 = vld [vmem:[%s1 + $0x5d0] sm:$0xff]
    %v210 = vld [vmem:[%s1 + $0x5d8] sm:$0xff]
    %v211 = vld [vmem:[%s1 + $0x5e0] sm:$0xff]
    %v212 = vld [vmem:[%s1 + $0x5e8] sm:$0xff]
    %v213 = vld [vmem:[%s1 + $0x5f0] sm:$0xff]
    %v214 = vld [vmem:[%s1 + $0x5f8] sm:$0xff]
    %v215 = vld [vmem:[%s1 + $0x600] sm:$0xff]
    %v216 = vld [vmem:[%s1 + $0x608] sm:$0xff]
    %v217 = vld [vmem:[%s1 + $0x610] sm:$0xff]
    %v218 = vld [vmem:[%s1 + $0x618] sm:$0xff]
    %v219 = vld [vmem:[%s1 + $0x620] sm:$0xff]
    %v220 = vld [vmem:[%s1 + $0x628] sm:$0xff]
    %v221 = vld [vmem:[%s1 + $0x630] sm:$0xff]
    %v222 = vld [vmem:[%s1 + $0x638] sm:$0xff]
    %v223 = vld [vmem:[%s1 + $0x640] sm:$0xff]
    %v224 = vld [vmem:[%s1 + $0x648] sm:$0xff]
    %v225 = vld [vmem:[%s1 + $0x650] sm:$0xff]
    %v226 = vld [vmem:[%s1 + $0x658] sm:$0xff]
    %v227 = vld [vmem:[%s1 + $0x660] sm:$0xff]
    %v228 = vld [vmem:[%s1 + $0x668] sm:$0xff]
    %v229 = vld [vmem:[%s1 + $0x670] sm:$0xff]
    %v230 = vld [vmem:[%s1 + $0x678] sm:$0xff]
    %v231 = vld [vmem:[%s1 + $0x680] sm:$0xff]
    %v232 = vld [vmem:[%s1 + $0x688] sm:$0xff]
    %v233 = vld [vmem:[%s1 + $0x690] sm:$0xff]
    %v234 = vld [vmem:[%s1 + $0x698] sm:$0xff]
    %v235 = vld [vmem:[%s1 + $0x6a0] sm:$0xff]
    %v236 = vld [vmem:[%s1 + $0x6a8] sm:$0xff]
    %v237 = vld [vmem:[%s1 + $0x6b0] sm:$0xff]
    %v238 = vld [vmem:[%s1 + $0x6b8] sm:$0xff]
    %v239 = vld [vmem:[%s1 + $0x6c0] sm:$0xff]
    %v240 = vld [vmem:[%s1 + $0x6c8] sm:$0xff]
    %v241 = vld [vmem:[%s1 + $0x6d0] sm:$0xff]
    %v242 = vld [vmem:[%s1 + $0x6d8] sm:$0xff]
    %v243 = vld [vmem:[%s1 + $0x6e0] sm:$0xff]
    %v244 = vld [vmem:[%s1 + $0x6e8] sm:$0xff]
    %v245 = vld [vmem:[%s1 + $0x6f0] sm:$0xff]
    %v246 = vld [vmem:[%s1 + $0x6f8] sm:$0xff]
    %v247 = vld [vmem:[%s1 + $0x700] sm:$0xff]
    %v248 = vld [vmem:[%s1 + $0x708] sm:$0xff]
    %v249 = vld [vmem:[%s1 + $0x710] sm:$0xff]
    %v250 = vld [vmem:[%s1 + $0x718] sm:$0xff]
    %v251 = vld [vmem:[%s1 + $0x720] sm:$0xff]
    %v252 = vld [vmem:[%s1 + $0x728] sm:$0xff]
    %v253 = vld [vmem:[%s1 + $0x730] sm:$0xff]
    %v254 = vld [vmem:[%s1 + $0x738] sm:$0xff]
    %v255 = vld [vmem:[%s1 + $0x740] sm:$0xff]
    %v256 = vld [vmem:[%s1 + $0x748] sm:$0xff]
    %v257 = vld [vmem:[%s1 + $0x750] sm:$0xff]
    %v258 = vld [vmem:[%s1 + $0x758] sm:$0xff]
    %v259 = vld [vmem:[%s1 + $0x760] sm:$0xff]
    %v260 = vld [vmem:[%s1 + $0x768] sm:$0xff]
    %v261 = vld [vmem:[%s1 + $0x770] sm:$0xff]
    %v262 = vld [vmem:[%s1 + $0x778] sm:$0xff]
    %v263 = vld [vmem:[%s1 + $0x780] sm:$0xff]
    %v264 = vld [vmem:[%s1 + $0x788] sm:$0xff]
    %v265 = vld [vmem:[%s1 + $0x790] sm:$0xff]
    %v266 = vld [vmem:[%s1 + $0x798] sm:$0xff]
    %v267 = vld [vmem:[%s1 + $0x7a0] sm:$0xff]
    %v268 = vld [vmem:[%s1 + $0x7a8] sm:$0xff]
    %v269 = vld [vmem:[%s1 + $0x7b0] sm:$0xff]
    %v270 = vld [vmem:[%s1 + $0x7b8] sm:$0xff]
    %v271 = vld [vmem:[%s1 + $0x7c0] sm:$0xff]
    %v272 = vld [vmem:[%s1 + $0x7c8] sm:$0xff]
    %v273 = vld [vmem:[%s1 + $0x7d0] sm:$0xff]
    %v274 = vld [vmem:[%s1 + $0x7d8] sm:$0xff]
    %v275 = vld [vmem:[%s1 + $0x7e0] sm:$0xff]
    %v276 = vld [vmem:[%s1 + $0x7e8] sm:$0xff]
    %v277 = vld [vmem:[%s1 + $0x7f0] sm:$0xff]
    %v278 = vld [vmem:[%s1 + $0x7f8] sm:$0xff]
    %v279 = vld [vmem:[%s1 + $0x800] sm:$0xff]
    %v280 = vld [vmem:[%s1 + $0x808] sm:$0xff]
    %v281 = vld [vmem:[%s1 + $0x810] sm:$0xff]
    %v282 = vld [vmem:[%s1 + $0x818] sm:$0xff]
    %v283 = vld [vmem:[%s1 + $0x820] sm:$0xff]
    %v284 = vld [vmem:[%s1 + $0x828] sm:$0xff]
    %v285 = vld [vmem:[%s1 + $0x830] sm:$0xff]
    %v286 = vld [vmem:[%s1 + $0x838] sm:$0xff]
    %v287 = vld [vmem:[%s1 + $0x840] sm:$0xff]
    %v288 = vld [vmem:[%s1 + $0x848] sm:$0xff]
    %v289 = vld [vmem:[%s1 + $0x850] sm:$0xff]
    %v290 = vld [vmem:[%s1 + $0x858] sm:$0xff]
    %v291 = vld [vmem:[%s1 + $0x860] sm:$0xff]
    %v292 = vld [vmem:[%s1 + $0x868] sm:$0xff]
    %v293 = vld [vmem:[%s1 + $0x870] sm:$0xff]
    %v294 = vld [vmem:[%s1 + $0x878] sm:$0xff]
    %v295 = vld [vmem:[%s1 + $0x880] sm:$0xff]
    %v296 = vld [vmem:[%s1 + $0x888] sm:$0xff]
    %v297 = vld [vmem:[%s1 + $0x890] sm:$0xff]
    %v298 = vld [vmem:[%s1 + $0x898] sm:$0xff]
    %v299 = vld [vmem:[%s1 + $0x8a0] sm:$0xff]
    %v300 = vld [vmem:[%s1 + $0x8a8] sm:$0xff]
    %v301 = vld [vmem:[%s1 + $0x8b0] sm:$0xff]
    %v302 = vld [vmem:[%s1 + $0x8b8] sm:$0xff]
    %v303 = vld [vmem:[%s1 + $0x8c0] sm:$0xff]
    %v304 = vld [vmem:[%s1 + $0x8c8] sm:$0xff]
    %v305 = vld [vmem:[%s1 + $0x8d0] sm:$0xff]
    %v306 = vld [vmem:[%s1 + $0x8d8] sm:$0xff]
    %v307 = vld [vmem:[%s1 + $0x8e0] sm:$0xff]
    %v308 = vld [vmem:[%s1 + $0x8e8] sm:$0xff]
    %v309 = vld [vmem:[%s1 + $0x8f0] sm:$0xff]
    %v310 = vld [vmem:[%s1 + $0x8f8] sm:$0xff]
    %v311 = vld [vmem:[%s1 + $0x900] sm:$0xff]
    %v312 = vld [vmem:[%s1 + $0x908] sm:$0xff]
    %v313 = vld [vmem:[%s1 + $0x910] sm:$0xff]
    %v314 = vld [vmem:[%s1 + $0x918] sm:$0xff]
    %v315 = vld [vmem:[%s1 + $0x920] sm:$0xff]
    %v316 = vld [vmem:[%s1 + $0x928] sm:$0xff]
    %v317 = vld [vmem:[%s1 + $0x930] sm:$0xff]
    %v318 = vld [vmem:[%s1 + $0x938] sm:$0xff]
    %v319 = vld [vmem:[%s1 + $0x940] sm:$0xff]
    %v320 = vld [vmem:[%s1 + $0x948] sm:$0xff]
    %v321 = vld [vmem:[%s1 + $0x950] sm:$0xff]
    %v322 = vld [vmem:[%s1 + $0x958] sm:$0xff]
    %v323 = vld [vmem:[%s1 + $0x960] sm:$0xff]
    %v324 = vld [vmem:[%s1 + $0x968] sm:$0xff]
    %v325 = vld [vmem:[%s1 + $0x970] sm:$0xff]
    %v326 = vld [vmem:[%s1 + $0x978] sm:$0xff]
    %v327 = vld [vmem:[%s1 + $0x980] sm:$0xff]
    %v328 = vld [vmem:[%s1 + $0x988] sm:$0xff]
    %v329 = vld [vmem:[%s1 + $0x990] sm:$0xff]
    %v330 = vld [vmem:[%s1 + $0x998] sm:$0xff]
    %v331 = vld [vmem:[%s1 + $0x9a0] sm:$0xff]
    %v332 = vld [vmem:[%s1 + $0x9a8] sm:$0xff]
    %v333 = vld [vmem:[%s1 + $0x9b0] sm:$0xff]
    %v334 = vld [vmem:[%s1 + $0x9b8] sm:$0xff]
    %v335 = vld [vmem:[%s1 + $0x9c0] sm:$0xff]
    %v336 = vld [vmem:[%s1 + $0x9c8] sm:$0xff]
    %v337 = vld [vmem:[%s1 + $0x9d0] sm:$0xff]
    %v338 = vld [vmem:[%s1 + $0x9d8] sm:$0xff]
    %v339 = vld [vmem:[%s1 + $0x9e0] sm:$0xff]
    %v340 = vld [vmem:[%s1 + $0x9e8] sm:$0xff]
    %v341 = vld [vmem:[%s1 + $0x9f0] sm:$0xff]
    %v342 = vld [vmem:[%s1 + $0x9f8] sm:$0xff]
    %v343 = vld [vmem:[%s2] sm:$0xf]
    %v345 = vperm.slane %v343, 0
    %v346 = vperm.slane %v343, 1
    %v347 = vperm.slane %v343, 2
    %v348 = vperm.slane %v343, 3
    %354 = vst [vmem:[#allocation1] ss:$9 sm:$0xff] %v21
    %v355 = vld [vmem:[#allocation1] sm:$0xff]
    %v356 = vld [vmem:[#allocation1 + $0x9] sm:$0xff]
    %v357 = vld [vmem:[#allocation1 + $0x12] sm:$0xff]
    %v358 = vld [vmem:[#allocation1 + $0x1b] sm:$0xff]
    %v359 = vld [vmem:[#allocation1 + $0x24] sm:$0xff]
    %v360 = vld [vmem:[#allocation1 + $0x2d] sm:$0xff]
    %v361 = vld [vmem:[#allocation1 + $0x36] sm:$0xff]
    %v362 = vld [vmem:[#allocation1 + $0x3f] sm:$0xff]
    %364 = vst [vmem:[#allocation1] ss:$9 sm:$0xff] %v22
    %v365 = vld [vmem:[#allocation1] sm:$0xff]
    %v366 = vld [vmem:[#allocation1 + $0x9] sm:$0xff]
    %v697 = vunpack.c.l.b16 %v23
    %v698 = vunpack.c.h.b16 %v23
    %v699 = vunpack.c.l.b16 %v24
    %v700 = vunpack.c.h.b16 %v24
    %v701 = vunpack.c.l.b16 %v25
    %v702 = vunpack.c.h.b16 %v25
    %v703 = vunpack.c.l.b16 %v26
    %v704 = vunpack.c.h.b16 %v26
    %v705 = vunpack.c.l.b16 %v27
    %v706 = vunpack.c.h.b16 %v27
    %v707 = vunpack.c.l.b16 %v28
    %v708 = vunpack.c.h.b16 %v28
    %v709 = vunpack.c.l.b16 %v29
    %v710 = vunpack.c.h.b16 %v29
    %v711 = vunpack.c.l.b16 %v30
    %v712 = vunpack.c.h.b16 %v30
    %v713 = vunpack.c.l.b16 %v31
    %v714 = vunpack.c.h.b16 %v31
    %v715 = vunpack.c.l.b16 %v32
    %v716 = vunpack.c.h.b16 %v32
    %v717 = vunpack.c.l.b16 %v33
    %v718 = vunpack.c.h.b16 %v33
    %v719 = vunpack.c.l.b16 %v34
    %v720 = vunpack.c.h.b16 %v34
    %v721 = vunpack.c.l.b16 %v35
    %v722 = vunpack.c.h.b16 %v35
    %v723 = vunpack.c.l.b16 %v36
    %v724 = vunpack.c.h.b16 %v36
    %v725 = vunpack.c.l.b16 %v37
    %v726 = vunpack.c.h.b16 %v37
    %v727 = vunpack.c.l.b16 %v38
    %v728 = vunpack.c.h.b16 %v38
    %v729 = vunpack.c.l.b16 %v39
    %v730 = vunpack.c.h.b16 %v39
    %v731 = vunpack.c.l.b16 %v40
    %v732 = vunpack.c.h.b16 %v40
    %v733 = vunpack.c.l.b16 %v41
    %v734 = vunpack.c.h.b16 %v41
    %v735 = vunpack.c.l.b16 %v42
    %v736 = vunpack.c.h.b16 %v42
    %v737 = vunpack.c.l.b16 %v43
    %v738 = vunpack.c.h.b16 %v43
    %v739 = vunpack.c.l.b16 %v44
    %v740 = vunpack.c.h.b16 %v44
    %v741 = vunpack.c.l.b16 %v45
    %v742 = vunpack.c.h.b16 %v45
    %v743 = vunpack.c.l.b16 %v46
    %v744 = vunpack.c.h.b16 %v46
    %v745 = vunpack.c.l.b16 %v47
    %v746 = vunpack.c.h.b16 %v47
    %v747 = vunpack.c.l.b16 %v48
    %v748 = vunpack.c.h.b16 %v48
    %v749 = vunpack.c.l.b16 %v49
    %v750 = vunpack.c.h.b16 %v49
    %v751 = vunpack.c.l.b16 %v50
    %v752 = vunpack.c.h.b16 %v50
    %v753 = vunpack.c.l.b16 %v51
    %v754 = vunpack.c.h.b16 %v51
    %v755 = vunpack.c.l.b16 %v52
    %v756 = vunpack.c.h.b16 %v52
    %v757 = vunpack.c.l.b16 %v53
    %v758 = vunpack.c.h.b16 %v53
    %v759 = vunpack.c.l.b16 %v54
    %v760 = vunpack.c.h.b16 %v54
    %v761 = vunpack.c.l.b16 %v55
    %v762 = vunpack.c.h.b16 %v55
    %v763 = vunpack.c.l.b16 %v56
    %v764 = vunpack.c.h.b16 %v56
    %v765 = vunpack.c.l.b16 %v57
    %v766 = vunpack.c.h.b16 %v57
    %v767 = vunpack.c.l.b16 %v58
    %v768 = vunpack.c.h.b16 %v58
    %v769 = vunpack.c.l.b16 %v59
    %v770 = vunpack.c.h.b16 %v59
    %v771 = vunpack.c.l.b16 %v60
    %v772 = vunpack.c.h.b16 %v60
    %v773 = vunpack.c.l.b16 %v61
    %v774 = vunpack.c.h.b16 %v61
    %v775 = vunpack.c.l.b16 %v62
    %v776 = vunpack.c.h.b16 %v62
    %v777 = vunpack.c.l.b16 %v63
    %v778 = vunpack.c.h.b16 %v63
    %v779 = vunpack.c.l.b16 %v64
    %v780 = vunpack.c.h.b16 %v64
    %v781 = vunpack.c.l.b16 %v65
    %v782 = vunpack.c.h.b16 %v65
    %v783 = vunpack.c.l.b16 %v66
    %v784 = vunpack.c.h.b16 %v66
    %v785 = vunpack.c.l.b16 %v67
    %v786 = vunpack.c.h.b16 %v67
    %v787 = vunpack.c.l.b16 %v68
    %v788 = vunpack.c.h.b16 %v68
    %v789 = vunpack.c.l.b16 %v69
    %v790 = vunpack.c.h.b16 %v69
    %v791 = vunpack.c.l.b16 %v70
    %v792 = vunpack.c.h.b16 %v70
    %v793 = vunpack.c.l.b16 %v71
    %v794 = vunpack.c.h.b16 %v71
    %v795 = vunpack.c.l.b16 %v72
    %v796 = vunpack.c.h.b16 %v72
    %v797 = vunpack.c.l.b16 %v73
    %v798 = vunpack.c.h.b16 %v73
    %v799 = vunpack.c.l.b16 %v74
    %v800 = vunpack.c.h.b16 %v74
    %v801 = vunpack.c.l.b16 %v75
    %v802 = vunpack.c.h.b16 %v75
    %v803 = vunpack.c.l.b16 %v76
    %v804 = vunpack.c.h.b16 %v76
    %v805 = vunpack.c.l.b16 %v77
    %v806 = vunpack.c.h.b16 %v77
    %v807 = vunpack.c.l.b16 %v78
    %v808 = vunpack.c.h.b16 %v78
    %v809 = vunpack.c.l.b16 %v79
    %v810 = vunpack.c.h.b16 %v79
    %v811 = vunpack.c.l.b16 %v80
    %v812 = vunpack.c.h.b16 %v80
    %v813 = vunpack.c.l.b16 %v81
    %v814 = vunpack.c.h.b16 %v81
    %v815 = vunpack.c.l.b16 %v82
    %v816 = vunpack.c.h.b16 %v82
    %v817 = vunpack.c.l.b16 %v83
    %v818 = vunpack.c.h.b16 %v83
    %v819 = vunpack.c.l.b16 %v84
    %v820 = vunpack.c.h.b16 %v84
    %v821 = vunpack.c.l.b16 %v85
    %v822 = vunpack.c.h.b16 %v85
    %v823 = vunpack.c.l.b16 %v86
    %v824 = vunpack.c.h.b16 %v86
    %v825 = vunpack.c.l.b16 %v87
    %v826 = vunpack.c.h.b16 %v87
    %v827 = vunpack.c.l.b16 %v88
    %v828 = vunpack.c.h.b16 %v88
    %v829 = vunpack.c.l.b16 %v89
    %v830 = vunpack.c.h.b16 %v89
    %v831 = vunpack.c.l.b16 %v90
    %v832 = vunpack.c.h.b16 %v90
    %v833 = vunpack.c.l.b16 %v91
    %v834 = vunpack.c.h.b16 %v91
    %v835 = vunpack.c.l.b16 %v92
    %v836 = vunpack.c.h.b16 %v92
    %v837 = vunpack.c.l.b16 %v93
    %v838 = vunpack.c.h.b16 %v93
    %v839 = vunpack.c.l.b16 %v94
    %v840 = vunpack.c.h.b16 %v94
    %v841 = vunpack.c.l.b16 %v95
    %v842 = vunpack.c.h.b16 %v95
    %v843 = vunpack.c.l.b16 %v96
    %v844 = vunpack.c.h.b16 %v96
    %v845 = vunpack.c.l.b16 %v97
    %v846 = vunpack.c.h.b16 %v97
    %v847 = vunpack.c.l.b16 %v98
    %v848 = vunpack.c.h.b16 %v98
    %v849 = vunpack.c.l.b16 %v99
    %v850 = vunpack.c.h.b16 %v99
    %v851 = vunpack.c.l.b16 %v100
    %v852 = vunpack.c.h.b16 %v100
    %v853 = vunpack.c.l.b16 %v101
    %v854 = vunpack.c.h.b16 %v101
    %v855 = vunpack.c.l.b16 %v102
    %v856 = vunpack.c.h.b16 %v102
    %v857 = vunpack.c.l.b16 %v103
    %v858 = vunpack.c.h.b16 %v103
    %v859 = vunpack.c.l.b16 %v104
    %v860 = vunpack.c.h.b16 %v104
    %v861 = vunpack.c.l.b16 %v105
    %v862 = vunpack.c.h.b16 %v105
    %v863 = vunpack.c.l.b16 %v106
    %v864 = vunpack.c.h.b16 %v106
    %v865 = vunpack.c.l.b16 %v107
    %v866 = vunpack.c.h.b16 %v107
    %v867 = vunpack.c.l.b16 %v108
    %v868 = vunpack.c.h.b16 %v108
    %v869 = vunpack.c.l.b16 %v109
    %v870 = vunpack.c.h.b16 %v109
    %v871 = vunpack.c.l.b16 %v110
    %v872 = vunpack.c.h.b16 %v110
    %v873 = vunpack.c.l.b16 %v111
    %v874 = vunpack.c.h.b16 %v111
    %v875 = vunpack.c.l.b16 %v112
    %v876 = vunpack.c.h.b16 %v112
    %v877 = vunpack.c.l.b16 %v113
    %v878 = vunpack.c.h.b16 %v113
    %v879 = vunpack.c.l.b16 %v114
    %v880 = vunpack.c.h.b16 %v114
    %v881 = vunpack.c.l.b16 %v115
    %v882 = vunpack.c.h.b16 %v115
    %v883 = vunpack.c.l.b16 %v116
    %v884 = vunpack.c.h.b16 %v116
    %v885 = vunpack.c.l.b16 %v117
    %v886 = vunpack.c.h.b16 %v117
    %v887 = vunpack.c.l.b16 %v118
    %v888 = vunpack.c.h.b16 %v118
    %v889 = vunpack.c.l.b16 %v119
    %v890 = vunpack.c.h.b16 %v119
    %v891 = vunpack.c.l.b16 %v120
    %v892 = vunpack.c.h.b16 %v120
    %v893 = vunpack.c.l.b16 %v121
    %v894 = vunpack.c.h.b16 %v121
    %v895 = vunpack.c.l.b16 %v122
    %v896 = vunpack.c.h.b16 %v122
    %v897 = vunpack.c.l.b16 %v123
    %v898 = vunpack.c.h.b16 %v123
    %v899 = vunpack.c.l.b16 %v124
    %v900 = vunpack.c.h.b16 %v124
    %v901 = vunpack.c.l.b16 %v125
    %v902 = vunpack.c.h.b16 %v125
    %v903 = vunpack.c.l.b16 %v126
    %v904 = vunpack.c.h.b16 %v126
    %v905 = vunpack.c.l.b16 %v127
    %v906 = vunpack.c.h.b16 %v127
    %v907 = vunpack.c.l.b16 %v128
    %v908 = vunpack.c.h.b16 %v128
    %v909 = vunpack.c.l.b16 %v129
    %v910 = vunpack.c.h.b16 %v129
    %v911 = vunpack.c.l.b16 %v130
    %v912 = vunpack.c.h.b16 %v130
    %v913 = vunpack.c.l.b16 %v131
    %v914 = vunpack.c.h.b16 %v131
    %v915 = vunpack.c.l.b16 %v132
    %v916 = vunpack.c.h.b16 %v132
    %v917 = vunpack.c.l.b16 %v133
    %v918 = vunpack.c.h.b16 %v133
    %v919 = vunpack.c.l.b16 %v134
    %v920 = vunpack.c.h.b16 %v134
    %v921 = vunpack.c.l.b16 %v135
    %v922 = vunpack.c.h.b16 %v135
    %v923 = vunpack.c.l.b16 %v136
    %v924 = vunpack.c.h.b16 %v136
    %v925 = vunpack.c.l.b16 %v137
    %v926 = vunpack.c.h.b16 %v137
    %v927 = vunpack.c.l.b16 %v138
    %v928 = vunpack.c.h.b16 %v138
    %v929 = vunpack.c.l.b16 %v139
    %v930 = vunpack.c.h.b16 %v139
    %v931 = vunpack.c.l.b16 %v140
    %v932 = vunpack.c.h.b16 %v140
    %v933 = vunpack.c.l.b16 %v141
    %v934 = vunpack.c.h.b16 %v141
    %v935 = vunpack.c.l.b16 %v142
    %v936 = vunpack.c.h.b16 %v142
    %v937 = vunpack.c.l.b16 %v143
    %v938 = vunpack.c.h.b16 %v143
    %v939 = vunpack.c.l.b16 %v144
    %v940 = vunpack.c.h.b16 %v144
    %v941 = vunpack.c.l.b16 %v145
    %v942 = vunpack.c.h.b16 %v145
    %v943 = vunpack.c.l.b16 %v146
    %v944 = vunpack.c.h.b16 %v146
    %v945 = vunpack.c.l.b16 %v147
    %v946 = vunpack.c.h.b16 %v147
    %v947 = vunpack.c.l.b16 %v148
    %v948 = vunpack.c.h.b16 %v148
    %v949 = vunpack.c.l.b16 %v149
    %v950 = vunpack.c.h.b16 %v149
    %v951 = vunpack.c.l.b16 %v150
    %v952 = vunpack.c.h.b16 %v150
    %v953 = vunpack.c.l.b16 %v151
    %v954 = vunpack.c.h.b16 %v151
    %v955 = vunpack.c.l.b16 %v152
    %v956 = vunpack.c.h.b16 %v152
    %v957 = vunpack.c.l.b16 %v153
    %v958 = vunpack.c.h.b16 %v153
    %v959 = vunpack.c.l.b16 %v154
    %v960 = vunpack.c.h.b16 %v154
    %v961 = vunpack.c.l.b16 %v155
    %v962 = vunpack.c.h.b16 %v155
    %v963 = vunpack.c.l.b16 %v156
    %v964 = vunpack.c.h.b16 %v156
    %v965 = vunpack.c.l.b16 %v157
    %v966 = vunpack.c.h.b16 %v157
    %v967 = vunpack.c.l.b16 %v158
    %v968 = vunpack.c.h.b16 %v158
    %v969 = vunpack.c.l.b16 %v159
    %v970 = vunpack.c.h.b16 %v159
    %v971 = vunpack.c.l.b16 %v160
    %v972 = vunpack.c.h.b16 %v160
    %v973 = vunpack.c.l.b16 %v161
    %v974 = vunpack.c.h.b16 %v161
    %v975 = vunpack.c.l.b16 %v162
    %v976 = vunpack.c.h.b16 %v162
    %v977 = vunpack.c.l.b16 %v163
    %v978 = vunpack.c.h.b16 %v163
    %v979 = vunpack.c.l.b16 %v164
    %v980 = vunpack.c.h.b16 %v164
    %v981 = vunpack.c.l.b16 %v165
    %v982 = vunpack.c.h.b16 %v165
    %v983 = vunpack.c.l.b16 %v166
    %v984 = vunpack.c.h.b16 %v166
    %v985 = vunpack.c.l.b16 %v167
    %v986 = vunpack.c.h.b16 %v167
    %v987 = vunpack.c.l.b16 %v168
    %v988 = vunpack.c.h.b16 %v168
    %v989 = vunpack.c.l.b16 %v169
    %v990 = vunpack.c.h.b16 %v169
    %v991 = vunpack.c.l.b16 %v170
    %v992 = vunpack.c.h.b16 %v170
    %v993 = vunpack.c.l.b16 %v171
    %v994 = vunpack.c.h.b16 %v171
    %v995 = vunpack.c.l.b16 %v172
    %v996 = vunpack.c.h.b16 %v172
    %v997 = vunpack.c.l.b16 %v173
    %v998 = vunpack.c.h.b16 %v173
    %v999 = vunpack.c.l.b16 %v174
    %v1000 = vunpack.c.h.b16 %v174
    %v1001 = vunpack.c.l.b16 %v175
    %v1002 = vunpack.c.h.b16 %v175
    %v1003 = vunpack.c.l.b16 %v176
    %v1004 = vunpack.c.h.b16 %v176
    %v1005 = vunpack.c.l.b16 %v177
    %v1006 = vunpack.c.h.b16 %v177
    %v1007 = vunpack.c.l.b16 %v178
    %v1008 = vunpack.c.h.b16 %v178
    %v1009 = vunpack.c.l.b16 %v179
    %v1010 = vunpack.c.h.b16 %v179
    %v1011 = vunpack.c.l.b16 %v180
    %v1012 = vunpack.c.h.b16 %v180
    %v1013 = vunpack.c.l.b16 %v181
    %v1014 = vunpack.c.h.b16 %v181
    %v1015 = vunpack.c.l.b16 %v182
    %v1016 = vunpack.c.h.b16 %v182
    %v1017 = vunpack.c.l.b16 %v183
    %v1018 = vunpack.c.h.b16 %v183
    %v1019 = vunpack.c.l.b16 %v184
    %v1020 = vunpack.c.h.b16 %v184
    %v1021 = vunpack.c.l.b16 %v185
    %v1022 = vunpack.c.h.b16 %v185
    %v1023 = vunpack.c.l.b16 %v186
    %v1024 = vunpack.c.h.b16 %v186
    %v1025 = vunpack.c.l.b16 %v187
    %v1026 = vunpack.c.h.b16 %v187
    %v1027 = vunpack.c.l.b16 %v188
    %v1028 = vunpack.c.h.b16 %v188
    %v1029 = vunpack.c.l.b16 %v189
    %v1030 = vunpack.c.h.b16 %v189
    %v1031 = vunpack.c.l.b16 %v190
    %v1032 = vunpack.c.h.b16 %v190
    %v1033 = vunpack.c.l.b16 %v191
    %v1034 = vunpack.c.h.b16 %v191
    %v1035 = vunpack.c.l.b16 %v192
    %v1036 = vunpack.c.h.b16 %v192
    %v1037 = vunpack.c.l.b16 %v193
    %v1038 = vunpack.c.h.b16 %v193
    %v1039 = vunpack.c.l.b16 %v194
    %v1040 = vunpack.c.h.b16 %v194
    %v1041 = vunpack.c.l.b16 %v195
    %v1042 = vunpack.c.h.b16 %v195
    %v1043 = vunpack.c.l.b16 %v196
    %v1044 = vunpack.c.h.b16 %v196
    %v1045 = vunpack.c.l.b16 %v197
    %v1046 = vunpack.c.h.b16 %v197
    %v1047 = vunpack.c.l.b16 %v198
    %v1048 = vunpack.c.h.b16 %v198
    %v1049 = vunpack.c.l.b16 %v199
    %v1050 = vunpack.c.h.b16 %v199
    %v1051 = vunpack.c.l.b16 %v200
    %v1052 = vunpack.c.h.b16 %v200
    %v1053 = vunpack.c.l.b16 %v201
    %v1054 = vunpack.c.h.b16 %v201
    %v1055 = vunpack.c.l.b16 %v202
    %v1056 = vunpack.c.h.b16 %v202
    %v1057 = vunpack.c.l.b16 %v203
    %v1058 = vunpack.c.h.b16 %v203
    %v1059 = vunpack.c.l.b16 %v204
    %v1060 = vunpack.c.h.b16 %v204
    %v1061 = vunpack.c.l.b16 %v205
    %v1062 = vunpack.c.h.b16 %v205
    %v1063 = vunpack.c.l.b16 %v206
    %v1064 = vunpack.c.h.b16 %v206
    %v1065 = vunpack.c.l.b16 %v207
    %v1066 = vunpack.c.h.b16 %v207
    %v1067 = vunpack.c.l.b16 %v208
    %v1068 = vunpack.c.h.b16 %v208
    %v1069 = vunpack.c.l.b16 %v209
    %v1070 = vunpack.c.h.b16 %v209
    %v1071 = vunpack.c.l.b16 %v210
    %v1072 = vunpack.c.h.b16 %v210
    %v1073 = vunpack.c.l.b16 %v211
    %v1074 = vunpack.c.h.b16 %v211
    %v1075 = vunpack.c.l.b16 %v212
    %v1076 = vunpack.c.h.b16 %v212
    %v1077 = vunpack.c.l.b16 %v213
    %v1078 = vunpack.c.h.b16 %v213
    %v1079 = vunpack.c.l.b16 %v214
    %v1080 = vunpack.c.h.b16 %v214
    %v1081 = vunpack.c.l.b16 %v215
    %v1082 = vunpack.c.h.b16 %v215
    %v1083 = vunpack.c.l.b16 %v216
    %v1084 = vunpack.c.h.b16 %v216
    %v1085 = vunpack.c.l.b16 %v217
    %v1086 = vunpack.c.h.b16 %v217
    %v1087 = vunpack.c.l.b16 %v218
    %v1088 = vunpack.c.h.b16 %v218
    %v1089 = vunpack.c.l.b16 %v219
    %v1090 = vunpack.c.h.b16 %v219
    %v1091 = vunpack.c.l.b16 %v220
    %v1092 = vunpack.c.h.b16 %v220
    %v1093 = vunpack.c.l.b16 %v221
    %v1094 = vunpack.c.h.b16 %v221
    %v1095 = vunpack.c.l.b16 %v222
    %v1096 = vunpack.c.h.b16 %v222
    %v1097 = vunpack.c.l.b16 %v223
    %v1098 = vunpack.c.h.b16 %v223
    %v1099 = vunpack.c.l.b16 %v224
    %v1100 = vunpack.c.h.b16 %v224
    %v1101 = vunpack.c.l.b16 %v225
    %v1102 = vunpack.c.h.b16 %v225
    %v1103 = vunpack.c.l.b16 %v226
    %v1104 = vunpack.c.h.b16 %v226
    %v1105 = vunpack.c.l.b16 %v227
    %v1106 = vunpack.c.h.b16 %v227
    %v1107 = vunpack.c.l.b16 %v228
    %v1108 = vunpack.c.h.b16 %v228
    %v1109 = vunpack.c.l.b16 %v229
    %v1110 = vunpack.c.h.b16 %v229
    %v1111 = vunpack.c.l.b16 %v230
    %v1112 = vunpack.c.h.b16 %v230
    %v1113 = vunpack.c.l.b16 %v231
    %v1114 = vunpack.c.h.b16 %v231
    %v1115 = vunpack.c.l.b16 %v232
    %v1116 = vunpack.c.h.b16 %v232
    %v1117 = vunpack.c.l.b16 %v233
    %v1118 = vunpack.c.h.b16 %v233
    %v1119 = vunpack.c.l.b16 %v234
    %v1120 = vunpack.c.h.b16 %v234
    %v1121 = vunpack.c.l.b16 %v235
    %v1122 = vunpack.c.h.b16 %v235
    %v1123 = vunpack.c.l.b16 %v236
    %v1124 = vunpack.c.h.b16 %v236
    %v1125 = vunpack.c.l.b16 %v237
    %v1126 = vunpack.c.h.b16 %v237
    %v1127 = vunpack.c.l.b16 %v238
    %v1128 = vunpack.c.h.b16 %v238
    %v1129 = vunpack.c.l.b16 %v239
    %v1130 = vunpack.c.h.b16 %v239
    %v1131 = vunpack.c.l.b16 %v240
    %v1132 = vunpack.c.h.b16 %v240
    %v1133 = vunpack.c.l.b16 %v241
    %v1134 = vunpack.c.h.b16 %v241
    %v1135 = vunpack.c.l.b16 %v242
    %v1136 = vunpack.c.h.b16 %v242
    %v1137 = vunpack.c.l.b16 %v243
    %v1138 = vunpack.c.h.b16 %v243
    %v1139 = vunpack.c.l.b16 %v244
    %v1140 = vunpack.c.h.b16 %v244
    %v1141 = vunpack.c.l.b16 %v245
    %v1142 = vunpack.c.h.b16 %v245
    %v1143 = vunpack.c.l.b16 %v246
    %v1144 = vunpack.c.h.b16 %v246
    %v1145 = vunpack.c.l.b16 %v247
    %v1146 = vunpack.c.h.b16 %v247
    %v1147 = vunpack.c.l.b16 %v248
    %v1148 = vunpack.c.h.b16 %v248
    %v1149 = vunpack.c.l.b16 %v249
    %v1150 = vunpack.c.h.b16 %v249
    %v1151 = vunpack.c.l.b16 %v250
    %v1152 = vunpack.c.h.b16 %v250
    %v1153 = vunpack.c.l.b16 %v251
    %v1154 = vunpack.c.h.b16 %v251
    %v1155 = vunpack.c.l.b16 %v252
    %v1156 = vunpack.c.h.b16 %v252
    %v1157 = vunpack.c.l.b16 %v253
    %v1158 = vunpack.c.h.b16 %v253
    %v1159 = vunpack.c.l.b16 %v254
    %v1160 = vunpack.c.h.b16 %v254
    %v1161 = vunpack.c.l.b16 %v255
    %v1162 = vunpack.c.h.b16 %v255
    %v1163 = vunpack.c.l.b16 %v256
    %v1164 = vunpack.c.h.b16 %v256
    %v1165 = vunpack.c.l.b16 %v257
    %v1166 = vunpack.c.h.b16 %v257
    %v1167 = vunpack.c.l.b16 %v258
    %v1168 = vunpack.c.h.b16 %v258
    %v1169 = vunpack.c.l.b16 %v259
    %v1170 = vunpack.c.h.b16 %v259
    %v1171 = vunpack.c.l.b16 %v260
    %v1172 = vunpack.c.h.b16 %v260
    %v1173 = vunpack.c.l.b16 %v261
    %v1174 = vunpack.c.h.b16 %v261
    %v1175 = vunpack.c.l.b16 %v262
    %v1176 = vunpack.c.h.b16 %v262
    %v1177 = vunpack.c.l.b16 %v263
    %v1178 = vunpack.c.h.b16 %v263
    %v1179 = vunpack.c.l.b16 %v264
    %v1180 = vunpack.c.h.b16 %v264
    %v1181 = vunpack.c.l.b16 %v265
    %v1182 = vunpack.c.h.b16 %v265
    %v1183 = vunpack.c.l.b16 %v266
    %v1184 = vunpack.c.h.b16 %v266
    %v1185 = vunpack.c.l.b16 %v267
    %v1186 = vunpack.c.h.b16 %v267
    %v1187 = vunpack.c.l.b16 %v268
    %v1188 = vunpack.c.h.b16 %v268
    %v1189 = vunpack.c.l.b16 %v269
    %v1190 = vunpack.c.h.b16 %v269
    %v1191 = vunpack.c.l.b16 %v270
    %v1192 = vunpack.c.h.b16 %v270
    %v1193 = vunpack.c.l.b16 %v271
    %v1194 = vunpack.c.h.b16 %v271
    %v1195 = vunpack.c.l.b16 %v272
    %v1196 = vunpack.c.h.b16 %v272
    %v1197 = vunpack.c.l.b16 %v273
    %v1198 = vunpack.c.h.b16 %v273
    %v1199 = vunpack.c.l.b16 %v274
    %v1200 = vunpack.c.h.b16 %v274
    %v1201 = vunpack.c.l.b16 %v275
    %v1202 = vunpack.c.h.b16 %v275
    %v1203 = vunpack.c.l.b16 %v276
    %v1204 = vunpack.c.h.b16 %v276
    %v1205 = vunpack.c.l.b16 %v277
    %v1206 = vunpack.c.h.b16 %v277
    %v1207 = vunpack.c.l.b16 %v278
    %v1208 = vunpack.c.h.b16 %v278
    %v1209 = vunpack.c.l.b16 %v279
    %v1210 = vunpack.c.h.b16 %v279
    %v1211 = vunpack.c.l.b16 %v280
    %v1212 = vunpack.c.h.b16 %v280
    %v1213 = vunpack.c.l.b16 %v281
    %v1214 = vunpack.c.h.b16 %v281
    %v1215 = vunpack.c.l.b16 %v282
    %v1216 = vunpack.c.h.b16 %v282
    %v1217 = vunpack.c.l.b16 %v283
    %v1218 = vunpack.c.h.b16 %v283
    %v1219 = vunpack.c.l.b16 %v284
    %v1220 = vunpack.c.h.b16 %v284
    %v1221 = vunpack.c.l.b16 %v285
    %v1222 = vunpack.c.h.b16 %v285
    %v1223 = vunpack.c.l.b16 %v286
    %v1224 = vunpack.c.h.b16 %v286
    %v1225 = vunpack.c.l.b16 %v287
    %v1226 = vunpack.c.h.b16 %v287
    %v1227 = vunpack.c.l.b16 %v288
    %v1228 = vunpack.c.h.b16 %v288
    %v1229 = vunpack.c.l.b16 %v289
    %v1230 = vunpack.c.h.b16 %v289
    %v1231 = vunpack.c.l.b16 %v290
    %v1232 = vunpack.c.h.b16 %v290
    %v1233 = vunpack.c.l.b16 %v291
    %v1234 = vunpack.c.h.b16 %v291
    %v1235 = vunpack.c.l.b16 %v292
    %v1236 = vunpack.c.h.b16 %v292
    %v1237 = vunpack.c.l.b16 %v293
    %v1238 = vunpack.c.h.b16 %v293
    %v1239 = vunpack.c.l.b16 %v294
    %v1240 = vunpack.c.h.b16 %v294
    %v1241 = vunpack.c.l.b16 %v295
    %v1242 = vunpack.c.h.b16 %v295
    %v1243 = vunpack.c.l.b16 %v296
    %v1244 = vunpack.c.h.b16 %v296
    %v1245 = vunpack.c.l.b16 %v297
    %v1246 = vunpack.c.h.b16 %v297
    %v1247 = vunpack.c.l.b16 %v298
    %v1248 = vunpack.c.h.b16 %v298
    %v1249 = vunpack.c.l.b16 %v299
    %v1250 = vunpack.c.h.b16 %v299
    %v1251 = vunpack.c.l.b16 %v300
    %v1252 = vunpack.c.h.b16 %v300
    %v1253 = vunpack.c.l.b16 %v301
    %v1254 = vunpack.c.h.b16 %v301
    %v1255 = vunpack.c.l.b16 %v302
    %v1256 = vunpack.c.h.b16 %v302
    %v1257 = vunpack.c.l.b16 %v303
    %v1258 = vunpack.c.h.b16 %v303
    %v1259 = vunpack.c.l.b16 %v304
    %v1260 = vunpack.c.h.b16 %v304
    %v1261 = vunpack.c.l.b16 %v305
    %v1262 = vunpack.c.h.b16 %v305
    %v1263 = vunpack.c.l.b16 %v306
    %v1264 = vunpack.c.h.b16 %v306
    %v1265 = vunpack.c.l.b16 %v307
    %v1266 = vunpack.c.h.b16 %v307
    %v1267 = vunpack.c.l.b16 %v308
    %v1268 = vunpack.c.h.b16 %v308
    %v1269 = vunpack.c.l.b16 %v309
    %v1270 = vunpack.c.h.b16 %v309
    %v1271 = vunpack.c.l.b16 %v310
    %v1272 = vunpack.c.h.b16 %v310
    %v1273 = vunpack.c.l.b16 %v311
    %v1274 = vunpack.c.h.b16 %v311
    %v1275 = vunpack.c.l.b16 %v312
    %v1276 = vunpack.c.h.b16 %v312
    %v1277 = vunpack.c.l.b16 %v313
    %v1278 = vunpack.c.h.b16 %v313
    %v1279 = vunpack.c.l.b16 %v314
    %v1280 = vunpack.c.h.b16 %v314
    %v1281 = vunpack.c.l.b16 %v315
    %v1282 = vunpack.c.h.b16 %v315
    %v1283 = vunpack.c.l.b16 %v316
    %v1284 = vunpack.c.h.b16 %v316
    %v1285 = vunpack.c.l.b16 %v317
    %v1286 = vunpack.c.h.b16 %v317
    %v1287 = vunpack.c.l.b16 %v318
    %v1288 = vunpack.c.h.b16 %v318
    %v1289 = vunpack.c.l.b16 %v319
    %v1290 = vunpack.c.h.b16 %v319
    %v1291 = vunpack.c.l.b16 %v320
    %v1292 = vunpack.c.h.b16 %v320
    %v1293 = vunpack.c.l.b16 %v321
    %v1294 = vunpack.c.h.b16 %v321
    %v1295 = vunpack.c.l.b16 %v322
    %v1296 = vunpack.c.h.b16 %v322
    %v1297 = vunpack.c.l.b16 %v323
    %v1298 = vunpack.c.h.b16 %v323
    %v1299 = vunpack.c.l.b16 %v324
    %v1300 = vunpack.c.h.b16 %v324
    %v1301 = vunpack.c.l.b16 %v325
    %v1302 = vunpack.c.h.b16 %v325
    %v1303 = vunpack.c.l.b16 %v326
    %v1304 = vunpack.c.h.b16 %v326
    %v1305 = vunpack.c.l.b16 %v327
    %v1306 = vunpack.c.h.b16 %v327
    %v1307 = vunpack.c.l.b16 %v328
    %v1308 = vunpack.c.h.b16 %v328
    %v1309 = vunpack.c.l.b16 %v329
    %v1310 = vunpack.c.h.b16 %v329
    %v1311 = vunpack.c.l.b16 %v330
    %v1312 = vunpack.c.h.b16 %v330
    %v1313 = vunpack.c.l.b16 %v331
    %v1314 = vunpack.c.h.b16 %v331
    %v1315 = vunpack.c.l.b16 %v332
    %v1316 = vunpack.c.h.b16 %v332
    %v1317 = vunpack.c.l.b16 %v333
    %v1318 = vunpack.c.h.b16 %v333
    %v1319 = vunpack.c.l.b16 %v334
    %v1320 = vunpack.c.h.b16 %v334
    %v1321 = vunpack.c.l.b16 %v335
    %v1322 = vunpack.c.h.b16 %v335
    %v1323 = vunpack.c.l.b16 %v336
    %v1324 = vunpack.c.h.b16 %v336
    %v1325 = vunpack.c.l.b16 %v337
    %v1326 = vunpack.c.h.b16 %v337
    %v1327 = vunpack.c.l.b16 %v338
    %v1328 = vunpack.c.h.b16 %v338
    %v1329 = vunpack.c.l.b16 %v339
    %v1330 = vunpack.c.h.b16 %v339
    %v1331 = vunpack.c.l.b16 %v340
    %v1332 = vunpack.c.h.b16 %v340
    %v1333 = vunpack.c.l.b16 %v341
    %v1334 = vunpack.c.h.b16 %v341
    %v1335 = vunpack.c.l.b16 %v342
    %v1336 = vunpack.c.h.b16 %v342
    %v1337 = vpack.c.b16 %v701, %v697
    %v1338 = vpack.c.b16 %v702, %v698
    %v1339 = vpack.c.b16 %v703, %v699
    %v1340 = vpack.c.b16 %v704, %v700
    %v1341 = vpack.c.b16 %v709, %v705
    %v1342 = vpack.c.b16 %v710, %v706
    %v1343 = vpack.c.b16 %v711, %v707
    %v1344 = vpack.c.b16 %v712, %v708
    %v1345 = vpack.c.b16 %v717, %v713
    %v1346 = vpack.c.b16 %v718, %v714
    %v1347 = vpack.c.b16 %v719, %v715
    %v1348 = vpack.c.b16 %v720, %v716
    %v1349 = vpack.c.b16 %v725, %v721
    %v1350 = vpack.c.b16 %v726, %v722
    %v1351 = vpack.c.b16 %v727, %v723
    %v1352 = vpack.c.b16 %v728, %v724
    %v1353 = vpack.c.b16 %v733, %v729
    %v1354 = vpack.c.b16 %v734, %v730
    %v1355 = vpack.c.b16 %v735, %v731
    %v1356 = vpack.c.b16 %v736, %v732
    %v1357 = vpack.c.b16 %v741, %v737
    %v1358 = vpack.c.b16 %v742, %v738
    %v1359 = vpack.c.b16 %v743, %v739
    %v1360 = vpack.c.b16 %v744, %v740
    %v1361 = vpack.c.b16 %v749, %v745
    %v1362 = vpack.c.b16 %v750, %v746
    %v1363 = vpack.c.b16 %v751, %v747
    %v1364 = vpack.c.b16 %v752, %v748
    %v1365 = vpack.c.b16 %v757, %v753
    %v1366 = vpack.c.b16 %v758, %v754
    %v1367 = vpack.c.b16 %v759, %v755
    %v1368 = vpack.c.b16 %v760, %v756
    %v1369 = vpack.c.b16 %v765, %v761
    %v1370 = vpack.c.b16 %v766, %v762
    %v1371 = vpack.c.b16 %v767, %v763
    %v1372 = vpack.c.b16 %v768, %v764
    %v1373 = vpack.c.b16 %v773, %v769
    %v1374 = vpack.c.b16 %v774, %v770
    %v1375 = vpack.c.b16 %v775, %v771
    %v1376 = vpack.c.b16 %v776, %v772
    %v1377 = vpack.c.b16 %v781, %v777
    %v1378 = vpack.c.b16 %v782, %v778
    %v1379 = vpack.c.b16 %v783, %v779
    %v1380 = vpack.c.b16 %v784, %v780
    %v1381 = vpack.c.b16 %v789, %v785
    %v1382 = vpack.c.b16 %v790, %v786
    %v1383 = vpack.c.b16 %v791, %v787
    %v1384 = vpack.c.b16 %v792, %v788
    %v1385 = vpack.c.b16 %v797, %v793
    %v1386 = vpack.c.b16 %v798, %v794
    %v1387 = vpack.c.b16 %v799, %v795
    %v1388 = vpack.c.b16 %v800, %v796
    %v1389 = vpack.c.b16 %v805, %v801
    %v1390 = vpack.c.b16 %v806, %v802
    %v1391 = vpack.c.b16 %v807, %v803
    %v1392 = vpack.c.b16 %v808, %v804
    %v1393 = vpack.c.b16 %v813, %v809
    %v1394 = vpack.c.b16 %v814, %v810
    %v1395 = vpack.c.b16 %v815, %v811
    %v1396 = vpack.c.b16 %v816, %v812
    %v1397 = vpack.c.b16 %v821, %v817
    %v1398 = vpack.c.b16 %v822, %v818
    %v1399 = vpack.c.b16 %v823, %v819
    %v1400 = vpack.c.b16 %v824, %v820
    %v1401 = vpack.c.b16 %v829, %v825
    %v1402 = vpack.c.b16 %v830, %v826
    %v1403 = vpack.c.b16 %v831, %v827
    %v1404 = vpack.c.b16 %v832, %v828
    %v1405 = vpack.c.b16 %v837, %v833
    %v1406 = vpack.c.b16 %v838, %v834
    %v1407 = vpack.c.b16 %v839, %v835
    %v1408 = vpack.c.b16 %v840, %v836
    %v1409 = vpack.c.b16 %v845, %v841
    %v1410 = vpack.c.b16 %v846, %v842
    %v1411 = vpack.c.b16 %v847, %v843
    %v1412 = vpack.c.b16 %v848, %v844
    %v1413 = vpack.c.b16 %v853, %v849
    %v1414 = vpack.c.b16 %v854, %v850
    %v1415 = vpack.c.b16 %v855, %v851
    %v1416 = vpack.c.b16 %v856, %v852
    %v1417 = vpack.c.b16 %v861, %v857
    %v1418 = vpack.c.b16 %v862, %v858
    %v1419 = vpack.c.b16 %v863, %v859
    %v1420 = vpack.c.b16 %v864, %v860
    %v1421 = vpack.c.b16 %v869, %v865
    %v1422 = vpack.c.b16 %v870, %v866
    %v1423 = vpack.c.b16 %v871, %v867
    %v1424 = vpack.c.b16 %v872, %v868
    %v1425 = vpack.c.b16 %v877, %v873
    %v1426 = vpack.c.b16 %v878, %v874
    %v1427 = vpack.c.b16 %v879, %v875
    %v1428 = vpack.c.b16 %v880, %v876
    %v1429 = vpack.c.b16 %v885, %v881
    %v1430 = vpack.c.b16 %v886, %v882
    %v1431 = vpack.c.b16 %v887, %v883
    %v1432 = vpack.c.b16 %v888, %v884
    %v1433 = vpack.c.b16 %v893, %v889
    %v1434 = vpack.c.b16 %v894, %v890
    %v1435 = vpack.c.b16 %v895, %v891
    %v1436 = vpack.c.b16 %v896, %v892
    %v1437 = vpack.c.b16 %v901, %v897
    %v1438 = vpack.c.b16 %v902, %v898
    %v1439 = vpack.c.b16 %v903, %v899
    %v1440 = vpack.c.b16 %v904, %v900
    %v1441 = vpack.c.b16 %v909, %v905
    %v1442 = vpack.c.b16 %v910, %v906
    %v1443 = vpack.c.b16 %v911, %v907
    %v1444 = vpack.c.b16 %v912, %v908
    %v1445 = vpack.c.b16 %v917, %v913
    %v1446 = vpack.c.b16 %v918, %v914
    %v1447 = vpack.c.b16 %v919, %v915
    %v1448 = vpack.c.b16 %v920, %v916
    %v1449 = vpack.c.b16 %v925, %v921
    %v1450 = vpack.c.b16 %v926, %v922
    %v1451 = vpack.c.b16 %v927, %v923
    %v1452 = vpack.c.b16 %v928, %v924
    %v1453 = vpack.c.b16 %v933, %v929
    %v1454 = vpack.c.b16 %v934, %v930
    %v1455 = vpack.c.b16 %v935, %v931
    %v1456 = vpack.c.b16 %v936, %v932
    %v1457 = vpack.c.b16 %v941, %v937
    %v1458 = vpack.c.b16 %v942, %v938
    %v1459 = vpack.c.b16 %v943, %v939
    %v1460 = vpack.c.b16 %v944, %v940
    %v1461 = vpack.c.b16 %v949, %v945
    %v1462 = vpack.c.b16 %v950, %v946
    %v1463 = vpack.c.b16 %v951, %v947
    %v1464 = vpack.c.b16 %v952, %v948
    %v1465 = vpack.c.b16 %v957, %v953
    %v1466 = vpack.c.b16 %v958, %v954
    %v1467 = vpack.c.b16 %v959, %v955
    %v1468 = vpack.c.b16 %v960, %v956
    %v1469 = vpack.c.b16 %v965, %v961
    %v1470 = vpack.c.b16 %v966, %v962
    %v1471 = vpack.c.b16 %v967, %v963
    %v1472 = vpack.c.b16 %v968, %v964
    %v1473 = vpack.c.b16 %v973, %v969
    %v1474 = vpack.c.b16 %v974, %v970
    %v1475 = vpack.c.b16 %v975, %v971
    %v1476 = vpack.c.b16 %v976, %v972
    %v1477 = vpack.c.b16 %v981, %v977
    %v1478 = vpack.c.b16 %v982, %v978
    %v1479 = vpack.c.b16 %v983, %v979
    %v1480 = vpack.c.b16 %v984, %v980
    %v1481 = vpack.c.b16 %v989, %v985
    %v1482 = vpack.c.b16 %v990, %v986
    %v1483 = vpack.c.b16 %v991, %v987
    %v1484 = vpack.c.b16 %v992, %v988
    %v1485 = vpack.c.b16 %v997, %v993
    %v1486 = vpack.c.b16 %v998, %v994
    %v1487 = vpack.c.b16 %v999, %v995
    %v1488 = vpack.c.b16 %v1000, %v996
    %v1489 = vpack.c.b16 %v1005, %v1001
    %v1490 = vpack.c.b16 %v1006, %v1002
    %v1491 = vpack.c.b16 %v1007, %v1003
    %v1492 = vpack.c.b16 %v1008, %v1004
    %v1493 = vpack.c.b16 %v1013, %v1009
    %v1494 = vpack.c.b16 %v1014, %v1010
    %v1495 = vpack.c.b16 %v1015, %v1011
    %v1496 = vpack.c.b16 %v1016, %v1012
    %v1497 = vpack.c.b16 %v1021, %v1017
    %v1498 = vpack.c.b16 %v1022, %v1018
    %v1499 = vpack.c.b16 %v1023, %v1019
    %v1500 = vpack.c.b16 %v1024, %v1020
    %v1501 = vpack.c.b16 %v1029, %v1025
    %v1502 = vpack.c.b16 %v1030, %v1026
    %v1503 = vpack.c.b16 %v1031, %v1027
    %v1504 = vpack.c.b16 %v1032, %v1028
    %v1505 = vpack.c.b16 %v1037, %v1033
    %v1506 = vpack.c.b16 %v1038, %v1034
    %v1507 = vpack.c.b16 %v1039, %v1035
    %v1508 = vpack.c.b16 %v1040, %v1036
    %v1509 = vpack.c.b16 %v1045, %v1041
    %v1510 = vpack.c.b16 %v1046, %v1042
    %v1511 = vpack.c.b16 %v1047, %v1043
    %v1512 = vpack.c.b16 %v1048, %v1044
    %v1513 = vpack.c.b16 %v1053, %v1049
    %v1514 = vpack.c.b16 %v1054, %v1050
    %v1515 = vpack.c.b16 %v1055, %v1051
    %v1516 = vpack.c.b16 %v1056, %v1052
    %v1517 = vpack.c.b16 %v1061, %v1057
    %v1518 = vpack.c.b16 %v1062, %v1058
    %v1519 = vpack.c.b16 %v1063, %v1059
    %v1520 = vpack.c.b16 %v1064, %v1060
    %v1521 = vpack.c.b16 %v1069, %v1065
    %v1522 = vpack.c.b16 %v1070, %v1066
    %v1523 = vpack.c.b16 %v1071, %v1067
    %v1524 = vpack.c.b16 %v1072, %v1068
    %v1525 = vpack.c.b16 %v1077, %v1073
    %v1526 = vpack.c.b16 %v1078, %v1074
    %v1527 = vpack.c.b16 %v1079, %v1075
    %v1528 = vpack.c.b16 %v1080, %v1076
    %v1529 = vpack.c.b16 %v1085, %v1081
    %v1530 = vpack.c.b16 %v1086, %v1082
    %v1531 = vpack.c.b16 %v1087, %v1083
    %v1532 = vpack.c.b16 %v1088, %v1084
    %v1533 = vpack.c.b16 %v1093, %v1089
    %v1534 = vpack.c.b16 %v1094, %v1090
    %v1535 = vpack.c.b16 %v1095, %v1091
    %v1536 = vpack.c.b16 %v1096, %v1092
    %v1537 = vpack.c.b16 %v1101, %v1097
    %v1538 = vpack.c.b16 %v1102, %v1098
    %v1539 = vpack.c.b16 %v1103, %v1099
    %v1540 = vpack.c.b16 %v1104, %v1100
    %v1541 = vpack.c.b16 %v1109, %v1105
    %v1542 = vpack.c.b16 %v1110, %v1106
    %v1543 = vpack.c.b16 %v1111, %v1107
    %v1544 = vpack.c.b16 %v1112, %v1108
    %v1545 = vpack.c.b16 %v1117, %v1113
    %v1546 = vpack.c.b16 %v1118, %v1114
    %v1547 = vpack.c.b16 %v1119, %v1115
    %v1548 = vpack.c.b16 %v1120, %v1116
    %v1549 = vpack.c.b16 %v1125, %v1121
    %v1550 = vpack.c.b16 %v1126, %v1122
    %v1551 = vpack.c.b16 %v1127, %v1123
    %v1552 = vpack.c.b16 %v1128, %v1124
    %v1553 = vpack.c.b16 %v1133, %v1129
    %v1554 = vpack.c.b16 %v1134, %v1130
    %v1555 = vpack.c.b16 %v1135, %v1131
    %v1556 = vpack.c.b16 %v1136, %v1132
    %v1557 = vpack.c.b16 %v1141, %v1137
    %v1558 = vpack.c.b16 %v1142, %v1138
    %v1559 = vpack.c.b16 %v1143, %v1139
    %v1560 = vpack.c.b16 %v1144, %v1140
    %v1561 = vpack.c.b16 %v1149, %v1145
    %v1562 = vpack.c.b16 %v1150, %v1146
    %v1563 = vpack.c.b16 %v1151, %v1147
    %v1564 = vpack.c.b16 %v1152, %v1148
    %v1565 = vpack.c.b16 %v1157, %v1153
    %v1566 = vpack.c.b16 %v1158, %v1154
    %v1567 = vpack.c.b16 %v1159, %v1155
    %v1568 = vpack.c.b16 %v1160, %v1156
    %v1569 = vpack.c.b16 %v1165, %v1161
    %v1570 = vpack.c.b16 %v1166, %v1162
    %v1571 = vpack.c.b16 %v1167, %v1163
    %v1572 = vpack.c.b16 %v1168, %v1164
    %v1573 = vpack.c.b16 %v1173, %v1169
    %v1574 = vpack.c.b16 %v1174, %v1170
    %v1575 = vpack.c.b16 %v1175, %v1171
    %v1576 = vpack.c.b16 %v1176, %v1172
    %v1577 = vpack.c.b16 %v1181, %v1177
    %v1578 = vpack.c.b16 %v1182, %v1178
    %v1579 = vpack.c.b16 %v1183, %v1179
    %v1580 = vpack.c.b16 %v1184, %v1180
    %v1581 = vpack.c.b16 %v1189, %v1185
    %v1582 = vpack.c.b16 %v1190, %v1186
    %v1583 = vpack.c.b16 %v1191, %v1187
    %v1584 = vpack.c.b16 %v1192, %v1188
    %v1585 = vpack.c.b16 %v1197, %v1193
    %v1586 = vpack.c.b16 %v1198, %v1194
    %v1587 = vpack.c.b16 %v1199, %v1195
    %v1588 = vpack.c.b16 %v1200, %v1196
    %v1589 = vpack.c.b16 %v1205, %v1201
    %v1590 = vpack.c.b16 %v1206, %v1202
    %v1591 = vpack.c.b16 %v1207, %v1203
    %v1592 = vpack.c.b16 %v1208, %v1204
    %v1593 = vpack.c.b16 %v1213, %v1209
    %v1594 = vpack.c.b16 %v1214, %v1210
    %v1595 = vpack.c.b16 %v1215, %v1211
    %v1596 = vpack.c.b16 %v1216, %v1212
    %v1597 = vpack.c.b16 %v1221, %v1217
    %v1598 = vpack.c.b16 %v1222, %v1218
    %v1599 = vpack.c.b16 %v1223, %v1219
    %v1600 = vpack.c.b16 %v1224, %v1220
    %v1601 = vpack.c.b16 %v1229, %v1225
    %v1602 = vpack.c.b16 %v1230, %v1226
    %v1603 = vpack.c.b16 %v1231, %v1227
    %v1604 = vpack.c.b16 %v1232, %v1228
    %v1605 = vpack.c.b16 %v1237, %v1233
    %v1606 = vpack.c.b16 %v1238, %v1234
    %v1607 = vpack.c.b16 %v1239, %v1235
    %v1608 = vpack.c.b16 %v1240, %v1236
    %v1609 = vpack.c.b16 %v1245, %v1241
    %v1610 = vpack.c.b16 %v1246, %v1242
    %v1611 = vpack.c.b16 %v1247, %v1243
    %v1612 = vpack.c.b16 %v1248, %v1244
    %v1613 = vpack.c.b16 %v1253, %v1249
    %v1614 = vpack.c.b16 %v1254, %v1250
    %v1615 = vpack.c.b16 %v1255, %v1251
    %v1616 = vpack.c.b16 %v1256, %v1252
    %v1617 = vpack.c.b16 %v1261, %v1257
    %v1618 = vpack.c.b16 %v1262, %v1258
    %v1619 = vpack.c.b16 %v1263, %v1259
    %v1620 = vpack.c.b16 %v1264, %v1260
    %v1621 = vpack.c.b16 %v1269, %v1265
    %v1622 = vpack.c.b16 %v1270, %v1266
    %v1623 = vpack.c.b16 %v1271, %v1267
    %v1624 = vpack.c.b16 %v1272, %v1268
    %v1625 = vpack.c.b16 %v1277, %v1273
    %v1626 = vpack.c.b16 %v1278, %v1274
    %v1627 = vpack.c.b16 %v1279, %v1275
    %v1628 = vpack.c.b16 %v1280, %v1276
    %v1629 = vpack.c.b16 %v1285, %v1281
    %v1630 = vpack.c.b16 %v1286, %v1282
    %v1631 = vpack.c.b16 %v1287, %v1283
    %v1632 = vpack.c.b16 %v1288, %v1284
    %v1633 = vpack.c.b16 %v1293, %v1289
    %v1634 = vpack.c.b16 %v1294, %v1290
    %v1635 = vpack.c.b16 %v1295, %v1291
    %v1636 = vpack.c.b16 %v1296, %v1292
    %v1637 = vpack.c.b16 %v1301, %v1297
    %v1638 = vpack.c.b16 %v1302, %v1298
    %v1639 = vpack.c.b16 %v1303, %v1299
    %v1640 = vpack.c.b16 %v1304, %v1300
    %v1641 = vpack.c.b16 %v1309, %v1305
    %v1642 = vpack.c.b16 %v1310, %v1306
    %v1643 = vpack.c.b16 %v1311, %v1307
    %v1644 = vpack.c.b16 %v1312, %v1308
    %v1645 = vpack.c.b16 %v1317, %v1313
    %v1646 = vpack.c.b16 %v1318, %v1314
    %v1647 = vpack.c.b16 %v1319, %v1315
    %v1648 = vpack.c.b16 %v1320, %v1316
    %v1649 = vpack.c.b16 %v1325, %v1321
    %v1650 = vpack.c.b16 %v1326, %v1322
    %v1651 = vpack.c.b16 %v1327, %v1323
    %v1652 = vpack.c.b16 %v1328, %v1324
    %v1653 = vpack.c.b16 %v1333, %v1329
    %v1654 = vpack.c.b16 %v1334, %v1330
    %v1655 = vpack.c.b16 %v1335, %v1331
    %v1656 = vpack.c.b16 %v1336, %v1332
    %1977 = vmatpush.bf16.msra.mxu0 %v1365
    %1978 = vmatpush.bf16.msra.mxu0 %v1361
    %1979 = vmatpush.bf16.msra.mxu0 %v1357
    %1980 = vmatpush.bf16.msra.mxu0 %v1353
    %1981 = vmatpush.bf16.msra.mxu0 %v1349
    %1982 = vmatpush.bf16.msra.mxu0 %v1345
    %1983 = vmatpush.bf16.msra.mxu0 %v1341
    %1984 = vmatpush.bf16.msra.mxu0 %v1337
    %1985 = vmatmul.bf16.gmra.mxu0 %v355
    %v1986 = vpop.f32.mrf.mxu0
    %v1987 = vadd.f32 %v345, %v1986
    %v1988 = vpop.f32.mrf.mxu0
    %1989 = vdwg.mxu0
    %1990 = vmatpush.bf16.msra.mxu0 %v1397
    %1991 = vmatpush.bf16.msra.mxu0 %v1393
    %1992 = vmatpush.bf16.msra.mxu0 %v1389
    %1993 = vmatpush.bf16.msra.mxu0 %v1385
    %1994 = vmatpush.bf16.msra.mxu0 %v1381
    %1995 = vmatpush.bf16.msra.mxu0 %v1377
    %1996 = vmatpush.bf16.msra.mxu0 %v1373
    %1997 = vmatpush.bf16.msra.mxu0 %v1369
    %1998 = vmatmul.bf16.gmra.mxu0 %v356
    %v1999 = vpop.f32.mrf.mxu0
    %v2000 = vadd.f32 %v1987, %v1999
    %v2001 = vpop.f32.mrf.mxu0
    %2002 = vdwg.mxu0
    %2003 = vmatpush.bf16.msra.mxu0 %v1429
    %2004 = vmatpush.bf16.msra.mxu0 %v1425
    %2005 = vmatpush.bf16.msra.mxu0 %v1421
    %2006 = vmatpush.bf16.msra.mxu0 %v1417
    %2007 = vmatpush.bf16.msra.mxu0 %v1413
    %2008 = vmatpush.bf16.msra.mxu0 %v1409
    %2009 = vmatpush.bf16.msra.mxu0 %v1405
    %2010 = vmatpush.bf16.msra.mxu0 %v1401
    %2011 = vmatmul.bf16.gmra.mxu0 %v357
    %v2012 = vpop.f32.mrf.mxu0
    %v2013 = vadd.f32 %v2000, %v2012
    %v2014 = vpop.f32.mrf.mxu0
    %2015 = vdwg.mxu0
    %2016 = vmatpush.bf16.msra.mxu0 %v1461
    %2017 = vmatpush.bf16.msra.mxu0 %v1457
    %2018 = vmatpush.bf16.msra.mxu0 %v1453
    %2019 = vmatpush.bf16.msra.mxu0 %v1449
    %2020 = vmatpush.bf16.msra.mxu0 %v1445
    %2021 = vmatpush.bf16.msra.mxu0 %v1441
    %2022 = vmatpush.bf16.msra.mxu0 %v1437
    %2023 = vmatpush.bf16.msra.mxu0 %v1433
    %2024 = vmatmul.bf16.gmra.mxu0 %v358
    %v2025 = vpop.f32.mrf.mxu0
    %v2026 = vadd.f32 %v2013, %v2025
    %v2027 = vpop.f32.mrf.mxu0
    %2028 = vdwg.mxu0
    %2029 = vmatpush.bf16.msra.mxu0 %v1493
    %2030 = vmatpush.bf16.msra.mxu0 %v1489
    %2031 = vmatpush.bf16.msra.mxu0 %v1485
    %2032 = vmatpush.bf16.msra.mxu0 %v1481
    %2033 = vmatpush.bf16.msra.mxu0 %v1477
    %2034 = vmatpush.bf16.msra.mxu0 %v1473
    %2035 = vmatpush.bf16.msra.mxu0 %v1469
    %2036 = vmatpush.bf16.msra.mxu0 %v1465
    %2037 = vmatmul.bf16.gmra.mxu0 %v359
    %v2038 = vpop.f32.mrf.mxu0
    %v2039 = vadd.f32 %v2026, %v2038
    %v2040 = vpop.f32.mrf.mxu0
    %2041 = vdwg.mxu0
    %2042 = vmatpush.bf16.msra.mxu0 %v1525
    %2043 = vmatpush.bf16.msra.mxu0 %v1521
    %2044 = vmatpush.bf16.msra.mxu0 %v1517
    %2045 = vmatpush.bf16.msra.mxu0 %v1513
    %2046 = vmatpush.bf16.msra.mxu0 %v1509
    %2047 = vmatpush.bf16.msra.mxu0 %v1505
    %2048 = vmatpush.bf16.msra.mxu0 %v1501
    %2049 = vmatpush.bf16.msra.mxu0 %v1497
    %2050 = vmatmul.bf16.gmra.mxu0 %v360
    %v2051 = vpop.f32.mrf.mxu0
    %v2052 = vadd.f32 %v2039, %v2051
    %v2053 = vpop.f32.mrf.mxu0
    %2054 = vdwg.mxu0
    %2055 = vmatpush.bf16.msra.mxu0 %v1557
    %2056 = vmatpush.bf16.msra.mxu0 %v1553
    %2057 = vmatpush.bf16.msra.mxu0 %v1549
    %2058 = vmatpush.bf16.msra.mxu0 %v1545
    %2059 = vmatpush.bf16.msra.mxu0 %v1541
    %2060 = vmatpush.bf16.msra.mxu0 %v1537
    %2061 = vmatpush.bf16.msra.mxu0 %v1533
    %2062 = vmatpush.bf16.msra.mxu0 %v1529
    %2063 = vmatmul.bf16.gmra.mxu0 %v361
    %v2064 = vpop.f32.mrf.mxu0
    %v2065 = vadd.f32 %v2052, %v2064
    %v2066 = vpop.f32.mrf.mxu0
    %2067 = vdwg.mxu0
    %2068 = vmatpush.bf16.msra.mxu0 %v1589
    %2069 = vmatpush.bf16.msra.mxu0 %v1585
    %2070 = vmatpush.bf16.msra.mxu0 %v1581
    %2071 = vmatpush.bf16.msra.mxu0 %v1577
    %2072 = vmatpush.bf16.msra.mxu0 %v1573
    %2073 = vmatpush.bf16.msra.mxu0 %v1569
    %2074 = vmatpush.bf16.msra.mxu0 %v1565
    %2075 = vmatpush.bf16.msra.mxu0 %v1561
    %2076 = vmatmul.bf16.gmra.mxu0 %v362
    %v2077 = vpop.f32.mrf.mxu0
    %v2078 = vadd.f32 %v2065, %v2077
    %v2079 = vpop.f32.mrf.mxu0
    %2080 = vdwg.mxu0
    %2081 = vmatpush.bf16.msra.mxu0 %v1621
    %2082 = vmatpush.bf16.msra.mxu0 %v1617
    %2083 = vmatpush.bf16.msra.mxu0 %v1613
    %2084 = vmatpush.bf16.msra.mxu0 %v1609
    %2085 = vmatpush.bf16.msra.mxu0 %v1605
    %2086 = vmatpush.bf16.msra.mxu0 %v1601
    %2087 = vmatpush.bf16.msra.mxu0 %v1597
    %2088 = vmatpush.bf16.msra.mxu0 %v1593
    %2089 = vmatmul.bf16.gmra.mxu0 %v365
    %v2090 = vpop.f32.mrf.mxu0
    %v2091 = vadd.f32 %v2078, %v2090
    %v2092 = vpop.f32.mrf.mxu0
    %2093 = vdwg.mxu0
    %2094 = vmatpush.bf16.msra.mxu0 %v1653
    %2095 = vmatpush.bf16.msra.mxu0 %v1649
    %2096 = vmatpush.bf16.msra.mxu0 %v1645
    %2097 = vmatpush.bf16.msra.mxu0 %v1641
    %2098 = vmatpush.bf16.msra.mxu0 %v1637
    %2099 = vmatpush.bf16.msra.mxu0 %v1633
    %2100 = vmatpush.bf16.msra.mxu0 %v1629
    %2101 = vmatpush.bf16.msra.mxu0 %v1625
    %2102 = vmatmul.bf16.gmra.mxu0 %v366
    %v2103 = vpop.f32.mrf.mxu0
    %v2104 = vadd.f32 %v2091, %v2103
    %v2105 = vpop.f32.mrf.mxu0
    %2106 = vdwg.mxu0
    %2107 = vmatpush.bf16.msra.mxu0 %v1366
    %2108 = vmatpush.bf16.msra.mxu0 %v1362
    %2109 = vmatpush.bf16.msra.mxu0 %v1358
    %2110 = vmatpush.bf16.msra.mxu0 %v1354
    %2111 = vmatpush.bf16.msra.mxu0 %v1350
    %2112 = vmatpush.bf16.msra.mxu0 %v1346
    %2113 = vmatpush.bf16.msra.mxu0 %v1342
    %2114 = vmatpush.bf16.msra.mxu0 %v1338
    %2115 = vmatmul.bf16.gmra.mxu0 %v355
    %v2116 = vpop.f32.mrf.mxu0
    %v2117 = vadd.f32 %v346, %v2116
    %v2118 = vpop.f32.mrf.mxu0
    %2119 = vdwg.mxu0
    %2120 = vmatpush.bf16.msra.mxu0 %v1398
    %2121 = vmatpush.bf16.msra.mxu0 %v1394
    %2122 = vmatpush.bf16.msra.mxu0 %v1390
    %2123 = vmatpush.bf16.msra.mxu0 %v1386
    %2124 = vmatpush.bf16.msra.mxu0 %v1382
    %2125 = vmatpush.bf16.msra.mxu0 %v1378
    %2126 = vmatpush.bf16.msra.mxu0 %v1374
    %2127 = vmatpush.bf16.msra.mxu0 %v1370
    %2128 = vmatmul.bf16.gmra.mxu0 %v356
    %v2129 = vpop.f32.mrf.mxu0
    %v2130 = vadd.f32 %v2117, %v2129
    %v2131 = vpop.f32.mrf.mxu0
    %2132 = vdwg.mxu0
    %2133 = vmatpush.bf16.msra.mxu0 %v1430
    %2134 = vmatpush.bf16.msra.mxu0 %v1426
    %2135 = vmatpush.bf16.msra.mxu0 %v1422
    %2136 = vmatpush.bf16.msra.mxu0 %v1418
    %2137 = vmatpush.bf16.msra.mxu0 %v1414
    %2138 = vmatpush.bf16.msra.mxu0 %v1410
    %2139 = vmatpush.bf16.msra.mxu0 %v1406
    %2140 = vmatpush.bf16.msra.mxu0 %v1402
    %2141 = vmatmul.bf16.gmra.mxu0 %v357
    %v2142 = vpop.f32.mrf.mxu0
    %v2143 = vadd.f32 %v2130, %v2142
    %v2144 = vpop.f32.mrf.mxu0
    %2145 = vdwg.mxu0
    %2146 = vmatpush.bf16.msra.mxu0 %v1462
    %2147 = vmatpush.bf16.msra.mxu0 %v1458
    %2148 = vmatpush.bf16.msra.mxu0 %v1454
    %2149 = vmatpush.bf16.msra.mxu0 %v1450
    %2150 = vmatpush.bf16.msra.mxu0 %v1446
    %2151 = vmatpush.bf16.msra.mxu0 %v1442
    %2152 = vmatpush.bf16.msra.mxu0 %v1438
    %2153 = vmatpush.bf16.msra.mxu0 %v1434
    %2154 = vmatmul.bf16.gmra.mxu0 %v358
    %v2155 = vpop.f32.mrf.mxu0
    %v2156 = vadd.f32 %v2143, %v2155
    %v2157 = vpop.f32.mrf.mxu0
    %2158 = vdwg.mxu0
    %2159 = vmatpush.bf16.msra.mxu0 %v1494
    %2160 = vmatpush.bf16.msra.mxu0 %v1490
    %2161 = vmatpush.bf16.msra.mxu0 %v1486
    %2162 = vmatpush.bf16.msra.mxu0 %v1482
    %2163 = vmatpush.bf16.msra.mxu0 %v1478
    %2164 = vmatpush.bf16.msra.mxu0 %v1474
    %2165 = vmatpush.bf16.msra.mxu0 %v1470
    %2166 = vmatpush.bf16.msra.mxu0 %v1466
    %2167 = vmatmul.bf16.gmra.mxu0 %v359
    %v2168 = vpop.f32.mrf.mxu0
    %v2169 = vadd.f32 %v2156, %v2168
    %v2170 = vpop.f32.mrf.mxu0
    %2171 = vdwg.mxu0
    %2172 = vmatpush.bf16.msra.mxu0 %v1526
    %2173 = vmatpush.bf16.msra.mxu0 %v1522
    %2174 = vmatpush.bf16.msra.mxu0 %v1518
    %2175 = vmatpush.bf16.msra.mxu0 %v1514
    %2176 = vmatpush.bf16.msra.mxu0 %v1510
    %2177 = vmatpush.bf16.msra.mxu0 %v1506
    %2178 = vmatpush.bf16.msra.mxu0 %v1502
    %2179 = vmatpush.bf16.msra.mxu0 %v1498
    %2180 = vmatmul.bf16.gmra.mxu0 %v360
    %v2181 = vpop.f32.mrf.mxu0
    %v2182 = vadd.f32 %v2169, %v2181
    %v2183 = vpop.f32.mrf.mxu0
    %2184 = vdwg.mxu0
    %2185 = vmatpush.bf16.msra.mxu0 %v1558
    %2186 = vmatpush.bf16.msra.mxu0 %v1554
    %2187 = vmatpush.bf16.msra.mxu0 %v1550
    %2188 = vmatpush.bf16.msra.mxu0 %v1546
    %2189 = vmatpush.bf16.msra.mxu0 %v1542
    %2190 = vmatpush.bf16.msra.mxu0 %v1538
    %2191 = vmatpush.bf16.msra.mxu0 %v1534
    %2192 = vmatpush.bf16.msra.mxu0 %v1530
    %2193 = vmatmul.bf16.gmra.mxu0 %v361
    %v2194 = vpop.f32.mrf.mxu0
    %v2195 = vadd.f32 %v2182, %v2194
    %v2196 = vpop.f32.mrf.mxu0
    %2197 = vdwg.mxu0
    %2198 = vmatpush.bf16.msra.mxu0 %v1590
    %2199 = vmatpush.bf16.msra.mxu0 %v1586
    %2200 = vmatpush.bf16.msra.mxu0 %v1582
    %2201 = vmatpush.bf16.msra.mxu0 %v1578
    %2202 = vmatpush.bf16.msra.mxu0 %v1574
    %2203 = vmatpush.bf16.msra.mxu0 %v1570
    %2204 = vmatpush.bf16.msra.mxu0 %v1566
    %2205 = vmatpush.bf16.msra.mxu0 %v1562
    %2206 = vmatmul.bf16.gmra.mxu0 %v362
    %v2207 = vpop.f32.mrf.mxu0
    %v2208 = vadd.f32 %v2195, %v2207
    %v2209 = vpop.f32.mrf.mxu0
    %2210 = vdwg.mxu0
    %2211 = vmatpush.bf16.msra.mxu0 %v1622
    %2212 = vmatpush.bf16.msra.mxu0 %v1618
    %2213 = vmatpush.bf16.msra.mxu0 %v1614
    %2214 = vmatpush.bf16.msra.mxu0 %v1610
    %2215 = vmatpush.bf16.msra.mxu0 %v1606
    %2216 = vmatpush.bf16.msra.mxu0 %v1602
    %2217 = vmatpush.bf16.msra.mxu0 %v1598
    %2218 = vmatpush.bf16.msra.mxu0 %v1594
    %2219 = vmatmul.bf16.gmra.mxu0 %v365
    %v2220 = vpop.f32.mrf.mxu0
    %v2221 = vadd.f32 %v2208, %v2220
    %v2222 = vpop.f32.mrf.mxu0
    %2223 = vdwg.mxu0
    %2224 = vmatpush.bf16.msra.mxu0 %v1654
    %2225 = vmatpush.bf16.msra.mxu0 %v1650
    %2226 = vmatpush.bf16.msra.mxu0 %v1646
    %2227 = vmatpush.bf16.msra.mxu0 %v1642
    %2228 = vmatpush.bf16.msra.mxu0 %v1638
    %2229 = vmatpush.bf16.msra.mxu0 %v1634
    %2230 = vmatpush.bf16.msra.mxu0 %v1630
    %2231 = vmatpush.bf16.msra.mxu0 %v1626
    %2232 = vmatmul.bf16.gmra.mxu0 %v366
    %v2233 = vpop.f32.mrf.mxu0
    %v2234 = vadd.f32 %v2221, %v2233
    %v2235 = vpop.f32.mrf.mxu0
    %2236 = vdwg.mxu0
    %2237 = vmatpush.bf16.msra.mxu0 %v1367
    %2238 = vmatpush.bf16.msra.mxu0 %v1363
    %2239 = vmatpush.bf16.msra.mxu0 %v1359
    %2240 = vmatpush.bf16.msra.mxu0 %v1355
    %2241 = vmatpush.bf16.msra.mxu0 %v1351
    %2242 = vmatpush.bf16.msra.mxu0 %v1347
    %2243 = vmatpush.bf16.msra.mxu0 %v1343
    %2244 = vmatpush.bf16.msra.mxu0 %v1339
    %2245 = vmatmul.bf16.gmra.mxu0 %v355
    %v2246 = vpop.f32.mrf.mxu0
    %v2247 = vadd.f32 %v347, %v2246
    %v2248 = vpop.f32.mrf.mxu0
    %2249 = vdwg.mxu0
    %2250 = vmatpush.bf16.msra.mxu0 %v1399
    %2251 = vmatpush.bf16.msra.mxu0 %v1395
    %2252 = vmatpush.bf16.msra.mxu0 %v1391
    %2253 = vmatpush.bf16.msra.mxu0 %v1387
    %2254 = vmatpush.bf16.msra.mxu0 %v1383
    %2255 = vmatpush.bf16.msra.mxu0 %v1379
    %2256 = vmatpush.bf16.msra.mxu0 %v1375
    %2257 = vmatpush.bf16.msra.mxu0 %v1371
    %2258 = vmatmul.bf16.gmra.mxu0 %v356
    %v2259 = vpop.f32.mrf.mxu0
    %v2260 = vadd.f32 %v2247, %v2259
    %v2261 = vpop.f32.mrf.mxu0
    %2262 = vdwg.mxu0
    %2263 = vmatpush.bf16.msra.mxu0 %v1431
    %2264 = vmatpush.bf16.msra.mxu0 %v1427
    %2265 = vmatpush.bf16.msra.mxu0 %v1423
    %2266 = vmatpush.bf16.msra.mxu0 %v1419
    %2267 = vmatpush.bf16.msra.mxu0 %v1415
    %2268 = vmatpush.bf16.msra.mxu0 %v1411
    %2269 = vmatpush.bf16.msra.mxu0 %v1407
    %2270 = vmatpush.bf16.msra.mxu0 %v1403
    %2271 = vmatmul.bf16.gmra.mxu0 %v357
    %v2272 = vpop.f32.mrf.mxu0
    %v2273 = vadd.f32 %v2260, %v2272
    %v2274 = vpop.f32.mrf.mxu0
    %2275 = vdwg.mxu0
    %2276 = vmatpush.bf16.msra.mxu0 %v1463
    %2277 = vmatpush.bf16.msra.mxu0 %v1459
    %2278 = vmatpush.bf16.msra.mxu0 %v1455
    %2279 = vmatpush.bf16.msra.mxu0 %v1451
    %2280 = vmatpush.bf16.msra.mxu0 %v1447
    %2281 = vmatpush.bf16.msra.mxu0 %v1443
    %2282 = vmatpush.bf16.msra.mxu0 %v1439
    %2283 = vmatpush.bf16.msra.mxu0 %v1435
    %2284 = vmatmul.bf16.gmra.mxu0 %v358
    %v2285 = vpop.f32.mrf.mxu0
    %v2286 = vadd.f32 %v2273, %v2285
    %v2287 = vpop.f32.mrf.mxu0
    %2288 = vdwg.mxu0
    %2289 = vmatpush.bf16.msra.mxu0 %v1495
    %2290 = vmatpush.bf16.msra.mxu0 %v1491
    %2291 = vmatpush.bf16.msra.mxu0 %v1487
    %2292 = vmatpush.bf16.msra.mxu0 %v1483
    %2293 = vmatpush.bf16.msra.mxu0 %v1479
    %2294 = vmatpush.bf16.msra.mxu0 %v1475
    %2295 = vmatpush.bf16.msra.mxu0 %v1471
    %2296 = vmatpush.bf16.msra.mxu0 %v1467
    %2297 = vmatmul.bf16.gmra.mxu0 %v359
    %v2298 = vpop.f32.mrf.mxu0
    %v2299 = vadd.f32 %v2286, %v2298
    %v2300 = vpop.f32.mrf.mxu0
    %2301 = vdwg.mxu0
    %2302 = vmatpush.bf16.msra.mxu0 %v1527
    %2303 = vmatpush.bf16.msra.mxu0 %v1523
    %2304 = vmatpush.bf16.msra.mxu0 %v1519
    %2305 = vmatpush.bf16.msra.mxu0 %v1515
    %2306 = vmatpush.bf16.msra.mxu0 %v1511
    %2307 = vmatpush.bf16.msra.mxu0 %v1507
    %2308 = vmatpush.bf16.msra.mxu0 %v1503
    %2309 = vmatpush.bf16.msra.mxu0 %v1499
    %2310 = vmatmul.bf16.gmra.mxu0 %v360
    %v2311 = vpop.f32.mrf.mxu0
    %v2312 = vadd.f32 %v2299, %v2311
    %v2313 = vpop.f32.mrf.mxu0
    %2314 = vdwg.mxu0
    %2315 = vmatpush.bf16.msra.mxu0 %v1559
    %2316 = vmatpush.bf16.msra.mxu0 %v1555
    %2317 = vmatpush.bf16.msra.mxu0 %v1551
    %2318 = vmatpush.bf16.msra.mxu0 %v1547
    %2319 = vmatpush.bf16.msra.mxu0 %v1543
    %2320 = vmatpush.bf16.msra.mxu0 %v1539
    %2321 = vmatpush.bf16.msra.mxu0 %v1535
    %2322 = vmatpush.bf16.msra.mxu0 %v1531
    %2323 = vmatmul.bf16.gmra.mxu0 %v361
    %v2324 = vpop.f32.mrf.mxu0
    %v2325 = vadd.f32 %v2312, %v2324
    %v2326 = vpop.f32.mrf.mxu0
    %2327 = vdwg.mxu0
    %2328 = vmatpush.bf16.msra.mxu0 %v1591
    %2329 = vmatpush.bf16.msra.mxu0 %v1587
    %2330 = vmatpush.bf16.msra.mxu0 %v1583
    %2331 = vmatpush.bf16.msra.mxu0 %v1579
    %2332 = vmatpush.bf16.msra.mxu0 %v1575
    %2333 = vmatpush.bf16.msra.mxu0 %v1571
    %2334 = vmatpush.bf16.msra.mxu0 %v1567
    %2335 = vmatpush.bf16.msra.mxu0 %v1563
    %2336 = vmatmul.bf16.gmra.mxu0 %v362
    %v2337 = vpop.f32.mrf.mxu0
    %v2338 = vadd.f32 %v2325, %v2337
    %v2339 = vpop.f32.mrf.mxu0
    %2340 = vdwg.mxu0
    %2341 = vmatpush.bf16.msra.mxu0 %v1623
    %2342 = vmatpush.bf16.msra.mxu0 %v1619
    %2343 = vmatpush.bf16.msra.mxu0 %v1615
    %2344 = vmatpush.bf16.msra.mxu0 %v1611
    %2345 = vmatpush.bf16.msra.mxu0 %v1607
    %2346 = vmatpush.bf16.msra.mxu0 %v1603
    %2347 = vmatpush.bf16.msra.mxu0 %v1599
    %2348 = vmatpush.bf16.msra.mxu0 %v1595
    %2349 = vmatmul.bf16.gmra.mxu0 %v365
    %v2350 = vpop.f32.mrf.mxu0
    %v2351 = vadd.f32 %v2338, %v2350
    %v2352 = vpop.f32.mrf.mxu0
    %2353 = vdwg.mxu0
    %2354 = vmatpush.bf16.msra.mxu0 %v1655
    %2355 = vmatpush.bf16.msra.mxu0 %v1651
    %2356 = vmatpush.bf16.msra.mxu0 %v1647
    %2357 = vmatpush.bf16.msra.mxu0 %v1643
    %2358 = vmatpush.bf16.msra.mxu0 %v1639
    %2359 = vmatpush.bf16.msra.mxu0 %v1635
    %2360 = vmatpush.bf16.msra.mxu0 %v1631
    %2361 = vmatpush.bf16.msra.mxu0 %v1627
    %2362 = vmatmul.bf16.gmra.mxu0 %v366
    %v2363 = vpop.f32.mrf.mxu0
    %v2364 = vadd.f32 %v2351, %v2363
    %v2365 = vpop.f32.mrf.mxu0
    %2366 = vdwg.mxu0
    %2367 = vmatpush.bf16.msra.mxu0 %v1368
    %2368 = vmatpush.bf16.msra.mxu0 %v1364
    %2369 = vmatpush.bf16.msra.mxu0 %v1360
    %2370 = vmatpush.bf16.msra.mxu0 %v1356
    %2371 = vmatpush.bf16.msra.mxu0 %v1352
    %2372 = vmatpush.bf16.msra.mxu0 %v1348
    %2373 = vmatpush.bf16.msra.mxu0 %v1344
    %2374 = vmatpush.bf16.msra.mxu0 %v1340
    %2375 = vmatmul.bf16.gmra.mxu0 %v355
    %v2376 = vpop.f32.mrf.mxu0
    %v2377 = vadd.f32 %v348, %v2376
    %v2378 = vpop.f32.mrf.mxu0
    %2379 = vdwg.mxu0
    %2380 = vmatpush.bf16.msra.mxu0 %v1400
    %2381 = vmatpush.bf16.msra.mxu0 %v1396
    %2382 = vmatpush.bf16.msra.mxu0 %v1392
    %2383 = vmatpush.bf16.msra.mxu0 %v1388
    %2384 = vmatpush.bf16.msra.mxu0 %v1384
    %2385 = vmatpush.bf16.msra.mxu0 %v1380
    %2386 = vmatpush.bf16.msra.mxu0 %v1376
    %2387 = vmatpush.bf16.msra.mxu0 %v1372
    %2388 = vmatmul.bf16.gmra.mxu0 %v356
    %v2389 = vpop.f32.mrf.mxu0
    %v2390 = vadd.f32 %v2377, %v2389
    %v2391 = vpop.f32.mrf.mxu0
    %2392 = vdwg.mxu0
    %2393 = vmatpush.bf16.msra.mxu0 %v1432
    %2394 = vmatpush.bf16.msra.mxu0 %v1428
    %2395 = vmatpush.bf16.msra.mxu0 %v1424
    %2396 = vmatpush.bf16.msra.mxu0 %v1420
    %2397 = vmatpush.bf16.msra.mxu0 %v1416
    %2398 = vmatpush.bf16.msra.mxu0 %v1412
    %2399 = vmatpush.bf16.msra.mxu0 %v1408
    %2400 = vmatpush.bf16.msra.mxu0 %v1404
    %2401 = vmatmul.bf16.gmra.mxu0 %v357
    %v2402 = vpop.f32.mrf.mxu0
    %v2403 = vadd.f32 %v2390, %v2402
    %v2404 = vpop.f32.mrf.mxu0
    %2405 = vdwg.mxu0
    %2406 = vmatpush.bf16.msra.mxu0 %v1464
    %2407 = vmatpush.bf16.msra.mxu0 %v1460
    %2408 = vmatpush.bf16.msra.mxu0 %v1456
    %2409 = vmatpush.bf16.msra.mxu0 %v1452
    %2410 = vmatpush.bf16.msra.mxu0 %v1448
    %2411 = vmatpush.bf16.msra.mxu0 %v1444
    %2412 = vmatpush.bf16.msra.mxu0 %v1440
    %2413 = vmatpush.bf16.msra.mxu0 %v1436
    %2414 = vmatmul.bf16.gmra.mxu0 %v358
    %v2415 = vpop.f32.mrf.mxu0
    %v2416 = vadd.f32 %v2403, %v2415
    %v2417 = vpop.f32.mrf.mxu0
    %2418 = vdwg.mxu0
    %2419 = vmatpush.bf16.msra.mxu0 %v1496
    %2420 = vmatpush.bf16.msra.mxu0 %v1492
    %2421 = vmatpush.bf16.msra.mxu0 %v1488
    %2422 = vmatpush.bf16.msra.mxu0 %v1484
    %2423 = vmatpush.bf16.msra.mxu0 %v1480
    %2424 = vmatpush.bf16.msra.mxu0 %v1476
    %2425 = vmatpush.bf16.msra.mxu0 %v1472
    %2426 = vmatpush.bf16.msra.mxu0 %v1468
    %2427 = vmatmul.bf16.gmra.mxu0 %v359
    %v2428 = vpop.f32.mrf.mxu0
    %v2429 = vadd.f32 %v2416, %v2428
    %v2430 = vpop.f32.mrf.mxu0
    %2431 = vdwg.mxu0
    %2432 = vmatpush.bf16.msra.mxu0 %v1528
    %2433 = vmatpush.bf16.msra.mxu0 %v1524
    %2434 = vmatpush.bf16.msra.mxu0 %v1520
    %2435 = vmatpush.bf16.msra.mxu0 %v1516
    %2436 = vmatpush.bf16.msra.mxu0 %v1512
    %2437 = vmatpush.bf16.msra.mxu0 %v1508
    %2438 = vmatpush.bf16.msra.mxu0 %v1504
    %2439 = vmatpush.bf16.msra.mxu0 %v1500
    %2440 = vmatmul.bf16.gmra.mxu0 %v360
    %v2441 = vpop.f32.mrf.mxu0
    %v2442 = vadd.f32 %v2429, %v2441
    %v2443 = vpop.f32.mrf.mxu0
    %2444 = vdwg.mxu0
    %2445 = vmatpush.bf16.msra.mxu0 %v1560
    %2446 = vmatpush.bf16.msra.mxu0 %v1556
    %2447 = vmatpush.bf16.msra.mxu0 %v1552
    %2448 = vmatpush.bf16.msra.mxu0 %v1548
    %2449 = vmatpush.bf16.msra.mxu0 %v1544
    %2450 = vmatpush.bf16.msra.mxu0 %v1540
    %2451 = vmatpush.bf16.msra.mxu0 %v1536
    %2452 = vmatpush.bf16.msra.mxu0 %v1532
    %2453 = vmatmul.bf16.gmra.mxu0 %v361
    %v2454 = vpop.f32.mrf.mxu0
    %v2455 = vadd.f32 %v2442, %v2454
    %v2456 = vpop.f32.mrf.mxu0
    %2457 = vdwg.mxu0
    %2458 = vmatpush.bf16.msra.mxu0 %v1592
    %2459 = vmatpush.bf16.msra.mxu0 %v1588
    %2460 = vmatpush.bf16.msra.mxu0 %v1584
    %2461 = vmatpush.bf16.msra.mxu0 %v1580
    %2462 = vmatpush.bf16.msra.mxu0 %v1576
    %2463 = vmatpush.bf16.msra.mxu0 %v1572
    %2464 = vmatpush.bf16.msra.mxu0 %v1568
    %2465 = vmatpush.bf16.msra.mxu0 %v1564
    %2466 = vmatmul.bf16.gmra.mxu0 %v362
    %v2467 = vpop.f32.mrf.mxu0
    %v2468 = vadd.f32 %v2455, %v2467
    %v2469 = vpop.f32.mrf.mxu0
    %2470 = vdwg.mxu0
    %2471 = vmatpush.bf16.msra.mxu0 %v1624
    %2472 = vmatpush.bf16.msra.mxu0 %v1620
    %2473 = vmatpush.bf16.msra.mxu0 %v1616
    %2474 = vmatpush.bf16.msra.mxu0 %v1612
    %2475 = vmatpush.bf16.msra.mxu0 %v1608
    %2476 = vmatpush.bf16.msra.mxu0 %v1604
    %2477 = vmatpush.bf16.msra.mxu0 %v1600
    %2478 = vmatpush.bf16.msra.mxu0 %v1596
    %2479 = vmatmul.bf16.gmra.mxu0 %v365
    %v2480 = vpop.f32.mrf.mxu0
    %v2481 = vadd.f32 %v2468, %v2480
    %v2482 = vpop.f32.mrf.mxu0
    %2483 = vdwg.mxu0
    %2484 = vmatpush.bf16.msra.mxu0 %v1656
    %2485 = vmatpush.bf16.msra.mxu0 %v1652
    %2486 = vmatpush.bf16.msra.mxu0 %v1648
    %2487 = vmatpush.bf16.msra.mxu0 %v1644
    %2488 = vmatpush.bf16.msra.mxu0 %v1640
    %2489 = vmatpush.bf16.msra.mxu0 %v1636
    %2490 = vmatpush.bf16.msra.mxu0 %v1632
    %2491 = vmatpush.bf16.msra.mxu0 %v1628
    %2492 = vmatmul.bf16.gmra.mxu0 %v366
    %v2493 = vpop.f32.mrf.mxu0
    %v2494 = vadd.f32 %v2481, %v2493
    %v2495 = vpop.f32.mrf.mxu0
    %2496 = vdwg.mxu0
    %v2497 = vmax.f32 %v2104, 0.0
    %v2498 = vmax.f32 %v2234, 0.0
    %v2499 = vmax.f32 %v2364, 0.0
    %v2500 = vmax.f32 %v2494, 0.0
    %v2501 = vpack.c.bf16 %v2497, %v2497
    %v2502 = vpack.c.bf16 %v2498, %v2498
    %v2503 = vpack.c.bf16 %v2499, %v2499
    %v2504 = vpack.c.bf16 %v2500, %v2500
    %v2505 = vld [vmem:[%s3] sm:$0xf]
    %v2506 = vld [vmem:[%s3 + $0x4] sm:$0xf]
    %v2507 = vld [vmem:[%s3 + $0x8] sm:$0xf]
    %v2508 = vld [vmem:[%s3 + $0xc] sm:$0xf]
    %v2509 = vld [vmem:[%s3 + $0x10] sm:$0xf]
    %v2510 = vld [vmem:[%s3 + $0x14] sm:$0xf]
    %v2511 = vld [vmem:[%s3 + $0x18] sm:$0xf]
    %v2512 = vld [vmem:[%s3 + $0x1c] sm:$0xf]
    %v2513 = vld [vmem:[%s3 + $0x20] sm:$0xf]
    %v2514 = vld [vmem:[%s3 + $0x24] sm:$0xf]
    %v2515 = vld [vmem:[%s3 + $0x28] sm:$0xf]
    %v2516 = vld [vmem:[%s3 + $0x2c] sm:$0xf]
    %v2517 = vld [vmem:[%s3 + $0x30] sm:$0xf]
    %v2518 = vld [vmem:[%s3 + $0x34] sm:$0xf]
    %v2519 = vld [vmem:[%s3 + $0x38] sm:$0xf]
    %v2520 = vld [vmem:[%s3 + $0x3c] sm:$0xf]
    %v2521 = vld [vmem:[%s3 + $0x40] sm:$0xf]
    %v2522 = vld [vmem:[%s3 + $0x44] sm:$0xf]
    %v2523 = vld [vmem:[%s3 + $0x48] sm:$0xf]
    %v2524 = vld [vmem:[%s3 + $0x4c] sm:$0xf]
    %v2525 = vld [vmem:[%s3 + $0x50] sm:$0xf]
    %v2526 = vld [vmem:[%s3 + $0x54] sm:$0xf]
    %v2527 = vld [vmem:[%s3 + $0x58] sm:$0xf]
    %v2528 = vld [vmem:[%s3 + $0x5c] sm:$0xf]
    %v2529 = vld [vmem:[%s3 + $0x60] sm:$0xf]
    %v2530 = vld [vmem:[%s3 + $0x64] sm:$0xf]
    %v2531 = vld [vmem:[%s3 + $0x68] sm:$0xf]
    %v2532 = vld [vmem:[%s3 + $0x6c] sm:$0xf]
    %v2533 = vld [vmem:[%s3 + $0x70] sm:$0xf]
    %v2534 = vld [vmem:[%s3 + $0x74] sm:$0xf]
    %v2535 = vld [vmem:[%s3 + $0x78] sm:$0xf]
    %v2536 = vld [vmem:[%s3 + $0x7c] sm:$0xf]
    %v2537 = vld [vmem:[%s3 + $0x80] sm:$0xf]
    %v2538 = vld [vmem:[%s3 + $0x84] sm:$0xf]
    %v2539 = vld [vmem:[%s3 + $0x88] sm:$0xf]
    %v2540 = vld [vmem:[%s3 + $0x8c] sm:$0xf]
    %v2541 = vld [vmem:[%s3 + $0x90] sm:$0xf]
    %v2542 = vld [vmem:[%s3 + $0x94] sm:$0xf]
    %v2543 = vld [vmem:[%s3 + $0x98] sm:$0xf]
    %v2544 = vld [vmem:[%s3 + $0x9c] sm:$0xf]
    %v2545 = vld [vmem:[%s3 + $0xa0] sm:$0xf]
    %v2546 = vld [vmem:[%s3 + $0xa4] sm:$0xf]
    %v2547 = vld [vmem:[%s3 + $0xa8] sm:$0xf]
    %v2548 = vld [vmem:[%s3 + $0xac] sm:$0xf]
    %v2549 = vld [vmem:[%s3 + $0xb0] sm:$0xf]
    %v2550 = vld [vmem:[%s3 + $0xb4] sm:$0xf]
    %v2551 = vld [vmem:[%s3 + $0xb8] sm:$0xf]
    %v2552 = vld [vmem:[%s3 + $0xbc] sm:$0xf]
    %v2553 = vld [vmem:[%s3 + $0xc0] sm:$0xf]
    %v2554 = vld [vmem:[%s3 + $0xc4] sm:$0xf]
    %v2555 = vld [vmem:[%s3 + $0xc8] sm:$0xf]
    %v2556 = vld [vmem:[%s3 + $0xcc] sm:$0xf]
    %v2557 = vld [vmem:[%s3 + $0xd0] sm:$0xf]
    %v2558 = vld [vmem:[%s3 + $0xd4] sm:$0xf]
    %v2559 = vld [vmem:[%s3 + $0xd8] sm:$0xf]
    %v2560 = vld [vmem:[%s3 + $0xdc] sm:$0xf]
    %v2561 = vld [vmem:[%s3 + $0xe0] sm:$0xf]
    %v2562 = vld [vmem:[%s3 + $0xe4] sm:$0xf]
    %v2563 = vld [vmem:[%s3 + $0xe8] sm:$0xf]
    %v2564 = vld [vmem:[%s3 + $0xec] sm:$0xf]
    %v2565 = vld [vmem:[%s3 + $0xf0] sm:$0xf]
    %v2566 = vld [vmem:[%s3 + $0xf4] sm:$0xf]
    %v2567 = vld [vmem:[%s3 + $0xf8] sm:$0xf]
    %v2568 = vld [vmem:[%s3 + $0xfc] sm:$0xf]
    %v2569 = vld [vmem:[%s4] sm:$0x1]
    %v2571 = vperm.slane %v2569, 0
    %v2637 = vunpack.c.l.b16 %v2505
    %v2638 = vunpack.c.l.b16 %v2506
    %v2639 = vunpack.c.l.b16 %v2507
    %v2640 = vunpack.c.l.b16 %v2508
    %v2641 = vunpack.c.l.b16 %v2509
    %v2642 = vunpack.c.l.b16 %v2510
    %v2643 = vunpack.c.l.b16 %v2511
    %v2644 = vunpack.c.l.b16 %v2512
    %v2645 = vunpack.c.l.b16 %v2513
    %v2646 = vunpack.c.l.b16 %v2514
    %v2647 = vunpack.c.l.b16 %v2515
    %v2648 = vunpack.c.l.b16 %v2516
    %v2649 = vunpack.c.l.b16 %v2517
    %v2650 = vunpack.c.l.b16 %v2518
    %v2651 = vunpack.c.l.b16 %v2519
    %v2652 = vunpack.c.l.b16 %v2520
    %v2653 = vunpack.c.l.b16 %v2521
    %v2654 = vunpack.c.l.b16 %v2522
    %v2655 = vunpack.c.l.b16 %v2523
    %v2656 = vunpack.c.l.b16 %v2524
    %v2657 = vunpack.c.l.b16 %v2525
    %v2658 = vunpack.c.l.b16 %v2526
    %v2659 = vunpack.c.l.b16 %v2527
    %v2660 = vunpack.c.l.b16 %v2528
    %v2661 = vunpack.c.l.b16 %v2529
    %v2662 = vunpack.c.l.b16 %v2530
    %v2663 = vunpack.c.l.b16 %v2531
    %v2664 = vunpack.c.l.b16 %v2532
    %v2665 = vunpack.c.l.b16 %v2533
    %v2666 = vunpack.c.l.b16 %v2534
    %v2667 = vunpack.c.l.b16 %v2535
    %v2668 = vunpack.c.l.b16 %v2536
    %v2669 = vunpack.c.l.b16 %v2537
    %v2670 = vunpack.c.l.b16 %v2538
    %v2671 = vunpack.c.l.b16 %v2539
    %v2672 = vunpack.c.l.b16 %v2540
    %v2673 = vunpack.c.l.b16 %v2541
    %v2674 = vunpack.c.l.b16 %v2542
    %v2675 = vunpack.c.l.b16 %v2543
    %v2676 = vunpack.c.l.b16 %v2544
    %v2677 = vunpack.c.l.b16 %v2545
    %v2678 = vunpack.c.l.b16 %v2546
    %v2679 = vunpack.c.l.b16 %v2547
    %v2680 = vunpack.c.l.b16 %v2548
    %v2681 = vunpack.c.l.b16 %v2549
    %v2682 = vunpack.c.l.b16 %v2550
    %v2683 = vunpack.c.l.b16 %v2551
    %v2684 = vunpack.c.l.b16 %v2552
    %v2685 = vunpack.c.l.b16 %v2553
    %v2686 = vunpack.c.l.b16 %v2554
    %v2687 = vunpack.c.l.b16 %v2555
    %v2688 = vunpack.c.l.b16 %v2556
    %v2689 = vunpack.c.l.b16 %v2557
    %v2690 = vunpack.c.l.b16 %v2558
    %v2691 = vunpack.c.l.b16 %v2559
    %v2692 = vunpack.c.l.b16 %v2560
    %v2693 = vunpack.c.l.b16 %v2561
    %v2694 = vunpack.c.l.b16 %v2562
    %v2695 = vunpack.c.l.b16 %v2563
    %v2696 = vunpack.c.l.b16 %v2564
    %v2697 = vunpack.c.l.b16 %v2565
    %v2698 = vunpack.c.l.b16 %v2566
    %v2699 = vunpack.c.l.b16 %v2567
    %v2700 = vunpack.c.l.b16 %v2568
    %v2701 = vpack.c.b16 %v2638, %v2637
    %v2702 = vpack.c.b16 %v2640, %v2639
    %v2703 = vpack.c.b16 %v2642, %v2641
    %v2704 = vpack.c.b16 %v2644, %v2643
    %v2705 = vpack.c.b16 %v2646, %v2645
    %v2706 = vpack.c.b16 %v2648, %v2647
    %v2707 = vpack.c.b16 %v2650, %v2649
    %v2708 = vpack.c.b16 %v2652, %v2651
    %v2709 = vpack.c.b16 %v2654, %v2653
    %v2710 = vpack.c.b16 %v2656, %v2655
    %v2711 = vpack.c.b16 %v2658, %v2657
    %v2712 = vpack.c.b16 %v2660, %v2659
    %v2713 = vpack.c.b16 %v2662, %v2661
    %v2714 = vpack.c.b16 %v2664, %v2663
    %v2715 = vpack.c.b16 %v2666, %v2665
    %v2716 = vpack.c.b16 %v2668, %v2667
    %v2717 = vpack.c.b16 %v2670, %v2669
    %v2718 = vpack.c.b16 %v2672, %v2671
    %v2719 = vpack.c.b16 %v2674, %v2673
    %v2720 = vpack.c.b16 %v2676, %v2675
    %v2721 = vpack.c.b16 %v2678, %v2677
    %v2722 = vpack.c.b16 %v2680, %v2679
    %v2723 = vpack.c.b16 %v2682, %v2681
    %v2724 = vpack.c.b16 %v2684, %v2683
    %v2725 = vpack.c.b16 %v2686, %v2685
    %v2726 = vpack.c.b16 %v2688, %v2687
    %v2727 = vpack.c.b16 %v2690, %v2689
    %v2728 = vpack.c.b16 %v2692, %v2691
    %v2729 = vpack.c.b16 %v2694, %v2693
    %v2730 = vpack.c.b16 %v2696, %v2695
    %v2731 = vpack.c.b16 %v2698, %v2697
    %v2732 = vpack.c.b16 %v2700, %v2699
    %2765 = vmatpush.bf16.msra.mxu0 %v2708
    %2766 = vmatpush.bf16.msra.mxu0 %v2707
    %2767 = vmatpush.bf16.msra.mxu0 %v2706
    %2768 = vmatpush.bf16.msra.mxu0 %v2705
    %2769 = vmatpush.bf16.msra.mxu0 %v2704
    %2770 = vmatpush.bf16.msra.mxu0 %v2703
    %2771 = vmatpush.bf16.msra.mxu0 %v2702
    %2772 = vmatpush.bf16.msra.mxu0 %v2701
    %2773 = vmatmul.bf16.gmra.mxu0 %v2501
    %v2774 = vpop.f32.mrf.mxu0
    %v2775 = vadd.f32 %v2571, %v2774
    %v2776 = vpop.f32.mrf.mxu0
    %2777 = vdwg.mxu0
    %2778 = vmatpush.bf16.msra.mxu0 %v2716
    %2779 = vmatpush.bf16.msra.mxu0 %v2715
    %2780 = vmatpush.bf16.msra.mxu0 %v2714
    %2781 = vmatpush.bf16.msra.mxu0 %v2713
    %2782 = vmatpush.bf16.msra.mxu0 %v2712
    %2783 = vmatpush.bf16.msra.mxu0 %v2711
    %2784 = vmatpush.bf16.msra.mxu0 %v2710
    %2785 = vmatpush.bf16.msra.mxu0 %v2709
    %2786 = vmatmul.bf16.gmra.mxu0 %v2502
    %v2787 = vpop.f32.mrf.mxu0
    %v2788 = vadd.f32 %v2775, %v2787
    %v2789 = vpop.f32.mrf.mxu0
    %2790 = vdwg.mxu0
    %2791 = vmatpush.bf16.msra.mxu0 %v2724
    %2792 = vmatpush.bf16.msra.mxu0 %v2723
    %2793 = vmatpush.bf16.msra.mxu0 %v2722
    %2794 = vmatpush.bf16.msra.mxu0 %v2721
    %2795 = vmatpush.bf16.msra.mxu0 %v2720
    %2796 = vmatpush.bf16.msra.mxu0 %v2719
    %2797 = vmatpush.bf16.msra.mxu0 %v2718
    %2798 = vmatpush.bf16.msra.mxu0 %v2717
    %2799 = vmatmul.bf16.gmra.mxu0 %v2503
    %v2800 = vpop.f32.mrf.mxu0
    %v2801 = vadd.f32 %v2788, %v2800
    %v2802 = vpop.f32.mrf.mxu0
    %2803 = vdwg.mxu0
    %2804 = vmatpush.bf16.msra.mxu0 %v2732
    %2805 = vmatpush.bf16.msra.mxu0 %v2731
    %2806 = vmatpush.bf16.msra.mxu0 %v2730
    %2807 = vmatpush.bf16.msra.mxu0 %v2729
    %2808 = vmatpush.bf16.msra.mxu0 %v2728
    %2809 = vmatpush.bf16.msra.mxu0 %v2727
    %2810 = vmatpush.bf16.msra.mxu0 %v2726
    %2811 = vmatpush.bf16.msra.mxu0 %v2725
    %2812 = vmatmul.bf16.gmra.mxu0 %v2504
    %v2813 = vpop.f32.mrf.mxu0
    %v2814 = vadd.f32 %v2801, %v2813
    %v2815 = vpop.f32.mrf.mxu0
    %2816 = vdwg.mxu0
    %vm2817 = vcmask 41984
    %2818 = vst.msk [vmem:[#allocation2] sm:$0x3] %vm2817, %v2814
    // Predicated region
    $region22: #{simple_dqnet_forward.7} parent=1 // pred_check
      _
    $region23: #{simple_dqnet_forward.7} parent=1 // pred_check_branch
      %2820 = sbr.rel (0) target = $region25
    $region24: #{simple_dqnet_forward.7} parent=1 // pred_region
      %2822 = vsyncadd [#allocation3], 0
      %s2824 = sshll.u32 [#allocation2], 4
      %s2825 = int_to_ptr.vmem [resolvable:$true] %s2824
      %s2826 = sshll.u32 %s5, 4
      %s2827 = int_to_ptr.hbm [resolvable:$true] %s2826
      %2829 = dma.vmem_to_hbm [thread:$0]  %s2825, 32, %s2827, [#allocation3]
    $region25: #{simple_dqnet_forward.7} parent=1 // pred_fallthru
      _
    // Predicated region
    $region26: #{simple_dqnet_forward.7} parent=1 // pred_check
      _
    $region27: #{simple_dqnet_forward.7} parent=1 // pred_check_branch
      %2831 = sbr.rel (0) target = $region29
    $region28: #{simple_dqnet_forward.7} parent=1 // pred_region
      %2833 = dma.done [#allocation3], 32
    $region29: #{simple_dqnet_forward.7} parent=1 // pred_fallthru
      _
    %2834 = vsyncpa [#allocation3], 1

</llo_original>
